<compile_context>
chip_gen: v7x
topology: tpu7x:2x2x1
jax: 0.10.0
libtpu: 0.0.40
codegen_flags: <defaults>
</compile_context>

<pallas_src>
import functools

import jax
import jax.numpy as jnp
from jax.experimental import pallas as pl
from jax.experimental.pallas import tpu as pltpu

LN_EPS = 1e-5  # PyTorch nn.LayerNorm default


def _layernorm(x, gamma, beta):
    mean = jnp.mean(x, axis=-1, keepdims=True)
    var = jnp.mean((x - mean) ** 2, axis=-1, keepdims=True)
    return (x - mean) * jax.lax.rsqrt(var + LN_EPS) * gamma + beta


# ---------------------------------------------------------------------------
# Kernel
# ---------------------------------------------------------------------------
def transformer_block_kernel(
    xq_ref,                                           # (tq, D)  query tile (residual)
    xkv_ref,                                          # (S,  D)  full sequence (K/V source)
    ln1a_g_ref, ln1a_b_ref, ln1b_g_ref, ln1b_b_ref,   # (1, D) each, f32
    wq_ref, bq_ref,                                   # (D, D) cdt / (1, D) f32
    wkv_ref, bkv_ref,                                 # (D, 2D) cdt / (1, 2D) f32
    wo_ref, bo_ref,                                   # (D, D) cdt / (1, D) f32
    ln2_g_ref, ln2_b_ref,                             # (1, D) f32
    w1_ref, b1_ref,                                   # (D, Hm) cdt / (1, Hm) f32
    w2_ref, b2_ref,                                   # (Hm, D) cdt / (1, D) f32
    o_ref,                                            # (tq, D)
    kh_ref, vh_ref,                                   # (H, S, hd) cdt  -- per-batch cache
    q3_ref,                                           # (H, tq, hd) cdt
    ctx_ref,                                          # (tq, D) cdt
    *, num_heads, hm_chunk, approx_recip,
):
    qi = pl.program_id(1)
    tq, D = xq_ref.shape
    S = xkv_ref.shape[0]
    H = num_heads
    hd = D // H
    scale = 1.0 / (hd ** 0.5)
    cdt = wq_ref.dtype                                # MXU operand dtype (bf16 or f32)

    ln1a_g, ln1a_b = ln1a_g_ref[0], ln1a_b_ref[0]
    ln1b_g, ln1b_b = ln1b_g_ref[0], ln1b_b_ref[0]

    def double_ln(v):  # norm1 = LayerNorm -> LayerNorm (stats in f32)
        return _layernorm(_layernorm(v, ln1a_g, ln1a_b), ln1b_g, ln1b_b)

    # ---- per-batch K/V cache fill (runs ONCE per batch, not per query tile) --
    @pl.when(qi == 0)
    def _fill_kv_cache():
        xn = double_ln(xkv_ref[...]).astype(cdt)                        # (S, D)
        kv = (jnp.dot(xn, wkv_ref[...], preferred_element_type=jnp.float32)
              + bkv_ref[0])                                             # (S, 2D) f32
        # Head-major split into the (H, S, hd) cache layout.  Static slice
        # stores only: each slice dies on store (no co-live per-head tensors).
        for h in range(H):
            kh_ref[h] = kv[:, h * hd:(h + 1) * hd].astype(cdt)
            vh_ref[h] = kv[:, D + h * hd:D + (h + 1) * hd].astype(cdt)

    # ---- query path for this tile (each row projected exactly once) ---------
    xq = xq_ref[...]                                                    # (tq, D) f32
    xnq = double_ln(xq).astype(cdt)
    q = (jnp.dot(xnq, wq_ref[...], preferred_element_type=jnp.float32)
         + bq_ref[0]) * scale                                           # (tq, D) f32
    for h in range(H):
        q3_ref[h] = q[:, h * hd:(h + 1) * hd].astype(cdt)               # (H, tq, hd)

    # ---- head-batched attention: one dot_general per matmul for ALL heads ---
    s = jnp.einsum('hqd,hkd->hqk', q3_ref[...], kh_ref[...],
                   preferred_element_type=jnp.float32)                  # (H, tq, S) f32
    s = s - jnp.max(s, axis=-1, keepdims=True)
    p = jnp.exp(s)
    l = jnp.sum(p, axis=-1, keepdims=True)
    inv = pl.reciprocal(l, approx=True) if approx_recip else 1.0 / l    # EUP slot
    p = (p * inv).astype(cdt)
    ctx = jnp.einsum('hqk,hkd->hqd', p, vh_ref[...],
                     preferred_element_type=jnp.float32)                # (H, tq, hd) f32
    # Merge heads head-major into the (tq, D) scratch (replaces lane concat).
    for h in range(H):
        ctx_ref[:, h * hd:(h + 1) * hd] = ctx[h].astype(cdt)

    # ---- single fused output projection + residual 1 -------------------------
    attn = (jnp.dot(ctx_ref[...], wo_ref[...],
                    preferred_element_type=jnp.float32) + bo_ref[0])
    x1 = xq + attn                                                      # (tq, D) f32

    # ---- norm2 + MLP (Dropout(p=0.0) is identity) -----------------------------
    xn2 = _layernorm(x1, ln2_g_ref[0], ln2_b_ref[0]).astype(cdt)
    Hm = w1_ref.shape[1]
    n_chunks = Hm // hm_chunk
    if n_chunks == 1:
        h1 = (jnp.dot(xn2, w1_ref[...], preferred_element_type=jnp.float32)
              + b1_ref[0])
        h1 = jnp.maximum(h1, 0.0).astype(cdt)                           # ReLU
        m = (jnp.dot(h1, w2_ref[...], preferred_element_type=jnp.float32)
             + b2_ref[0])
    else:
        # Tile the hidden dim so the (tq, Hm) intermediate stays bounded.
        def body(c, acc):
            off = pl.multiple_of(c * hm_chunk, hm_chunk)                # 128-aligned
            h1 = (jnp.dot(xn2, w1_ref[:, pl.ds(off, hm_chunk)],
                          preferred_element_type=jnp.float32)
                  + b1_ref[:, pl.ds(off, hm_chunk)])
            h1 = jnp.maximum(h1, 0.0).astype(cdt)
            return acc + jnp.dot(h1, w2_ref[pl.ds(off, hm_chunk), :],
                                 preferred_element_type=jnp.float32)
        m = jax.lax.fori_loop(0, n_chunks, body,
                              jnp.zeros((tq, D), jnp.float32)) + b2_ref[0]

    o_ref[...] = (x1 + m).astype(o_ref.dtype)                           # residual 2


# ---------------------------------------------------------------------------
# Wrapper: generation-aware tiling / VMEM budget
# ---------------------------------------------------------------------------
def _vmem_limit_bytes():
    # ~75% of physical VMEM, capped at 100 MiB:
    #   v5e/v6e (128 MiB) -> 96 MiB ;  v7x (64 MiB) -> 48 MiB.
    try:
        cap = int(pltpu.get_tpu_info().vmem_capacity_bytes)
    except Exception:
        return 48 * 1024 * 1024            # conservative, known-good default
    return int(min(cap * 3 // 4, 100 * 1024 * 1024))


def _pick_hm_chunk(hidden):
    # Tile the MLP hidden dim when large; chunks are multiples of 128 lanes.
    if hidden <= 2048:
        return hidden
    for c in (2048, 1024, 512, 256, 128):
        if hidden % c == 0:
            return c
    return hidden


def _pick_tq(S, D, num_heads, hidden, cdt_bytes, vmem_limit):
    """Largest query tile whose per-step live set fits comfortably in VMEM."""
    # tq-independent residents: weights (single-buffered), per-head K/V caches,
    # the (S, D) f32 xkv block (double-buffered).
    weights = (4 * D * D + 2 * D * hidden) * cdt_bytes
    fixed = weights + 2 * S * D * cdt_bytes + 2 * S * D * 4
    avail = max(vmem_limit - fixed, vmem_limit // 8)
    hm_eff = _pick_hm_chunk(hidden)
    fallback = None
    for t in (512, 256, 128, 64, 32, 16, 8):
        if t > S or S % t:
            continue
        fallback = t                                     # ends as smallest divisor
        per_step = (2 * num_heads * t * S * 4            # scores + probs (f32)
                    + t * hm_eff * (4 + cdt_bytes)       # MLP hidden intermediate
                    + 8 * t * D * 4)                     # q/ctx/x1 + in/out tiles
        if per_step <= avail * 0.6:
            return t
    return fallback if fallback is not None else S       # ragged / tiny S


def _const_spec(a, single_buffer):
    # Whole array resident in VMEM; block index never changes across the grid.
    nd = a.ndim
    if single_buffer:
        # Weights never change block index -> the default second buffer is
        # pure VMEM waste; request single buffering.
        return pl.BlockSpec(a.shape, lambda b, qi, _nd=nd: (0,) * _nd,
                            pipeline_mode=pl.Buffered(1))
    return pl.BlockSpec(a.shape, lambda b, qi, _nd=nd: (0,) * _nd)


def transformer_block(x, kparams, num_heads, compute_dtype=jnp.bfloat16):
    B, S, D = x.shape
    assert D % num_heads == 0, "dim must be divisible by num_heads"
    # NOTE: production shapes want D % 128 == 0 and tq % 8 == 0 for lane-dense
    # stores / full MXU tiles; small demo shapes below this run correctly but
    # under-utilize lanes.
    hd = D // num_heads
    Hm = kparams["w1"].shape[1]
    cdt_bytes = jnp.dtype(compute_dtype).itemsize

    vmem_limit = _vmem_limit_bytes()
    tq = _pick_tq(S, D, num_heads, Hm, cdt_bytes, vmem_limit)
    nq = S // tq
    hm_chunk = _pick_hm_chunk(Hm)

    params = (
        kparams["ln1a_g"], kparams["ln1a_b"], kparams["ln1b_g"], kparams["ln1b_b"],
        kparams["wq"], kparams["bq"], kparams["wkv"], kparams["bkv"],
        kparams["wo"], kparams["bo"],
        kparams["ln2_g"], kparams["ln2_b"],
        kparams["w1"], kparams["b1"], kparams["w2"], kparams["b2"],
    )

    kernel = functools.partial(
        transformer_block_kernel, num_heads=num_heads, hm_chunk=hm_chunk,
        approx_recip=(compute_dtype == jnp.bfloat16))

    xq_spec = pl.BlockSpec((None, tq, D), lambda b, qi: (b, qi, 0))
    xkv_spec = pl.BlockSpec((None, S, D), lambda b, qi: (b, 0, 0))  # const over qi
    out_spec = pl.BlockSpec((None, tq, D), lambda b, qi: (b, qi, 0))

    scratch = [
        pltpu.VMEM((num_heads, S, hd), compute_dtype),   # K cache (per batch)
        pltpu.VMEM((num_heads, S, hd), compute_dtype),   # V cache (per batch)
        pltpu.VMEM((num_heads, tq, hd), compute_dtype),  # per-tile Q heads
        pltpu.VMEM((tq, D), compute_dtype),              # merged context
    ]

    # Advisory cost estimate so XLA schedules surrounding ops sensibly.
    flops = B * (2 * S * D * 3 * D          # QKV projections
                 + 4 * S * S * D            # scores + context
                 + 2 * S * D * D            # output projection
                 + 4 * S * D * Hm)          # MLP
    trans = B * (num_heads * S * S + 5 * S)
    wbytes = sum(int(p.size) * jnp.dtype(p.dtype).itemsize for p in params)
    bytes_accessed = 3 * B * S * D * 4 + wbytes
    try:
        cost = pl.CostEstimate(flops=int(flops), transcendentals=int(trans),
                               bytes_accessed=int(bytes_accessed))
    except Exception:
        cost = None

    def build(single_buffer_weights):
        in_specs = [xq_spec, xkv_spec] + [
            _const_spec(p, single_buffer_weights) for p in params]
        return pl.pallas_call(
            kernel,
            out_shape=jax.ShapeDtypeStruct((B, S, D), x.dtype),
            grid=(B, nq),
            in_specs=in_specs,
            out_specs=out_spec,
            scratch_shapes=scratch,
            compiler_params=pltpu.CompilerParams(
                # qi MUST be 'arbitrary': the K/V cache is filled at qi == 0
                # and reused across the query-tile axis.
                dimension_semantics=("parallel", "arbitrary"),
                vmem_limit_bytes=int(vmem_limit),
            ),
            cost_estimate=cost,
        )

    try:
        return jax.block_until_ready(build(True)(x, x, *params))
    except Exception:
        # Single-buffered weight specs unavailable on this jax/backend version;
        # fall back to default double buffering (correctness identical).
        return jax.block_until_ready(build(False)(x, x, *params))


# ---------------------------------------------------------------------------
# Deterministic parameter construction (PyTorch layout) + kernel repacking
# ---------------------------------------------------------------------------
def init_pt_params(key, dim, num_heads, mlp_ratio=4.0):
    hidden = int(dim * mlp_ratio)
    ks = jax.random.split(key, 8)
    w = lambda k, shape: jax.random.normal(k, shape, jnp.float32) * 0.02
    return dict(
        ln1a_g=jnp.ones((dim,), jnp.float32), ln1a_b=jnp.zeros((dim,), jnp.float32),
        ln1b_g=jnp.ones((dim,), jnp.float32), ln1b_b=jnp.zeros((dim,), jnp.float32),
        in_proj_w=w(ks[0], (3 * dim, dim)),           # PyTorch (3D, D)
        in_proj_b=w(ks[1], (3 * dim,)),
        out_proj_w=w(ks[2], (dim, dim)),              # PyTorch (D, D)
        out_proj_b=w(ks[3], (dim,)),
        ln2_g=jnp.ones((dim,), jnp.float32), ln2_b=jnp.zeros((dim,), jnp.float32),
        w1=w(ks[4], (hidden, dim)), b1=w(ks[5], (hidden,)),
        w2=w(ks[6], (dim, hidden)), b2=w(ks[7], (dim,)),
    )


def pack_kernel_params(p, dim, num_heads, compute_dtype=jnp.bfloat16):
    D = dim
    cdt = compute_dtype
    wq_pt, wk_pt, wv_pt = p["in_proj_w"][:D], p["in_proj_w"][D:2 * D], p["in_proj_w"][2 * D:]
    bq_pt, bk_pt, bv_pt = p["in_proj_b"][:D], p["in_proj_b"][D:2 * D], p["in_proj_b"][2 * D:]
    # y = x @ W_pt.T + b ; output feature j of each projection belongs to head
    # j // hd, matching PyTorch's head-major concat of per-head contexts.
    return dict(
        ln1a_g=p["ln1a_g"][None], ln1a_b=p["ln1a_b"][None],
        ln1b_g=p["ln1b_g"][None], ln1b_b=p["ln1b_b"][None],
        wq=wq_pt.T.astype(cdt), bq=bq_pt[None],
        wkv=jnp.concatenate([wk_pt.T, wv_pt.T], axis=1).astype(cdt),   # (D, 2D)
        bkv=jnp.concatenate([bk_pt, bv_pt])[None],                     # (1, 2D)
        wo=p["out_proj_w"].T.astype(cdt), bo=p["out_proj_b"][None],
        ln2_g=p["ln2_g"][None], ln2_b=p["ln2_b"][None],
        w1=p["w1"].T.astype(cdt), b1=p["b1"][None],
        w2=p["w2"].T.astype(cdt), b2=p["b2"][None],
    )


# ---------------------------------------------------------------------------
# Pure-JAX reference (mirrors the PyTorch forward) for validation
# ---------------------------------------------------------------------------
def reference(x, p, num_heads):
    B, S, D = x.shape
    hd = D // num_heads
    ln = lambda v, g, b: _layernorm(v, g, b)
    xn = ln(ln(x, p["ln1a_g"], p["ln1a_b"]), p["ln1b_g"], p["ln1b_b"])
    qkv = xn @ p["in_proj_w"].T + p["in_proj_b"]
    q, k, v = qkv[..., :D], qkv[..., D:2 * D], qkv[..., 2 * D:]
    rs = lambda t: t.reshape(B, S, num_heads, hd).transpose(0, 2, 1, 3)
    q, k, v = rs(q), rs(k), rs(v)
    scores = jnp.einsum("bhqd,bhkd->bhqk", q, k) / (hd ** 0.5)
    probs = jax.nn.softmax(scores, axis=-1)
    o = jnp.einsum("bhqk,bhkd->bhqd", probs, v).transpose(0, 2, 1, 3).reshape(B, S, D)
    attn = o @ p["out_proj_w"].T + p["out_proj_b"]
    x1 = x + attn
    xn2 = ln(x1, p["ln2_g"], p["ln2_b"])
    m = jnp.maximum(xn2 @ p["w1"].T + p["b1"], 0.0) @ p["w2"].T + p["b2"]
    return x1 + m


if __name__ == "__main__":
    B, S, dim, num_heads = 2, 8, 32, 4
    key = jax.random.PRNGKey(0)
    kx, kp = jax.random.split(key)
    x = jax.random.normal(kx, (B, S, dim), jnp.float32)

    pt_params = init_pt_params(kp, dim, num_heads, mlp_ratio=4.0)
    ref = reference(x, pt_params, num_heads)

    # f32 compute path: tight numerical check of the kernel structure.
    kp_f32 = pack_kernel_params(pt_params, dim, num_heads, jnp.float32)
    out_f32 = jax.block_until_ready(
        transformer_block(x, kp_f32, num_heads, compute_dtype=jnp.float32))
    assert out_f32.shape == (B, S, dim)
    assert jnp.allclose(out_f32, ref, rtol=1e-4, atol=1e-4), \
        f"f32 max abs err {jnp.max(jnp.abs(out_f32 - ref))}"

    # bf16 MXU path (performance config): f32 accumulation + f32 LN/softmax stats.
    kp_bf16 = pack_kernel_params(pt_params, dim, num_heads, jnp.bfloat16)
    out_bf16 = jax.block_until_ready(
        transformer_block(x, kp_bf16, num_heads, compute_dtype=jnp.bfloat16))
    assert out_bf16.shape == (B, S, dim)
    assert jnp.allclose(out_bf16, ref, rtol=2e-2, atol=2e-2), \
        f"bf16 max abs err {jnp.max(jnp.abs(out_bf16 - ref))}"

    print("KERNEL_OK")
</pallas_src>

<mosaic_0001>
module attributes {stable_mosaic.version = 11 : i64} {
  func.func @transformer_block_kernel(%arg0: i32, %arg1: i32, %arg2: memref<1x8x32xf32, #tpu.memory_space<vmem>>, %arg3: memref<1x8x32xf32, #tpu.memory_space<vmem>>, %arg4: memref<1x32xf32, #tpu.memory_space<vmem>>, %arg5: memref<1x32xf32, #tpu.memory_space<vmem>>, %arg6: memref<1x32xf32, #tpu.memory_space<vmem>>, %arg7: memref<1x32xf32, #tpu.memory_space<vmem>>, %arg8: memref<32x32xf32, #tpu.memory_space<vmem>>, %arg9: memref<1x32xf32, #tpu.memory_space<vmem>>, %arg10: memref<32x64xf32, #tpu.memory_space<vmem>>, %arg11: memref<1x64xf32, #tpu.memory_space<vmem>>, %arg12: memref<32x32xf32, #tpu.memory_space<vmem>>, %arg13: memref<1x32xf32, #tpu.memory_space<vmem>>, %arg14: memref<1x32xf32, #tpu.memory_space<vmem>>, %arg15: memref<1x32xf32, #tpu.memory_space<vmem>>, %arg16: memref<32x128xf32, #tpu.memory_space<vmem>>, %arg17: memref<1x128xf32, #tpu.memory_space<vmem>>, %arg18: memref<128x32xf32, #tpu.memory_space<vmem>>, %arg19: memref<1x32xf32, #tpu.memory_space<vmem>>, %arg20: memref<1x8x32xf32, #tpu.memory_space<vmem>>, %arg21: memref<4x8x8xf32, #tpu.memory_space<vmem>>, %arg22: memref<4x8x8xf32, #tpu.memory_space<vmem>>, %arg23: memref<4x8x8xf32, #tpu.memory_space<vmem>>, %arg24: memref<8x32xf32, #tpu.memory_space<vmem>>) attributes {dimension_semantics = [#tpu.dimension_semantics<parallel>, #tpu.dimension_semantics<arbitrary>], iteration_bounds = array<i64: 2, 1>, scalar_prefetch = 0 : i64, scratch_operands = 4 : i64, tpu.core_type = #tpu.core_type<tc>, window_params = [{transform_indices = @transform_0, window_bounds = array<i64: 1, 8, 32>}, {transform_indices = @transform_1, window_bounds = array<i64: 1, 8, 32>}, {pipeline_mode = #tpu.pipeline_mode<synchronous>, transform_indices = @transform_2, window_bounds = array<i64: 1, 32>}, {pipeline_mode = #tpu.pipeline_mode<synchronous>, transform_indices = @transform_3, window_bounds = array<i64: 1, 32>}, {pipeline_mode = #tpu.pipeline_mode<synchronous>, transform_indices = @transform_4, window_bounds = array<i64: 1, 32>}, {pipeline_mode = #tpu.pipeline_mode<synchronous>, transform_indices = @transform_5, window_bounds = array<i64: 1, 32>}, {pipeline_mode = #tpu.pipeline_mode<synchronous>, transform_indices = @transform_6, window_bounds = array<i64: 32, 32>}, {pipeline_mode = #tpu.pipeline_mode<synchronous>, transform_indices = @transform_7, window_bounds = array<i64: 1, 32>}, {pipeline_mode = #tpu.pipeline_mode<synchronous>, transform_indices = @transform_8, window_bounds = array<i64: 32, 64>}, {pipeline_mode = #tpu.pipeline_mode<synchronous>, transform_indices = @transform_9, window_bounds = array<i64: 1, 64>}, {pipeline_mode = #tpu.pipeline_mode<synchronous>, transform_indices = @transform_10, window_bounds = array<i64: 32, 32>}, {pipeline_mode = #tpu.pipeline_mode<synchronous>, transform_indices = @transform_11, window_bounds = array<i64: 1, 32>}, {pipeline_mode = #tpu.pipeline_mode<synchronous>, transform_indices = @transform_12, window_bounds = array<i64: 1, 32>}, {pipeline_mode = #tpu.pipeline_mode<synchronous>, transform_indices = @transform_13, window_bounds = array<i64: 1, 32>}, {pipeline_mode = #tpu.pipeline_mode<synchronous>, transform_indices = @transform_14, window_bounds = array<i64: 32, 128>}, {pipeline_mode = #tpu.pipeline_mode<synchronous>, transform_indices = @transform_15, window_bounds = array<i64: 1, 128>}, {pipeline_mode = #tpu.pipeline_mode<synchronous>, transform_indices = @transform_16, window_bounds = array<i64: 128, 32>}, {pipeline_mode = #tpu.pipeline_mode<synchronous>, transform_indices = @transform_17, window_bounds = array<i64: 1, 32>}, {transform_indices = @transform_18, window_bounds = array<i64: 1, 8, 32>}]} {
    %c0 = arith.constant 0 : index
    %c0_0 = arith.constant 0 : index
    %0 = vector.load %arg4[%c0, %c0_0] : memref<1x32xf32, #tpu.memory_space<vmem>>, vector<1x32xf32>
    %1 = vector.shape_cast %0 : vector<1x32xf32> to vector<32xf32>
    %c0_1 = arith.constant 0 : index
    %c0_2 = arith.constant 0 : index
    %2 = vector.load %arg5[%c0_1, %c0_2] : memref<1x32xf32, #tpu.memory_space<vmem>>, vector<1x32xf32>
    %3 = vector.shape_cast %2 : vector<1x32xf32> to vector<32xf32>
    %c0_3 = arith.constant 0 : index
    %c0_4 = arith.constant 0 : index
    %4 = vector.load %arg6[%c0_3, %c0_4] : memref<1x32xf32, #tpu.memory_space<vmem>>, vector<1x32xf32>
    %5 = vector.shape_cast %4 : vector<1x32xf32> to vector<32xf32>
    %c0_5 = arith.constant 0 : index
    %c0_6 = arith.constant 0 : index
    %6 = vector.load %arg7[%c0_5, %c0_6] : memref<1x32xf32, #tpu.memory_space<vmem>>, vector<1x32xf32>
    %7 = vector.shape_cast %6 : vector<1x32xf32> to vector<32xf32>
    %c0_i32 = arith.constant 0 : i32
    %8 = arith.cmpi eq, %arg1, %c0_i32 : i32
    %9 = arith.extui %8 : i1 to i32
    %c0_i32_7 = arith.constant 0 : i32
    %10 = arith.cmpi ne, %9, %c0_i32_7 : i32
    scf.if %10 {
      %c0_84 = arith.constant 0 : index
      %c0_85 = arith.constant 0 : index
      %c0_86 = arith.constant 0 : index
      %171 = vector.load %arg3[%c0_84, %c0_85, %c0_86] : memref<1x8x32xf32, #tpu.memory_space<vmem>>, vector<1x8x32xf32>
      %172 = vector.shape_cast %171 : vector<1x8x32xf32> to vector<8x32xf32>
      %cst_87 = arith.constant dense<0.000000e+00> : vector<8xf32>
      %173 = vector.multi_reduction <add>, %172, %cst_87 [1] : vector<8x32xf32> to vector<8xf32>
      %174 = vector.shape_cast %173 : vector<8xf32> to vector<8x1xf32>
      %cst_88 = arith.constant 3.200000e+01 : f32
      %175 = vector.broadcast %cst_88 : f32 to vector<8x1xf32>
      %176 = arith.divf %174, %175 : vector<8x1xf32>
      %177 = vector.broadcast %176 : vector<8x1xf32> to vector<8x32xf32>
      %178 = arith.subf %172, %177 : vector<8x32xf32>
      %179 = arith.mulf %178, %178 : vector<8x32xf32>
      %cst_89 = arith.constant dense<0.000000e+00> : vector<8xf32>
      %180 = vector.multi_reduction <add>, %179, %cst_89 [1] : vector<8x32xf32> to vector<8xf32>
      %181 = vector.shape_cast %180 : vector<8xf32> to vector<8x1xf32>
      %cst_90 = arith.constant 3.200000e+01 : f32
      %182 = vector.broadcast %cst_90 : f32 to vector<8x1xf32>
      %183 = arith.divf %181, %182 : vector<8x1xf32>
      %184 = vector.broadcast %176 : vector<8x1xf32> to vector<8x32xf32>
      %185 = arith.subf %172, %184 : vector<8x32xf32>
      %cst_91 = arith.constant 9.99999974E-6 : f32
      %186 = vector.broadcast %cst_91 : f32 to vector<8x1xf32>
      %187 = arith.addf %183, %186 : vector<8x1xf32>
      %188 = math.rsqrt %187 : vector<8x1xf32>
      %189 = vector.broadcast %188 : vector<8x1xf32> to vector<8x32xf32>
      %190 = arith.mulf %185, %189 : vector<8x32xf32>
      %191 = vector.shape_cast %1 : vector<32xf32> to vector<1x32xf32>
      %192 = vector.broadcast %191 : vector<1x32xf32> to vector<8x32xf32>
      %193 = arith.mulf %190, %192 : vector<8x32xf32>
      %194 = vector.shape_cast %3 : vector<32xf32> to vector<1x32xf32>
      %195 = vector.broadcast %194 : vector<1x32xf32> to vector<8x32xf32>
      %196 = arith.addf %193, %195 : vector<8x32xf32>
      %cst_92 = arith.constant dense<0.000000e+00> : vector<8xf32>
      %197 = vector.multi_reduction <add>, %196, %cst_92 [1] : vector<8x32xf32> to vector<8xf32>
      %198 = vector.shape_cast %197 : vector<8xf32> to vector<8x1xf32>
      %cst_93 = arith.constant 3.200000e+01 : f32
      %199 = vector.broadcast %cst_93 : f32 to vector<8x1xf32>
      %200 = arith.divf %198, %199 : vector<8x1xf32>
      %201 = vector.broadcast %200 : vector<8x1xf32> to vector<8x32xf32>
      %202 = arith.subf %196, %201 : vector<8x32xf32>
      %203 = arith.mulf %202, %202 : vector<8x32xf32>
      %cst_94 = arith.constant dense<0.000000e+00> : vector<8xf32>
      %204 = vector.multi_reduction <add>, %203, %cst_94 [1] : vector<8x32xf32> to vector<8xf32>
      %205 = vector.shape_cast %204 : vector<8xf32> to vector<8x1xf32>
      %cst_95 = arith.constant 3.200000e+01 : f32
      %206 = vector.broadcast %cst_95 : f32 to vector<8x1xf32>
      %207 = arith.divf %205, %206 : vector<8x1xf32>
      %208 = vector.broadcast %200 : vector<8x1xf32> to vector<8x32xf32>
      %209 = arith.subf %196, %208 : vector<8x32xf32>
      %cst_96 = arith.constant 9.99999974E-6 : f32
      %210 = vector.broadcast %cst_96 : f32 to vector<8x1xf32>
      %211 = arith.addf %207, %210 : vector<8x1xf32>
      %212 = math.rsqrt %211 : vector<8x1xf32>
      %213 = vector.broadcast %212 : vector<8x1xf32> to vector<8x32xf32>
      %214 = arith.mulf %209, %213 : vector<8x32xf32>
      %215 = vector.shape_cast %5 : vector<32xf32> to vector<1x32xf32>
      %216 = vector.broadcast %215 : vector<1x32xf32> to vector<8x32xf32>
      %217 = arith.mulf %214, %216 : vector<8x32xf32>
      %218 = vector.shape_cast %7 : vector<32xf32> to vector<1x32xf32>
      %219 = vector.broadcast %218 : vector<1x32xf32> to vector<8x32xf32>
      %220 = arith.addf %217, %219 : vector<8x32xf32>
      %c0_97 = arith.constant 0 : index
      %c0_98 = arith.constant 0 : index
      %221 = vector.load %arg10[%c0_97, %c0_98] : memref<32x64xf32, #tpu.memory_space<vmem>>, vector<32x64xf32>
      %cst_99 = arith.constant dense<0.000000e+00> : vector<8x64xf32>
      %222 = tpu.matmul %220, %221, %cst_99 {dimension_numbers = #tpu.dot_dimension_numbers<[1], [0], [0], [1], [0, 0, 1, 1], [], []>} : vector<8x32xf32>, vector<32x64xf32>, vector<8x64xf32> -> vector<8x64xf32>
      %c0_100 = arith.constant 0 : index
      %c0_101 = arith.constant 0 : index
      %223 = vector.load %arg11[%c0_100, %c0_101] : memref<1x64xf32, #tpu.memory_space<vmem>>, vector<1x64xf32>
      %224 = vector.shape_cast %223 : vector<1x64xf32> to vector<64xf32>
      %225 = vector.shape_cast %224 : vector<64xf32> to vector<1x64xf32>
      %226 = vector.broadcast %225 : vector<1x64xf32> to vector<8x64xf32>
      %227 = arith.addf %222, %226 : vector<8x64xf32>
      %228 = vector.extract_strided_slice %227 {offsets = [0, 0], sizes = [8, 8], strides = [1, 1]} : vector<8x64xf32> to vector<8x8xf32>
      %c0_102 = arith.constant 0 : index
      %c0_103 = arith.constant 0 : index
      %c0_104 = arith.constant 0 : index
      %229 = vector.load %arg21[%c0_102, %c0_103, %c0_104] : memref<4x8x8xf32, #tpu.memory_space<vmem>>, vector<1x8x8xf32>
      %230 = vector.shape_cast %229 : vector<1x8x8xf32> to vector<8x8xf32>
      %231 = vector.shape_cast %228 : vector<8x8xf32> to vector<1x8x8xf32>
      tpu.vector_store %arg21[%c0_102, %c0_103, %c0_104], %231 {strides = array<i32>} : memref<4x8x8xf32, #tpu.memory_space<vmem>>, vector<1x8x8xf32>,
      %232 = vector.extract_strided_slice %227 {offsets = [0, 32], sizes = [8, 8], strides = [1, 1]} : vector<8x64xf32> to vector<8x8xf32>
      %c0_105 = arith.constant 0 : index
      %c0_106 = arith.constant 0 : index
      %c0_107 = arith.constant 0 : index
      %233 = vector.load %arg22[%c0_105, %c0_106, %c0_107] : memref<4x8x8xf32, #tpu.memory_space<vmem>>, vector<1x8x8xf32>
      %234 = vector.shape_cast %233 : vector<1x8x8xf32> to vector<8x8xf32>
      %235 = vector.shape_cast %232 : vector<8x8xf32> to vector<1x8x8xf32>
      tpu.vector_store %arg22[%c0_105, %c0_106, %c0_107], %235 {strides = array<i32>} : memref<4x8x8xf32, #tpu.memory_space<vmem>>, vector<1x8x8xf32>,
      %236 = vector.extract_strided_slice %227 {offsets = [0, 8], sizes = [8, 8], strides = [1, 1]} : vector<8x64xf32> to vector<8x8xf32>
      %c1_108 = arith.constant 1 : index
      %c0_109 = arith.constant 0 : index
      %c0_110 = arith.constant 0 : index
      %237 = vector.load %arg21[%c1_108, %c0_109, %c0_110] : memref<4x8x8xf32, #tpu.memory_space<vmem>>, vector<1x8x8xf32>
      %238 = vector.shape_cast %237 : vector<1x8x8xf32> to vector<8x8xf32>
      %239 = vector.shape_cast %236 : vector<8x8xf32> to vector<1x8x8xf32>
      tpu.vector_store %arg21[%c1_108, %c0_109, %c0_110], %239 {strides = array<i32>} : memref<4x8x8xf32, #tpu.memory_space<vmem>>, vector<1x8x8xf32>,
      %240 = vector.extract_strided_slice %227 {offsets = [0, 40], sizes = [8, 8], strides = [1, 1]} : vector<8x64xf32> to vector<8x8xf32>
      %c1_111 = arith.constant 1 : index
      %c0_112 = arith.constant 0 : index
      %c0_113 = arith.constant 0 : index
      %241 = vector.load %arg22[%c1_111, %c0_112, %c0_113] : memref<4x8x8xf32, #tpu.memory_space<vmem>>, vector<1x8x8xf32>
      %242 = vector.shape_cast %241 : vector<1x8x8xf32> to vector<8x8xf32>
      %243 = vector.shape_cast %240 : vector<8x8xf32> to vector<1x8x8xf32>
      tpu.vector_store %arg22[%c1_111, %c0_112, %c0_113], %243 {strides = array<i32>} : memref<4x8x8xf32, #tpu.memory_space<vmem>>, vector<1x8x8xf32>,
      %244 = vector.extract_strided_slice %227 {offsets = [0, 16], sizes = [8, 8], strides = [1, 1]} : vector<8x64xf32> to vector<8x8xf32>
      %c2_114 = arith.constant 2 : index
      %c0_115 = arith.constant 0 : index
      %c0_116 = arith.constant 0 : index
      %245 = vector.load %arg21[%c2_114, %c0_115, %c0_116] : memref<4x8x8xf32, #tpu.memory_space<vmem>>, vector<1x8x8xf32>
      %246 = vector.shape_cast %245 : vector<1x8x8xf32> to vector<8x8xf32>
      %247 = vector.shape_cast %244 : vector<8x8xf32> to vector<1x8x8xf32>
      tpu.vector_store %arg21[%c2_114, %c0_115, %c0_116], %247 {strides = array<i32>} : memref<4x8x8xf32, #tpu.memory_space<vmem>>, vector<1x8x8xf32>,
      %248 = vector.extract_strided_slice %227 {offsets = [0, 48], sizes = [8, 8], strides = [1, 1]} : vector<8x64xf32> to vector<8x8xf32>
      %c2_117 = arith.constant 2 : index
      %c0_118 = arith.constant 0 : index
      %c0_119 = arith.constant 0 : index
      %249 = vector.load %arg22[%c2_117, %c0_118, %c0_119] : memref<4x8x8xf32, #tpu.memory_space<vmem>>, vector<1x8x8xf32>
      %250 = vector.shape_cast %249 : vector<1x8x8xf32> to vector<8x8xf32>
      %251 = vector.shape_cast %248 : vector<8x8xf32> to vector<1x8x8xf32>
      tpu.vector_store %arg22[%c2_117, %c0_118, %c0_119], %251 {strides = array<i32>} : memref<4x8x8xf32, #tpu.memory_space<vmem>>, vector<1x8x8xf32>,
      %252 = vector.extract_strided_slice %227 {offsets = [0, 24], sizes = [8, 8], strides = [1, 1]} : vector<8x64xf32> to vector<8x8xf32>
      %c3_120 = arith.constant 3 : index
      %c0_121 = arith.constant 0 : index
      %c0_122 = arith.constant 0 : index
      %253 = vector.load %arg21[%c3_120, %c0_121, %c0_122] : memref<4x8x8xf32, #tpu.memory_space<vmem>>, vector<1x8x8xf32>
      %254 = vector.shape_cast %253 : vector<1x8x8xf32> to vector<8x8xf32>
      %255 = vector.shape_cast %252 : vector<8x8xf32> to vector<1x8x8xf32>
      tpu.vector_store %arg21[%c3_120, %c0_121, %c0_122], %255 {strides = array<i32>} : memref<4x8x8xf32, #tpu.memory_space<vmem>>, vector<1x8x8xf32>,
      %256 = vector.extract_strided_slice %227 {offsets = [0, 56], sizes = [8, 8], strides = [1, 1]} : vector<8x64xf32> to vector<8x8xf32>
      %c3_123 = arith.constant 3 : index
      %c0_124 = arith.constant 0 : index
      %c0_125 = arith.constant 0 : index
      %257 = vector.load %arg22[%c3_123, %c0_124, %c0_125] : memref<4x8x8xf32, #tpu.memory_space<vmem>>, vector<1x8x8xf32>
      %258 = vector.shape_cast %257 : vector<1x8x8xf32> to vector<8x8xf32>
      %259 = vector.shape_cast %256 : vector<8x8xf32> to vector<1x8x8xf32>
      tpu.vector_store %arg22[%c3_123, %c0_124, %c0_125], %259 {strides = array<i32>} : memref<4x8x8xf32, #tpu.memory_space<vmem>>, vector<1x8x8xf32>,
    } else {
    }
    %c0_8 = arith.constant 0 : index
    %c0_9 = arith.constant 0 : index
    %c0_10 = arith.constant 0 : index
    %11 = vector.load %arg2[%c0_8, %c0_9, %c0_10] : memref<1x8x32xf32, #tpu.memory_space<vmem>>, vector<1x8x32xf32>
    %12 = vector.shape_cast %11 : vector<1x8x32xf32> to vector<8x32xf32>
    %cst = arith.constant dense<0.000000e+00> : vector<8xf32>
    %13 = vector.multi_reduction <add>, %12, %cst [1] : vector<8x32xf32> to vector<8xf32>
    %14 = vector.shape_cast %13 : vector<8xf32> to vector<8x1xf32>
    %cst_11 = arith.constant 3.200000e+01 : f32
    %15 = vector.broadcast %cst_11 : f32 to vector<8x1xf32>
    %16 = arith.divf %14, %15 : vector<8x1xf32>
    %17 = vector.broadcast %16 : vector<8x1xf32> to vector<8x32xf32>
    %18 = arith.subf %12, %17 : vector<8x32xf32>
    %19 = arith.mulf %18, %18 : vector<8x32xf32>
    %cst_12 = arith.constant dense<0.000000e+00> : vector<8xf32>
    %20 = vector.multi_reduction <add>, %19, %cst_12 [1] : vector<8x32xf32> to vector<8xf32>
    %21 = vector.shape_cast %20 : vector<8xf32> to vector<8x1xf32>
    %cst_13 = arith.constant 3.200000e+01 : f32
    %22 = vector.broadcast %cst_13 : f32 to vector<8x1xf32>
    %23 = arith.divf %21, %22 : vector<8x1xf32>
    %24 = vector.broadcast %16 : vector<8x1xf32> to vector<8x32xf32>
    %25 = arith.subf %12, %24 : vector<8x32xf32>
    %cst_14 = arith.constant 9.99999974E-6 : f32
    %26 = vector.broadcast %cst_14 : f32 to vector<8x1xf32>
    %27 = arith.addf %23, %26 : vector<8x1xf32>
    %28 = math.rsqrt %27 : vector<8x1xf32>
    %29 = vector.broadcast %28 : vector<8x1xf32> to vector<8x32xf32>
    %30 = arith.mulf %25, %29 : vector<8x32xf32>
    %31 = vector.shape_cast %1 : vector<32xf32> to vector<1x32xf32>
    %32 = vector.broadcast %31 : vector<1x32xf32> to vector<8x32xf32>
    %33 = arith.mulf %30, %32 : vector<8x32xf32>
    %34 = vector.shape_cast %3 : vector<32xf32> to vector<1x32xf32>
    %35 = vector.broadcast %34 : vector<1x32xf32> to vector<8x32xf32>
    %36 = arith.addf %33, %35 : vector<8x32xf32>
    %cst_15 = arith.constant dense<0.000000e+00> : vector<8xf32>
    %37 = vector.multi_reduction <add>, %36, %cst_15 [1] : vector<8x32xf32> to vector<8xf32>
    %38 = vector.shape_cast %37 : vector<8xf32> to vector<8x1xf32>
    %cst_16 = arith.constant 3.200000e+01 : f32
    %39 = vector.broadcast %cst_16 : f32 to vector<8x1xf32>
    %40 = arith.divf %38, %39 : vector<8x1xf32>
    %41 = vector.broadcast %40 : vector<8x1xf32> to vector<8x32xf32>
    %42 = arith.subf %36, %41 : vector<8x32xf32>
    %43 = arith.mulf %42, %42 : vector<8x32xf32>
    %cst_17 = arith.constant dense<0.000000e+00> : vector<8xf32>
    %44 = vector.multi_reduction <add>, %43, %cst_17 [1] : vector<8x32xf32> to vector<8xf32>
    %45 = vector.shape_cast %44 : vector<8xf32> to vector<8x1xf32>
    %cst_18 = arith.constant 3.200000e+01 : f32
    %46 = vector.broadcast %cst_18 : f32 to vector<8x1xf32>
    %47 = arith.divf %45, %46 : vector<8x1xf32>
    %48 = vector.broadcast %40 : vector<8x1xf32> to vector<8x32xf32>
    %49 = arith.subf %36, %48 : vector<8x32xf32>
    %cst_19 = arith.constant 9.99999974E-6 : f32
    %50 = vector.broadcast %cst_19 : f32 to vector<8x1xf32>
    %51 = arith.addf %47, %50 : vector<8x1xf32>
    %52 = math.rsqrt %51 : vector<8x1xf32>
    %53 = vector.broadcast %52 : vector<8x1xf32> to vector<8x32xf32>
    %54 = arith.mulf %49, %53 : vector<8x32xf32>
    %55 = vector.shape_cast %5 : vector<32xf32> to vector<1x32xf32>
    %56 = vector.broadcast %55 : vector<1x32xf32> to vector<8x32xf32>
    %57 = arith.mulf %54, %56 : vector<8x32xf32>
    %58 = vector.shape_cast %7 : vector<32xf32> to vector<1x32xf32>
    %59 = vector.broadcast %58 : vector<1x32xf32> to vector<8x32xf32>
    %60 = arith.addf %57, %59 : vector<8x32xf32>
    %c0_20 = arith.constant 0 : index
    %c0_21 = arith.constant 0 : index
    %61 = vector.load %arg8[%c0_20, %c0_21] : memref<32x32xf32, #tpu.memory_space<vmem>>, vector<32x32xf32>
    %cst_22 = arith.constant dense<0.000000e+00> : vector<8x32xf32>
    %62 = tpu.matmul %60, %61, %cst_22 {dimension_numbers = #tpu.dot_dimension_numbers<[1], [0], [0], [1], [0, 0, 1, 1], [], []>} : vector<8x32xf32>, vector<32x32xf32>, vector<8x32xf32> -> vector<8x32xf32>
    %c0_23 = arith.constant 0 : index
    %c0_24 = arith.constant 0 : index
    %63 = vector.load %arg9[%c0_23, %c0_24] : memref<1x32xf32, #tpu.memory_space<vmem>>, vector<1x32xf32>
    %64 = vector.shape_cast %63 : vector<1x32xf32> to vector<32xf32>
    %65 = vector.shape_cast %64 : vector<32xf32> to vector<1x32xf32>
    %66 = vector.broadcast %65 : vector<1x32xf32> to vector<8x32xf32>
    %67 = arith.addf %62, %66 : vector<8x32xf32>
    %cst_25 = arith.constant 0.353553385 : f32
    %68 = vector.broadcast %cst_25 : f32 to vector<8x32xf32>
    %69 = arith.mulf %67, %68 : vector<8x32xf32>
    %70 = vector.extract_strided_slice %69 {offsets = [0, 0], sizes = [8, 8], strides = [1, 1]} : vector<8x32xf32> to vector<8x8xf32>
    %c0_26 = arith.constant 0 : index
    %c0_27 = arith.constant 0 : index
    %c0_28 = arith.constant 0 : index
    %71 = vector.load %arg23[%c0_26, %c0_27, %c0_28] : memref<4x8x8xf32, #tpu.memory_space<vmem>>, vector<1x8x8xf32>
    %72 = vector.shape_cast %71 : vector<1x8x8xf32> to vector<8x8xf32>
    %73 = vector.shape_cast %70 : vector<8x8xf32> to vector<1x8x8xf32>
    tpu.vector_store %arg23[%c0_26, %c0_27, %c0_28], %73 {strides = array<i32>} : memref<4x8x8xf32, #tpu.memory_space<vmem>>, vector<1x8x8xf32>,
    %74 = vector.extract_strided_slice %69 {offsets = [0, 8], sizes = [8, 8], strides = [1, 1]} : vector<8x32xf32> to vector<8x8xf32>
    %c1 = arith.constant 1 : index
    %c0_29 = arith.constant 0 : index
    %c0_30 = arith.constant 0 : index
    %75 = vector.load %arg23[%c1, %c0_29, %c0_30] : memref<4x8x8xf32, #tpu.memory_space<vmem>>, vector<1x8x8xf32>
    %76 = vector.shape_cast %75 : vector<1x8x8xf32> to vector<8x8xf32>
    %77 = vector.shape_cast %74 : vector<8x8xf32> to vector<1x8x8xf32>
    tpu.vector_store %arg23[%c1, %c0_29, %c0_30], %77 {strides = array<i32>} : memref<4x8x8xf32, #tpu.memory_space<vmem>>, vector<1x8x8xf32>,
    %78 = vector.extract_strided_slice %69 {offsets = [0, 16], sizes = [8, 8], strides = [1, 1]} : vector<8x32xf32> to vector<8x8xf32>
    %c2 = arith.constant 2 : index
    %c0_31 = arith.constant 0 : index
    %c0_32 = arith.constant 0 : index
    %79 = vector.load %arg23[%c2, %c0_31, %c0_32] : memref<4x8x8xf32, #tpu.memory_space<vmem>>, vector<1x8x8xf32>
    %80 = vector.shape_cast %79 : vector<1x8x8xf32> to vector<8x8xf32>
    %81 = vector.shape_cast %78 : vector<8x8xf32> to vector<1x8x8xf32>
    tpu.vector_store %arg23[%c2, %c0_31, %c0_32], %81 {strides = array<i32>} : memref<4x8x8xf32, #tpu.memory_space<vmem>>, vector<1x8x8xf32>,
    %82 = vector.extract_strided_slice %69 {offsets = [0, 24], sizes = [8, 8], strides = [1, 1]} : vector<8x32xf32> to vector<8x8xf32>
    %c3 = arith.constant 3 : index
    %c0_33 = arith.constant 0 : index
    %c0_34 = arith.constant 0 : index
    %83 = vector.load %arg23[%c3, %c0_33, %c0_34] : memref<4x8x8xf32, #tpu.memory_space<vmem>>, vector<1x8x8xf32>
    %84 = vector.shape_cast %83 : vector<1x8x8xf32> to vector<8x8xf32>
    %85 = vector.shape_cast %82 : vector<8x8xf32> to vector<1x8x8xf32>
    tpu.vector_store %arg23[%c3, %c0_33, %c0_34], %85 {strides = array<i32>} : memref<4x8x8xf32, #tpu.memory_space<vmem>>, vector<1x8x8xf32>,
    %c0_35 = arith.constant 0 : index
    %c0_36 = arith.constant 0 : index
    %c0_37 = arith.constant 0 : index
    %86 = vector.load %arg23[%c0_35, %c0_36, %c0_37] : memref<4x8x8xf32, #tpu.memory_space<vmem>>, vector<4x8x8xf32>
    %c0_38 = arith.constant 0 : index
    %c0_39 = arith.constant 0 : index
    %c0_40 = arith.constant 0 : index
    %87 = vector.load %arg21[%c0_38, %c0_39, %c0_40] : memref<4x8x8xf32, #tpu.memory_space<vmem>>, vector<4x8x8xf32>
    "tpu.trace_start"() <{level = 10 : i32, message = "hqd,hkd->hqk"}> : () -> ()
    %cst_41 = arith.constant dense<0.000000e+00> : vector<4x8x8xf32>
    %88 = tpu.matmul %86, %87, %cst_41 {dimension_numbers = #tpu.dot_dimension_numbers<[2], [2], [1], [1], [0, 0, 0, 1, 1, 1], [0], [0]>} : vector<4x8x8xf32>, vector<4x8x8xf32>, vector<4x8x8xf32> -> vector<4x8x8xf32>
    "tpu.trace_stop"() : () -> ()
    %cst_42 = arith.constant dense<0xFF800000> : vector<4x8xf32>
    %89 = vector.multi_reduction <maximumf>, %88, %cst_42 [2] : vector<4x8x8xf32> to vector<4x8xf32>
    %90 = vector.shape_cast %89 : vector<4x8xf32> to vector<4x8x1xf32>
    %91 = vector.broadcast %90 : vector<4x8x1xf32> to vector<4x8x8xf32>
    %92 = arith.subf %88, %91 : vector<4x8x8xf32>
    %93 = math.exp %92 : vector<4x8x8xf32>
    %cst_43 = arith.constant dense<0.000000e+00> : vector<4x8xf32>
    %94 = vector.multi_reduction <add>, %93, %cst_43 [2] : vector<4x8x8xf32> to vector<4x8xf32>
    %95 = vector.shape_cast %94 : vector<4x8xf32> to vector<4x8x1xf32>
    %cst_44 = arith.constant 1.000000e+00 : f32
    %96 = vector.broadcast %cst_44 : f32 to vector<4x8x1xf32>
    %97 = arith.divf %96, %95 : vector<4x8x1xf32>
    %98 = vector.broadcast %97 : vector<4x8x1xf32> to vector<4x8x8xf32>
    %99 = arith.mulf %93, %98 : vector<4x8x8xf32>
    %c0_45 = arith.constant 0 : index
    %c0_46 = arith.constant 0 : index
    %c0_47 = arith.constant 0 : index
    %100 = vector.load %arg22[%c0_45, %c0_46, %c0_47] : memref<4x8x8xf32, #tpu.memory_space<vmem>>, vector<4x8x8xf32>
    "tpu.trace_start"() <{level = 10 : i32, message = "hqk,hkd->hqd"}> : () -> ()
    %cst_48 = arith.constant dense<0.000000e+00> : vector<4x8x8xf32>
    %101 = tpu.matmul %99, %100, %cst_48 {dimension_numbers = #tpu.dot_dimension_numbers<[2], [1], [1], [2], [0, 0, 0, 1, 1, 2], [0], [0]>} : vector<4x8x8xf32>, vector<4x8x8xf32>, vector<4x8x8xf32> -> vector<4x8x8xf32>
    "tpu.trace_stop"() : () -> ()
    %102 = vector.extract_strided_slice %101 {offsets = [0, 0, 0], sizes = [1, 8, 8], strides = [1, 1, 1]} : vector<4x8x8xf32> to vector<1x8x8xf32>
    %103 = vector.shape_cast %102 : vector<1x8x8xf32> to vector<8x8xf32>
    %c0_49 = arith.constant 0 : index
    %c0_50 = arith.constant 0 : index
    %104 = vector.load %arg24[%c0_49, %c0_50] : memref<8x32xf32, #tpu.memory_space<vmem>>, vector<8x8xf32>
    tpu.vector_store %arg24[%c0_49, %c0_50], %103 {strides = array<i32>} : memref<8x32xf32, #tpu.memory_space<vmem>>, vector<8x8xf32>,
    %105 = vector.extract_strided_slice %101 {offsets = [1, 0, 0], sizes = [1, 8, 8], strides = [1, 1, 1]} : vector<4x8x8xf32> to vector<1x8x8xf32>
    %106 = vector.shape_cast %105 : vector<1x8x8xf32> to vector<8x8xf32>
    %c0_51 = arith.constant 0 : index
    %c8 = arith.constant 8 : index
    %107 = vector.load %arg24[%c0_51, %c8] : memref<8x32xf32, #tpu.memory_space<vmem>>, vector<8x8xf32>
    tpu.vector_store %arg24[%c0_51, %c8], %106 {strides = array<i32>} : memref<8x32xf32, #tpu.memory_space<vmem>>, vector<8x8xf32>,
    %108 = vector.extract_strided_slice %101 {offsets = [2, 0, 0], sizes = [1, 8, 8], strides = [1, 1, 1]} : vector<4x8x8xf32> to vector<1x8x8xf32>
    %109 = vector.shape_cast %108 : vector<1x8x8xf32> to vector<8x8xf32>
    %c0_52 = arith.constant 0 : index
    %c16 = arith.constant 16 : index
    %110 = vector.load %arg24[%c0_52, %c16] : memref<8x32xf32, #tpu.memory_space<vmem>>, vector<8x8xf32>
    tpu.vector_store %arg24[%c0_52, %c16], %109 {strides = array<i32>} : memref<8x32xf32, #tpu.memory_space<vmem>>, vector<8x8xf32>,
    %111 = vector.extract_strided_slice %101 {offsets = [3, 0, 0], sizes = [1, 8, 8], strides = [1, 1, 1]} : vector<4x8x8xf32> to vector<1x8x8xf32>
    %112 = vector.shape_cast %111 : vector<1x8x8xf32> to vector<8x8xf32>
    %c0_53 = arith.constant 0 : index
    %c24 = arith.constant 24 : index
    %113 = vector.load %arg24[%c0_53, %c24] : memref<8x32xf32, #tpu.memory_space<vmem>>, vector<8x8xf32>
    tpu.vector_store %arg24[%c0_53, %c24], %112 {strides = array<i32>} : memref<8x32xf32, #tpu.memory_space<vmem>>, vector<8x8xf32>,
    %c0_54 = arith.constant 0 : index
    %c0_55 = arith.constant 0 : index
    %114 = vector.load %arg24[%c0_54, %c0_55] : memref<8x32xf32, #tpu.memory_space<vmem>>, vector<8x32xf32>
    %c0_56 = arith.constant 0 : index
    %c0_57 = arith.constant 0 : index
    %115 = vector.load %arg12[%c0_56, %c0_57] : memref<32x32xf32, #tpu.memory_space<vmem>>, vector<32x32xf32>
    %cst_58 = arith.constant dense<0.000000e+00> : vector<8x32xf32>
    %116 = tpu.matmul %114, %115, %cst_58 {dimension_numbers = #tpu.dot_dimension_numbers<[1], [0], [0], [1], [0, 0, 1, 1], [], []>} : vector<8x32xf32>, vector<32x32xf32>, vector<8x32xf32> -> vector<8x32xf32>
    %c0_59 = arith.constant 0 : index
    %c0_60 = arith.constant 0 : index
    %117 = vector.load %arg13[%c0_59, %c0_60] : memref<1x32xf32, #tpu.memory_space<vmem>>, vector<1x32xf32>
    %118 = vector.shape_cast %117 : vector<1x32xf32> to vector<32xf32>
    %119 = vector.shape_cast %118 : vector<32xf32> to vector<1x32xf32>
    %120 = vector.broadcast %119 : vector<1x32xf32> to vector<8x32xf32>
    %121 = arith.addf %116, %120 : vector<8x32xf32>
    %122 = arith.addf %12, %121 : vector<8x32xf32>
    %c0_61 = arith.constant 0 : index
    %c0_62 = arith.constant 0 : index
    %123 = vector.load %arg14[%c0_61, %c0_62] : memref<1x32xf32, #tpu.memory_space<vmem>>, vector<1x32xf32>
    %124 = vector.shape_cast %123 : vector<1x32xf32> to vector<32xf32>
    %c0_63 = arith.constant 0 : index
    %c0_64 = arith.constant 0 : index
    %125 = vector.load %arg15[%c0_63, %c0_64] : memref<1x32xf32, #tpu.memory_space<vmem>>, vector<1x32xf32>
    %126 = vector.shape_cast %125 : vector<1x32xf32> to vector<32xf32>
    %cst_65 = arith.constant dense<0.000000e+00> : vector<8xf32>
    %127 = vector.multi_reduction <add>, %122, %cst_65 [1] : vector<8x32xf32> to vector<8xf32>
    %128 = vector.shape_cast %127 : vector<8xf32> to vector<8x1xf32>
    %cst_66 = arith.constant 3.200000e+01 : f32
    %129 = vector.broadcast %cst_66 : f32 to vector<8x1xf32>
    %130 = arith.divf %128, %129 : vector<8x1xf32>
    %131 = vector.broadcast %130 : vector<8x1xf32> to vector<8x32xf32>
    %132 = arith.subf %122, %131 : vector<8x32xf32>
    %133 = arith.mulf %132, %132 : vector<8x32xf32>
    %cst_67 = arith.constant dense<0.000000e+00> : vector<8xf32>
    %134 = vector.multi_reduction <add>, %133, %cst_67 [1] : vector<8x32xf32> to vector<8xf32>
    %135 = vector.shape_cast %134 : vector<8xf32> to vector<8x1xf32>
    %cst_68 = arith.constant 3.200000e+01 : f32
    %136 = vector.broadcast %cst_68 : f32 to vector<8x1xf32>
    %137 = arith.divf %135, %136 : vector<8x1xf32>
    %138 = vector.broadcast %130 : vector<8x1xf32> to vector<8x32xf32>
    %139 = arith.subf %122, %138 : vector<8x32xf32>
    %cst_69 = arith.constant 9.99999974E-6 : f32
    %140 = vector.broadcast %cst_69 : f32 to vector<8x1xf32>
    %141 = arith.addf %137, %140 : vector<8x1xf32>
    %142 = math.rsqrt %141 : vector<8x1xf32>
    %143 = vector.broadcast %142 : vector<8x1xf32> to vector<8x32xf32>
    %144 = arith.mulf %139, %143 : vector<8x32xf32>
    %145 = vector.shape_cast %124 : vector<32xf32> to vector<1x32xf32>
    %146 = vector.broadcast %145 : vector<1x32xf32> to vector<8x32xf32>
    %147 = arith.mulf %144, %146 : vector<8x32xf32>
    %148 = vector.shape_cast %126 : vector<32xf32> to vector<1x32xf32>
    %149 = vector.broadcast %148 : vector<1x32xf32> to vector<8x32xf32>
    %150 = arith.addf %147, %149 : vector<8x32xf32>
    %c0_70 = arith.constant 0 : index
    %c0_71 = arith.constant 0 : index
    %151 = vector.load %arg16[%c0_70, %c0_71] : memref<32x128xf32, #tpu.memory_space<vmem>>, vector<32x128xf32>
    %cst_72 = arith.constant dense<0.000000e+00> : vector<8x128xf32>
    %152 = tpu.matmul %150, %151, %cst_72 {dimension_numbers = #tpu.dot_dimension_numbers<[1], [0], [0], [1], [0, 0, 1, 1], [], []>} : vector<8x32xf32>, vector<32x128xf32>, vector<8x128xf32> -> vector<8x128xf32>
    %c0_73 = arith.constant 0 : index
    %c0_74 = arith.constant 0 : index
    %153 = vector.load %arg17[%c0_73, %c0_74] : memref<1x128xf32, #tpu.memory_space<vmem>>, vector<1x128xf32>
    %154 = vector.shape_cast %153 : vector<1x128xf32> to vector<128xf32>
    %155 = vector.shape_cast %154 : vector<128xf32> to vector<1x128xf32>
    %156 = vector.broadcast %155 : vector<1x128xf32> to vector<8x128xf32>
    %157 = arith.addf %152, %156 : vector<8x128xf32>
    %cst_75 = arith.constant 0.000000e+00 : f32
    %158 = vector.broadcast %cst_75 : f32 to vector<8x128xf32>
    %159 = arith.maximumf %157, %158 : vector<8x128xf32>
    %c0_76 = arith.constant 0 : index
    %c0_77 = arith.constant 0 : index
    %160 = vector.load %arg18[%c0_76, %c0_77] : memref<128x32xf32, #tpu.memory_space<vmem>>, vector<128x32xf32>
    %cst_78 = arith.constant dense<0.000000e+00> : vector<8x32xf32>
    %161 = tpu.matmul %159, %160, %cst_78 {dimension_numbers = #tpu.dot_dimension_numbers<[1], [0], [0], [1], [0, 0, 1, 1], [], []>} : vector<8x128xf32>, vector<128x32xf32>, vector<8x32xf32> -> vector<8x32xf32>
    %c0_79 = arith.constant 0 : index
    %c0_80 = arith.constant 0 : index
    %162 = vector.load %arg19[%c0_79, %c0_80] : memref<1x32xf32, #tpu.memory_space<vmem>>, vector<1x32xf32>
    %163 = vector.shape_cast %162 : vector<1x32xf32> to vector<32xf32>
    %164 = vector.shape_cast %163 : vector<32xf32> to vector<1x32xf32>
    %165 = vector.broadcast %164 : vector<1x32xf32> to vector<8x32xf32>
    %166 = arith.addf %161, %165 : vector<8x32xf32>
    %167 = arith.addf %122, %166 : vector<8x32xf32>
    %c0_81 = arith.constant 0 : index
    %c0_82 = arith.constant 0 : index
    %c0_83 = arith.constant 0 : index
    %168 = vector.load %arg20[%c0_81, %c0_82, %c0_83] : memref<1x8x32xf32, #tpu.memory_space<vmem>>, vector<1x8x32xf32>
    %169 = vector.shape_cast %168 : vector<1x8x32xf32> to vector<8x32xf32>
    %170 = vector.shape_cast %167 : vector<8x32xf32> to vector<1x8x32xf32>
    tpu.vector_store %arg20[%c0_81, %c0_82, %c0_83], %170 {strides = array<i32>} : memref<1x8x32xf32, #tpu.memory_space<vmem>>, vector<1x8x32xf32>,
    return
  }
  func.func @transform_0(%arg0: i32, %arg1: i32) -> (i32, i32, i32) {
    %c0_i32 = arith.constant 0 : i32
    %c0_i32_0 = arith.constant 0 : i32
    return %arg0, %arg1, %c0_i32 : i32, i32, i32
  }
  func.func @transform_1(%arg0: i32, %arg1: i32) -> (i32, i32, i32) {
    %c0_i32 = arith.constant 0 : i32
    %c0_i32_0 = arith.constant 0 : i32
    %c0_i32_1 = arith.constant 0 : i32
    return %arg0, %c0_i32, %c0_i32_0 : i32, i32, i32
  }
  func.func @transform_2(%arg0: i32, %arg1: i32) -> (i32, i32) {
    %c0_i32 = arith.constant 0 : i32
    %c0_i32_0 = arith.constant 0 : i32
    %c0_i32_1 = arith.constant 0 : i32
    return %c0_i32, %c0_i32_0 : i32, i32
  }
  func.func @transform_3(%arg0: i32, %arg1: i32) -> (i32, i32) {
    %c0_i32 = arith.constant 0 : i32
    %c0_i32_0 = arith.constant 0 : i32
    %c0_i32_1 = arith.constant 0 : i32
    return %c0_i32, %c0_i32_0 : i32, i32
  }
  func.func @transform_4(%arg0: i32, %arg1: i32) -> (i32, i32) {
    %c0_i32 = arith.constant 0 : i32
    %c0_i32_0 = arith.constant 0 : i32
    %c0_i32_1 = arith.constant 0 : i32
    return %c0_i32, %c0_i32_0 : i32, i32
  }
  func.func @transform_5(%arg0: i32, %arg1: i32) -> (i32, i32) {
    %c0_i32 = arith.constant 0 : i32
    %c0_i32_0 = arith.constant 0 : i32
    %c0_i32_1 = arith.constant 0 : i32
    return %c0_i32, %c0_i32_0 : i32, i32
  }
  func.func @transform_6(%arg0: i32, %arg1: i32) -> (i32, i32) {
    %c0_i32 = arith.constant 0 : i32
    %c0_i32_0 = arith.constant 0 : i32
    %c0_i32_1 = arith.constant 0 : i32
    return %c0_i32, %c0_i32_0 : i32, i32
  }
  func.func @transform_7(%arg0: i32, %arg1: i32) -> (i32, i32) {
    %c0_i32 = arith.constant 0 : i32
    %c0_i32_0 = arith.constant 0 : i32
    %c0_i32_1 = arith.constant 0 : i32
    return %c0_i32, %c0_i32_0 : i32, i32
  }
  func.func @transform_8(%arg0: i32, %arg1: i32) -> (i32, i32) {
    %c0_i32 = arith.constant 0 : i32
    %c0_i32_0 = arith.constant 0 : i32
    %c0_i32_1 = arith.constant 0 : i32
    return %c0_i32, %c0_i32_0 : i32, i32
  }
  func.func @transform_9(%arg0: i32, %arg1: i32) -> (i32, i32) {
    %c0_i32 = arith.constant 0 : i32
    %c0_i32_0 = arith.constant 0 : i32
    %c0_i32_1 = arith.constant 0 : i32
    return %c0_i32, %c0_i32_0 : i32, i32
  }
  func.func @transform_10(%arg0: i32, %arg1: i32) -> (i32, i32) {
    %c0_i32 = arith.constant 0 : i32
    %c0_i32_0 = arith.constant 0 : i32
    %c0_i32_1 = arith.constant 0 : i32
    return %c0_i32, %c0_i32_0 : i32, i32
  }
  func.func @transform_11(%arg0: i32, %arg1: i32) -> (i32, i32) {
    %c0_i32 = arith.constant 0 : i32
    %c0_i32_0 = arith.constant 0 : i32
    %c0_i32_1 = arith.constant 0 : i32
    return %c0_i32, %c0_i32_0 : i32, i32
  }
  func.func @transform_12(%arg0: i32, %arg1: i32) -> (i32, i32) {
    %c0_i32 = arith.constant 0 : i32
    %c0_i32_0 = arith.constant 0 : i32
    %c0_i32_1 = arith.constant 0 : i32
    return %c0_i32, %c0_i32_0 : i32, i32
  }
  func.func @transform_13(%arg0: i32, %arg1: i32) -> (i32, i32) {
    %c0_i32 = arith.constant 0 : i32
    %c0_i32_0 = arith.constant 0 : i32
    %c0_i32_1 = arith.constant 0 : i32
    return %c0_i32, %c0_i32_0 : i32, i32
  }
  func.func @transform_14(%arg0: i32, %arg1: i32) -> (i32, i32) {
    %c0_i32 = arith.constant 0 : i32
    %c0_i32_0 = arith.constant 0 : i32
    %c0_i32_1 = arith.constant 0 : i32
    return %c0_i32, %c0_i32_0 : i32, i32
  }
  func.func @transform_15(%arg0: i32, %arg1: i32) -> (i32, i32) {
    %c0_i32 = arith.constant 0 : i32
    %c0_i32_0 = arith.constant 0 : i32
    %c0_i32_1 = arith.constant 0 : i32
    return %c0_i32, %c0_i32_0 : i32, i32
  }
  func.func @transform_16(%arg0: i32, %arg1: i32) -> (i32, i32) {
    %c0_i32 = arith.constant 0 : i32
    %c0_i32_0 = arith.constant 0 : i32
    %c0_i32_1 = arith.constant 0 : i32
    return %c0_i32, %c0_i32_0 : i32, i32
  }
  func.func @transform_17(%arg0: i32, %arg1: i32) -> (i32, i32) {
    %c0_i32 = arith.constant 0 : i32
    %c0_i32_0 = arith.constant 0 : i32
    %c0_i32_1 = arith.constant 0 : i32
    return %c0_i32, %c0_i32_0 : i32, i32
  }
  func.func @transform_18(%arg0: i32, %arg1: i32) -> (i32, i32, i32) {
    %c0_i32 = arith.constant 0 : i32
    %c0_i32_0 = arith.constant 0 : i32
    return %arg0, %arg1, %c0_i32 : i32, i32, i32
  }
}

module attributes {stable_mosaic.version = 11 : i64} {
  func.func @transformer_block_kernel(%arg0: i32, %arg1: i32, %arg2: memref<1x8x32xf32, #tpu.memory_space<vmem>>, %arg3: memref<1x8x32xf32, #tpu.memory_space<vmem>>, %arg4: memref<1x32xf32, #tpu.memory_space<vmem>>, %arg5: memref<1x32xf32, #tpu.memory_space<vmem>>, %arg6: memref<1x32xf32, #tpu.memory_space<vmem>>, %arg7: memref<1x32xf32, #tpu.memory_space<vmem>>, %arg8: memref<32x32xf32, #tpu.memory_space<vmem>>, %arg9: memref<1x32xf32, #tpu.memory_space<vmem>>, %arg10: memref<32x64xf32, #tpu.memory_space<vmem>>, %arg11: memref<1x64xf32, #tpu.memory_space<vmem>>, %arg12: memref<32x32xf32, #tpu.memory_space<vmem>>, %arg13: memref<1x32xf32, #tpu.memory_space<vmem>>, %arg14: memref<1x32xf32, #tpu.memory_space<vmem>>, %arg15: memref<1x32xf32, #tpu.memory_space<vmem>>, %arg16: memref<32x128xf32, #tpu.memory_space<vmem>>, %arg17: memref<1x128xf32, #tpu.memory_space<vmem>>, %arg18: memref<128x32xf32, #tpu.memory_space<vmem>>, %arg19: memref<1x32xf32, #tpu.memory_space<vmem>>, %arg20: memref<1x8x32xf32, #tpu.memory_space<vmem>>, %arg21: memref<4x8x8xf32, #tpu.memory_space<vmem>>, %arg22: memref<4x8x8xf32, #tpu.memory_space<vmem>>, %arg23: memref<4x8x8xf32, #tpu.memory_space<vmem>>, %arg24: memref<8x32xf32, #tpu.memory_space<vmem>>) attributes {dimension_semantics = [#tpu.dimension_semantics<parallel>, #tpu.dimension_semantics<arbitrary>], iteration_bounds = array<i64: 2, 1>, scalar_prefetch = 0 : i64, scratch_operands = 4 : i64, tpu.core_type = #tpu.core_type<tc>, window_params = [{transform_indices = @transform_0, window_bounds = array<i64: 1, 8, 32>}, {transform_indices = @transform_1, window_bounds = array<i64: 1, 8, 32>}, {pipeline_mode = #tpu.pipeline_mode<synchronous>, transform_indices = @transform_2, window_bounds = array<i64: 1, 32>}, {pipeline_mode = #tpu.pipeline_mode<synchronous>, transform_indices = @transform_3, window_bounds = array<i64: 1, 32>}, {pipeline_mode = #tpu.pipeline_mode<synchronous>, transform_indices = @transform_4, window_bounds = array<i64: 1, 32>}, {pipeline_mode = #tpu.pipeline_mode<synchronous>, transform_indices = @transform_5, window_bounds = array<i64: 1, 32>}, {pipeline_mode = #tpu.pipeline_mode<synchronous>, transform_indices = @transform_6, window_bounds = array<i64: 32, 32>}, {pipeline_mode = #tpu.pipeline_mode<synchronous>, transform_indices = @transform_7, window_bounds = array<i64: 1, 32>}, {pipeline_mode = #tpu.pipeline_mode<synchronous>, transform_indices = @transform_8, window_bounds = array<i64: 32, 64>}, {pipeline_mode = #tpu.pipeline_mode<synchronous>, transform_indices = @transform_9, window_bounds = array<i64: 1, 64>}, {pipeline_mode = #tpu.pipeline_mode<synchronous>, transform_indices = @transform_10, window_bounds = array<i64: 32, 32>}, {pipeline_mode = #tpu.pipeline_mode<synchronous>, transform_indices = @transform_11, window_bounds = array<i64: 1, 32>}, {pipeline_mode = #tpu.pipeline_mode<synchronous>, transform_indices = @transform_12, window_bounds = array<i64: 1, 32>}, {pipeline_mode = #tpu.pipeline_mode<synchronous>, transform_indices = @transform_13, window_bounds = array<i64: 1, 32>}, {pipeline_mode = #tpu.pipeline_mode<synchronous>, transform_indices = @transform_14, window_bounds = array<i64: 32, 128>}, {pipeline_mode = #tpu.pipeline_mode<synchronous>, transform_indices = @transform_15, window_bounds = array<i64: 1, 128>}, {pipeline_mode = #tpu.pipeline_mode<synchronous>, transform_indices = @transform_16, window_bounds = array<i64: 128, 32>}, {pipeline_mode = #tpu.pipeline_mode<synchronous>, transform_indices = @transform_17, window_bounds = array<i64: 1, 32>}, {transform_indices = @transform_18, window_bounds = array<i64: 1, 8, 32>}]} {
    %c0 = arith.constant 0 : index
    %c0_0 = arith.constant 0 : index
    %0 = vector.load %arg4[%c0, %c0_0] : memref<1x32xf32, #tpu.memory_space<vmem>>, vector<1x32xf32>
    %1 = vector.shape_cast %0 : vector<1x32xf32> to vector<32xf32>
    %c0_1 = arith.constant 0 : index
    %c0_2 = arith.constant 0 : index
    %2 = vector.load %arg5[%c0_1, %c0_2] : memref<1x32xf32, #tpu.memory_space<vmem>>, vector<1x32xf32>
    %3 = vector.shape_cast %2 : vector<1x32xf32> to vector<32xf32>
    %c0_3 = arith.constant 0 : index
    %c0_4 = arith.constant 0 : index
    %4 = vector.load %arg6[%c0_3, %c0_4] : memref<1x32xf32, #tpu.memory_space<vmem>>, vector<1x32xf32>
    %5 = vector.shape_cast %4 : vector<1x32xf32> to vector<32xf32>
    %c0_5 = arith.constant 0 : index
    %c0_6 = arith.constant 0 : index
    %6 = vector.load %arg7[%c0_5, %c0_6] : memref<1x32xf32, #tpu.memory_space<vmem>>, vector<1x32xf32>
    %7 = vector.shape_cast %6 : vector<1x32xf32> to vector<32xf32>
    %c0_i32 = arith.constant 0 : i32
    %8 = arith.cmpi eq, %arg1, %c0_i32 : i32
    %9 = arith.extui %8 : i1 to i32
    %c0_i32_7 = arith.constant 0 : i32
    %10 = arith.cmpi ne, %9, %c0_i32_7 : i32
    scf.if %10 {
      %c0_84 = arith.constant 0 : index
      %c0_85 = arith.constant 0 : index
      %c0_86 = arith.constant 0 : index
      %171 = vector.load %arg3[%c0_84, %c0_85, %c0_86] : memref<1x8x32xf32, #tpu.memory_space<vmem>>, vector<1x8x32xf32>
      %172 = vector.shape_cast %171 : vector<1x8x32xf32> to vector<8x32xf32>
      %cst_87 = arith.constant dense<0.000000e+00> : vector<8xf32>
      %173 = vector.multi_reduction <add>, %172, %cst_87 [1] : vector<8x32xf32> to vector<8xf32>
      %174 = vector.shape_cast %173 : vector<8xf32> to vector<8x1xf32>
      %cst_88 = arith.constant 3.200000e+01 : f32
      %175 = vector.broadcast %cst_88 : f32 to vector<8x1xf32>
      %176 = arith.divf %174, %175 : vector<8x1xf32>
      %177 = vector.broadcast %176 : vector<8x1xf32> to vector<8x32xf32>
      %178 = arith.subf %172, %177 : vector<8x32xf32>
      %179 = arith.mulf %178, %178 : vector<8x32xf32>
      %cst_89 = arith.constant dense<0.000000e+00> : vector<8xf32>
      %180 = vector.multi_reduction <add>, %179, %cst_89 [1] : vector<8x32xf32> to vector<8xf32>
      %181 = vector.shape_cast %180 : vector<8xf32> to vector<8x1xf32>
      %cst_90 = arith.constant 3.200000e+01 : f32
      %182 = vector.broadcast %cst_90 : f32 to vector<8x1xf32>
      %183 = arith.divf %181, %182 : vector<8x1xf32>
      %184 = vector.broadcast %176 : vector<8x1xf32> to vector<8x32xf32>
      %185 = arith.subf %172, %184 : vector<8x32xf32>
      %cst_91 = arith.constant 9.99999974E-6 : f32
      %186 = vector.broadcast %cst_91 : f32 to vector<8x1xf32>
      %187 = arith.addf %183, %186 : vector<8x1xf32>
      %188 = math.rsqrt %187 : vector<8x1xf32>
      %189 = vector.broadcast %188 : vector<8x1xf32> to vector<8x32xf32>
      %190 = arith.mulf %185, %189 : vector<8x32xf32>
      %191 = vector.shape_cast %1 : vector<32xf32> to vector<1x32xf32>
      %192 = vector.broadcast %191 : vector<1x32xf32> to vector<8x32xf32>
      %193 = arith.mulf %190, %192 : vector<8x32xf32>
      %194 = vector.shape_cast %3 : vector<32xf32> to vector<1x32xf32>
      %195 = vector.broadcast %194 : vector<1x32xf32> to vector<8x32xf32>
      %196 = arith.addf %193, %195 : vector<8x32xf32>
      %cst_92 = arith.constant dense<0.000000e+00> : vector<8xf32>
      %197 = vector.multi_reduction <add>, %196, %cst_92 [1] : vector<8x32xf32> to vector<8xf32>
      %198 = vector.shape_cast %197 : vector<8xf32> to vector<8x1xf32>
      %cst_93 = arith.constant 3.200000e+01 : f32
      %199 = vector.broadcast %cst_93 : f32 to vector<8x1xf32>
      %200 = arith.divf %198, %199 : vector<8x1xf32>
      %201 = vector.broadcast %200 : vector<8x1xf32> to vector<8x32xf32>
      %202 = arith.subf %196, %201 : vector<8x32xf32>
      %203 = arith.mulf %202, %202 : vector<8x32xf32>
      %cst_94 = arith.constant dense<0.000000e+00> : vector<8xf32>
      %204 = vector.multi_reduction <add>, %203, %cst_94 [1] : vector<8x32xf32> to vector<8xf32>
      %205 = vector.shape_cast %204 : vector<8xf32> to vector<8x1xf32>
      %cst_95 = arith.constant 3.200000e+01 : f32
      %206 = vector.broadcast %cst_95 : f32 to vector<8x1xf32>
      %207 = arith.divf %205, %206 : vector<8x1xf32>
      %208 = vector.broadcast %200 : vector<8x1xf32> to vector<8x32xf32>
      %209 = arith.subf %196, %208 : vector<8x32xf32>
      %cst_96 = arith.constant 9.99999974E-6 : f32
      %210 = vector.broadcast %cst_96 : f32 to vector<8x1xf32>
      %211 = arith.addf %207, %210 : vector<8x1xf32>
      %212 = math.rsqrt %211 : vector<8x1xf32>
      %213 = vector.broadcast %212 : vector<8x1xf32> to vector<8x32xf32>
      %214 = arith.mulf %209, %213 : vector<8x32xf32>
      %215 = vector.shape_cast %5 : vector<32xf32> to vector<1x32xf32>
      %216 = vector.broadcast %215 : vector<1x32xf32> to vector<8x32xf32>
      %217 = arith.mulf %214, %216 : vector<8x32xf32>
      %218 = vector.shape_cast %7 : vector<32xf32> to vector<1x32xf32>
      %219 = vector.broadcast %218 : vector<1x32xf32> to vector<8x32xf32>
      %220 = arith.addf %217, %219 : vector<8x32xf32>
      %c0_97 = arith.constant 0 : index
      %c0_98 = arith.constant 0 : index
      %221 = vector.load %arg10[%c0_97, %c0_98] : memref<32x64xf32, #tpu.memory_space<vmem>>, vector<32x64xf32>
      %cst_99 = arith.constant dense<0.000000e+00> : vector<8x64xf32>
      %222 = tpu.matmul %220, %221, %cst_99 {dimension_numbers = #tpu.dot_dimension_numbers<[1], [0], [0], [1], [0, 0, 1, 1], [], []>} : vector<8x32xf32>, vector<32x64xf32>, vector<8x64xf32> -> vector<8x64xf32>
      %c0_100 = arith.constant 0 : index
      %c0_101 = arith.constant 0 : index
      %223 = vector.load %arg11[%c0_100, %c0_101] : memref<1x64xf32, #tpu.memory_space<vmem>>, vector<1x64xf32>
      %224 = vector.shape_cast %223 : vector<1x64xf32> to vector<64xf32>
      %225 = vector.shape_cast %224 : vector<64xf32> to vector<1x64xf32>
      %226 = vector.broadcast %225 : vector<1x64xf32> to vector<8x64xf32>
      %227 = arith.addf %222, %226 : vector<8x64xf32>
      %228 = vector.extract_strided_slice %227 {offsets = [0, 0], sizes = [8, 8], strides = [1, 1]} : vector<8x64xf32> to vector<8x8xf32>
      %c0_102 = arith.constant 0 : index
      %c0_103 = arith.constant 0 : index
      %c0_104 = arith.constant 0 : index
      %229 = vector.load %arg21[%c0_102, %c0_103, %c0_104] : memref<4x8x8xf32, #tpu.memory_space<vmem>>, vector<1x8x8xf32>
      %230 = vector.shape_cast %229 : vector<1x8x8xf32> to vector<8x8xf32>
      %231 = vector.shape_cast %228 : vector<8x8xf32> to vector<1x8x8xf32>
      tpu.vector_store %arg21[%c0_102, %c0_103, %c0_104], %231 {strides = array<i32>} : memref<4x8x8xf32, #tpu.memory_space<vmem>>, vector<1x8x8xf32>,
      %232 = vector.extract_strided_slice %227 {offsets = [0, 32], sizes = [8, 8], strides = [1, 1]} : vector<8x64xf32> to vector<8x8xf32>
      %c0_105 = arith.constant 0 : index
      %c0_106 = arith.constant 0 : index
      %c0_107 = arith.constant 0 : index
      %233 = vector.load %arg22[%c0_105, %c0_106, %c0_107] : memref<4x8x8xf32, #tpu.memory_space<vmem>>, vector<1x8x8xf32>
      %234 = vector.shape_cast %233 : vector<1x8x8xf32> to vector<8x8xf32>
      %235 = vector.shape_cast %232 : vector<8x8xf32> to vector<1x8x8xf32>
      tpu.vector_store %arg22[%c0_105, %c0_106, %c0_107], %235 {strides = array<i32>} : memref<4x8x8xf32, #tpu.memory_space<vmem>>, vector<1x8x8xf32>,
      %236 = vector.extract_strided_slice %227 {offsets = [0, 8], sizes = [8, 8], strides = [1, 1]} : vector<8x64xf32> to vector<8x8xf32>
      %c1_108 = arith.constant 1 : index
      %c0_109 = arith.constant 0 : index
      %c0_110 = arith.constant 0 : index
      %237 = vector.load %arg21[%c1_108, %c0_109, %c0_110] : memref<4x8x8xf32, #tpu.memory_space<vmem>>, vector<1x8x8xf32>
      %238 = vector.shape_cast %237 : vector<1x8x8xf32> to vector<8x8xf32>
      %239 = vector.shape_cast %236 : vector<8x8xf32> to vector<1x8x8xf32>
      tpu.vector_store %arg21[%c1_108, %c0_109, %c0_110], %239 {strides = array<i32>} : memref<4x8x8xf32, #tpu.memory_space<vmem>>, vector<1x8x8xf32>,
      %240 = vector.extract_strided_slice %227 {offsets = [0, 40], sizes = [8, 8], strides = [1, 1]} : vector<8x64xf32> to vector<8x8xf32>
      %c1_111 = arith.constant 1 : index
      %c0_112 = arith.constant 0 : index
      %c0_113 = arith.constant 0 : index
      %241 = vector.load %arg22[%c1_111, %c0_112, %c0_113] : memref<4x8x8xf32, #tpu.memory_space<vmem>>, vector<1x8x8xf32>
      %242 = vector.shape_cast %241 : vector<1x8x8xf32> to vector<8x8xf32>
      %243 = vector.shape_cast %240 : vector<8x8xf32> to vector<1x8x8xf32>
      tpu.vector_store %arg22[%c1_111, %c0_112, %c0_113], %243 {strides = array<i32>} : memref<4x8x8xf32, #tpu.memory_space<vmem>>, vector<1x8x8xf32>,
      %244 = vector.extract_strided_slice %227 {offsets = [0, 16], sizes = [8, 8], strides = [1, 1]} : vector<8x64xf32> to vector<8x8xf32>
      %c2_114 = arith.constant 2 : index
      %c0_115 = arith.constant 0 : index
      %c0_116 = arith.constant 0 : index
      %245 = vector.load %arg21[%c2_114, %c0_115, %c0_116] : memref<4x8x8xf32, #tpu.memory_space<vmem>>, vector<1x8x8xf32>
      %246 = vector.shape_cast %245 : vector<1x8x8xf32> to vector<8x8xf32>
      %247 = vector.shape_cast %244 : vector<8x8xf32> to vector<1x8x8xf32>
      tpu.vector_store %arg21[%c2_114, %c0_115, %c0_116], %247 {strides = array<i32>} : memref<4x8x8xf32, #tpu.memory_space<vmem>>, vector<1x8x8xf32>,
      %248 = vector.extract_strided_slice %227 {offsets = [0, 48], sizes = [8, 8], strides = [1, 1]} : vector<8x64xf32> to vector<8x8xf32>
      %c2_117 = arith.constant 2 : index
      %c0_118 = arith.constant 0 : index
      %c0_119 = arith.constant 0 : index
      %249 = vector.load %arg22[%c2_117, %c0_118, %c0_119] : memref<4x8x8xf32, #tpu.memory_space<vmem>>, vector<1x8x8xf32>
      %250 = vector.shape_cast %249 : vector<1x8x8xf32> to vector<8x8xf32>
      %251 = vector.shape_cast %248 : vector<8x8xf32> to vector<1x8x8xf32>
      tpu.vector_store %arg22[%c2_117, %c0_118, %c0_119], %251 {strides = array<i32>} : memref<4x8x8xf32, #tpu.memory_space<vmem>>, vector<1x8x8xf32>,
      %252 = vector.extract_strided_slice %227 {offsets = [0, 24], sizes = [8, 8], strides = [1, 1]} : vector<8x64xf32> to vector<8x8xf32>
      %c3_120 = arith.constant 3 : index
      %c0_121 = arith.constant 0 : index
      %c0_122 = arith.constant 0 : index
      %253 = vector.load %arg21[%c3_120, %c0_121, %c0_122] : memref<4x8x8xf32, #tpu.memory_space<vmem>>, vector<1x8x8xf32>
      %254 = vector.shape_cast %253 : vector<1x8x8xf32> to vector<8x8xf32>
      %255 = vector.shape_cast %252 : vector<8x8xf32> to vector<1x8x8xf32>
      tpu.vector_store %arg21[%c3_120, %c0_121, %c0_122], %255 {strides = array<i32>} : memref<4x8x8xf32, #tpu.memory_space<vmem>>, vector<1x8x8xf32>,
      %256 = vector.extract_strided_slice %227 {offsets = [0, 56], sizes = [8, 8], strides = [1, 1]} : vector<8x64xf32> to vector<8x8xf32>
      %c3_123 = arith.constant 3 : index
      %c0_124 = arith.constant 0 : index
      %c0_125 = arith.constant 0 : index
      %257 = vector.load %arg22[%c3_123, %c0_124, %c0_125] : memref<4x8x8xf32, #tpu.memory_space<vmem>>, vector<1x8x8xf32>
      %258 = vector.shape_cast %257 : vector<1x8x8xf32> to vector<8x8xf32>
      %259 = vector.shape_cast %256 : vector<8x8xf32> to vector<1x8x8xf32>
      tpu.vector_store %arg22[%c3_123, %c0_124, %c0_125], %259 {strides = array<i32>} : memref<4x8x8xf32, #tpu.memory_space<vmem>>, vector<1x8x8xf32>,
    } else {
    }
    %c0_8 = arith.constant 0 : index
    %c0_9 = arith.constant 0 : index
    %c0_10 = arith.constant 0 : index
    %11 = vector.load %arg2[%c0_8, %c0_9, %c0_10] : memref<1x8x32xf32, #tpu.memory_space<vmem>>, vector<1x8x32xf32>
    %12 = vector.shape_cast %11 : vector<1x8x32xf32> to vector<8x32xf32>
    %cst = arith.constant dense<0.000000e+00> : vector<8xf32>
    %13 = vector.multi_reduction <add>, %12, %cst [1] : vector<8x32xf32> to vector<8xf32>
    %14 = vector.shape_cast %13 : vector<8xf32> to vector<8x1xf32>
    %cst_11 = arith.constant 3.200000e+01 : f32
    %15 = vector.broadcast %cst_11 : f32 to vector<8x1xf32>
    %16 = arith.divf %14, %15 : vector<8x1xf32>
    %17 = vector.broadcast %16 : vector<8x1xf32> to vector<8x32xf32>
    %18 = arith.subf %12, %17 : vector<8x32xf32>
    %19 = arith.mulf %18, %18 : vector<8x32xf32>
    %cst_12 = arith.constant dense<0.000000e+00> : vector<8xf32>
    %20 = vector.multi_reduction <add>, %19, %cst_12 [1] : vector<8x32xf32> to vector<8xf32>
    %21 = vector.shape_cast %20 : vector<8xf32> to vector<8x1xf32>
    %cst_13 = arith.constant 3.200000e+01 : f32
    %22 = vector.broadcast %cst_13 : f32 to vector<8x1xf32>
    %23 = arith.divf %21, %22 : vector<8x1xf32>
    %24 = vector.broadcast %16 : vector<8x1xf32> to vector<8x32xf32>
    %25 = arith.subf %12, %24 : vector<8x32xf32>
    %cst_14 = arith.constant 9.99999974E-6 : f32
    %26 = vector.broadcast %cst_14 : f32 to vector<8x1xf32>
    %27 = arith.addf %23, %26 : vector<8x1xf32>
    %28 = math.rsqrt %27 : vector<8x1xf32>
    %29 = vector.broadcast %28 : vector<8x1xf32> to vector<8x32xf32>
    %30 = arith.mulf %25, %29 : vector<8x32xf32>
    %31 = vector.shape_cast %1 : vector<32xf32> to vector<1x32xf32>
    %32 = vector.broadcast %31 : vector<1x32xf32> to vector<8x32xf32>
    %33 = arith.mulf %30, %32 : vector<8x32xf32>
    %34 = vector.shape_cast %3 : vector<32xf32> to vector<1x32xf32>
    %35 = vector.broadcast %34 : vector<1x32xf32> to vector<8x32xf32>
    %36 = arith.addf %33, %35 : vector<8x32xf32>
    %cst_15 = arith.constant dense<0.000000e+00> : vector<8xf32>
    %37 = vector.multi_reduction <add>, %36, %cst_15 [1] : vector<8x32xf32> to vector<8xf32>
    %38 = vector.shape_cast %37 : vector<8xf32> to vector<8x1xf32>
    %cst_16 = arith.constant 3.200000e+01 : f32
    %39 = vector.broadcast %cst_16 : f32 to vector<8x1xf32>
    %40 = arith.divf %38, %39 : vector<8x1xf32>
    %41 = vector.broadcast %40 : vector<8x1xf32> to vector<8x32xf32>
    %42 = arith.subf %36, %41 : vector<8x32xf32>
    %43 = arith.mulf %42, %42 : vector<8x32xf32>
    %cst_17 = arith.constant dense<0.000000e+00> : vector<8xf32>
    %44 = vector.multi_reduction <add>, %43, %cst_17 [1] : vector<8x32xf32> to vector<8xf32>
    %45 = vector.shape_cast %44 : vector<8xf32> to vector<8x1xf32>
    %cst_18 = arith.constant 3.200000e+01 : f32
    %46 = vector.broadcast %cst_18 : f32 to vector<8x1xf32>
    %47 = arith.divf %45, %46 : vector<8x1xf32>
    %48 = vector.broadcast %40 : vector<8x1xf32> to vector<8x32xf32>
    %49 = arith.subf %36, %48 : vector<8x32xf32>
    %cst_19 = arith.constant 9.99999974E-6 : f32
    %50 = vector.broadcast %cst_19 : f32 to vector<8x1xf32>
    %51 = arith.addf %47, %50 : vector<8x1xf32>
    %52 = math.rsqrt %51 : vector<8x1xf32>
    %53 = vector.broadcast %52 : vector<8x1xf32> to vector<8x32xf32>
    %54 = arith.mulf %49, %53 : vector<8x32xf32>
    %55 = vector.shape_cast %5 : vector<32xf32> to vector<1x32xf32>
    %56 = vector.broadcast %55 : vector<1x32xf32> to vector<8x32xf32>
    %57 = arith.mulf %54, %56 : vector<8x32xf32>
    %58 = vector.shape_cast %7 : vector<32xf32> to vector<1x32xf32>
    %59 = vector.broadcast %58 : vector<1x32xf32> to vector<8x32xf32>
    %60 = arith.addf %57, %59 : vector<8x32xf32>
    %c0_20 = arith.constant 0 : index
    %c0_21 = arith.constant 0 : index
    %61 = vector.load %arg8[%c0_20, %c0_21] : memref<32x32xf32, #tpu.memory_space<vmem>>, vector<32x32xf32>
    %cst_22 = arith.constant dense<0.000000e+00> : vector<8x32xf32>
    %62 = tpu.matmul %60, %61, %cst_22 {dimension_numbers = #tpu.dot_dimension_numbers<[1], [0], [0], [1], [0, 0, 1, 1], [], []>} : vector<8x32xf32>, vector<32x32xf32>, vector<8x32xf32> -> vector<8x32xf32>
    %c0_23 = arith.constant 0 : index
    %c0_24 = arith.constant 0 : index
    %63 = vector.load %arg9[%c0_23, %c0_24] : memref<1x32xf32, #tpu.memory_space<vmem>>, vector<1x32xf32>
    %64 = vector.shape_cast %63 : vector<1x32xf32> to vector<32xf32>
    %65 = vector.shape_cast %64 : vector<32xf32> to vector<1x32xf32>
    %66 = vector.broadcast %65 : vector<1x32xf32> to vector<8x32xf32>
    %67 = arith.addf %62, %66 : vector<8x32xf32>
    %cst_25 = arith.constant 0.353553385 : f32
    %68 = vector.broadcast %cst_25 : f32 to vector<8x32xf32>
    %69 = arith.mulf %67, %68 : vector<8x32xf32>
    %70 = vector.extract_strided_slice %69 {offsets = [0, 0], sizes = [8, 8], strides = [1, 1]} : vector<8x32xf32> to vector<8x8xf32>
    %c0_26 = arith.constant 0 : index
    %c0_27 = arith.constant 0 : index
    %c0_28 = arith.constant 0 : index
    %71 = vector.load %arg23[%c0_26, %c0_27, %c0_28] : memref<4x8x8xf32, #tpu.memory_space<vmem>>, vector<1x8x8xf32>
    %72 = vector.shape_cast %71 : vector<1x8x8xf32> to vector<8x8xf32>
    %73 = vector.shape_cast %70 : vector<8x8xf32> to vector<1x8x8xf32>
    tpu.vector_store %arg23[%c0_26, %c0_27, %c0_28], %73 {strides = array<i32>} : memref<4x8x8xf32, #tpu.memory_space<vmem>>, vector<1x8x8xf32>,
    %74 = vector.extract_strided_slice %69 {offsets = [0, 8], sizes = [8, 8], strides = [1, 1]} : vector<8x32xf32> to vector<8x8xf32>
    %c1 = arith.constant 1 : index
    %c0_29 = arith.constant 0 : index
    %c0_30 = arith.constant 0 : index
    %75 = vector.load %arg23[%c1, %c0_29, %c0_30] : memref<4x8x8xf32, #tpu.memory_space<vmem>>, vector<1x8x8xf32>
    %76 = vector.shape_cast %75 : vector<1x8x8xf32> to vector<8x8xf32>
    %77 = vector.shape_cast %74 : vector<8x8xf32> to vector<1x8x8xf32>
    tpu.vector_store %arg23[%c1, %c0_29, %c0_30], %77 {strides = array<i32>} : memref<4x8x8xf32, #tpu.memory_space<vmem>>, vector<1x8x8xf32>,
    %78 = vector.extract_strided_slice %69 {offsets = [0, 16], sizes = [8, 8], strides = [1, 1]} : vector<8x32xf32> to vector<8x8xf32>
    %c2 = arith.constant 2 : index
    %c0_31 = arith.constant 0 : index
    %c0_32 = arith.constant 0 : index
    %79 = vector.load %arg23[%c2, %c0_31, %c0_32] : memref<4x8x8xf32, #tpu.memory_space<vmem>>, vector<1x8x8xf32>
    %80 = vector.shape_cast %79 : vector<1x8x8xf32> to vector<8x8xf32>
    %81 = vector.shape_cast %78 : vector<8x8xf32> to vector<1x8x8xf32>
    tpu.vector_store %arg23[%c2, %c0_31, %c0_32], %81 {strides = array<i32>} : memref<4x8x8xf32, #tpu.memory_space<vmem>>, vector<1x8x8xf32>,
    %82 = vector.extract_strided_slice %69 {offsets = [0, 24], sizes = [8, 8], strides = [1, 1]} : vector<8x32xf32> to vector<8x8xf32>
    %c3 = arith.constant 3 : index
    %c0_33 = arith.constant 0 : index
    %c0_34 = arith.constant 0 : index
    %83 = vector.load %arg23[%c3, %c0_33, %c0_34] : memref<4x8x8xf32, #tpu.memory_space<vmem>>, vector<1x8x8xf32>
    %84 = vector.shape_cast %83 : vector<1x8x8xf32> to vector<8x8xf32>
    %85 = vector.shape_cast %82 : vector<8x8xf32> to vector<1x8x8xf32>
    tpu.vector_store %arg23[%c3, %c0_33, %c0_34], %85 {strides = array<i32>} : memref<4x8x8xf32, #tpu.memory_space<vmem>>, vector<1x8x8xf32>,
    %c0_35 = arith.constant 0 : index
    %c0_36 = arith.constant 0 : index
    %c0_37 = arith.constant 0 : index
    %86 = vector.load %arg23[%c0_35, %c0_36, %c0_37] : memref<4x8x8xf32, #tpu.memory_space<vmem>>, vector<4x8x8xf32>
    %c0_38 = arith.constant 0 : index
    %c0_39 = arith.constant 0 : index
    %c0_40 = arith.constant 0 : index
    %87 = vector.load %arg21[%c0_38, %c0_39, %c0_40] : memref<4x8x8xf32, #tpu.memory_space<vmem>>, vector<4x8x8xf32>
    "tpu.trace_start"() <{level = 10 : i32, message = "hqd,hkd->hqk"}> : () -> ()
    %cst_41 = arith.constant dense<0.000000e+00> : vector<4x8x8xf32>
    %88 = tpu.matmul %86, %87, %cst_41 {dimension_numbers = #tpu.dot_dimension_numbers<[2], [2], [1], [1], [0, 0, 0, 1, 1, 1], [0], [0]>} : vector<4x8x8xf32>, vector<4x8x8xf32>, vector<4x8x8xf32> -> vector<4x8x8xf32>
    "tpu.trace_stop"() : () -> ()
    %cst_42 = arith.constant dense<0xFF800000> : vector<4x8xf32>
    %89 = vector.multi_reduction <maximumf>, %88, %cst_42 [2] : vector<4x8x8xf32> to vector<4x8xf32>
    %90 = vector.shape_cast %89 : vector<4x8xf32> to vector<4x8x1xf32>
    %91 = vector.broadcast %90 : vector<4x8x1xf32> to vector<4x8x8xf32>
    %92 = arith.subf %88, %91 : vector<4x8x8xf32>
    %93 = math.exp %92 : vector<4x8x8xf32>
    %cst_43 = arith.constant dense<0.000000e+00> : vector<4x8xf32>
    %94 = vector.multi_reduction <add>, %93, %cst_43 [2] : vector<4x8x8xf32> to vector<4x8xf32>
    %95 = vector.shape_cast %94 : vector<4x8xf32> to vector<4x8x1xf32>
    %cst_44 = arith.constant 1.000000e+00 : f32
    %96 = vector.broadcast %cst_44 : f32 to vector<4x8x1xf32>
    %97 = arith.divf %96, %95 : vector<4x8x1xf32>
    %98 = vector.broadcast %97 : vector<4x8x1xf32> to vector<4x8x8xf32>
    %99 = arith.mulf %93, %98 : vector<4x8x8xf32>
    %c0_45 = arith.constant 0 : index
    %c0_46 = arith.constant 0 : index
    %c0_47 = arith.constant 0 : index
    %100 = vector.load %arg22[%c0_45, %c0_46, %c0_47] : memref<4x8x8xf32, #tpu.memory_space<vmem>>, vector<4x8x8xf32>
    "tpu.trace_start"() <{level = 10 : i32, message = "hqk,hkd->hqd"}> : () -> ()
    %cst_48 = arith.constant dense<0.000000e+00> : vector<4x8x8xf32>
    %101 = tpu.matmul %99, %100, %cst_48 {dimension_numbers = #tpu.dot_dimension_numbers<[2], [1], [1], [2], [0, 0, 0, 1, 1, 2], [0], [0]>} : vector<4x8x8xf32>, vector<4x8x8xf32>, vector<4x8x8xf32> -> vector<4x8x8xf32>
    "tpu.trace_stop"() : () -> ()
    %102 = vector.extract_strided_slice %101 {offsets = [0, 0, 0], sizes = [1, 8, 8], strides = [1, 1, 1]} : vector<4x8x8xf32> to vector<1x8x8xf32>
    %103 = vector.shape_cast %102 : vector<1x8x8xf32> to vector<8x8xf32>
    %c0_49 = arith.constant 0 : index
    %c0_50 = arith.constant 0 : index
    %104 = vector.load %arg24[%c0_49, %c0_50] : memref<8x32xf32, #tpu.memory_space<vmem>>, vector<8x8xf32>
    tpu.vector_store %arg24[%c0_49, %c0_50], %103 {strides = array<i32>} : memref<8x32xf32, #tpu.memory_space<vmem>>, vector<8x8xf32>,
    %105 = vector.extract_strided_slice %101 {offsets = [1, 0, 0], sizes = [1, 8, 8], strides = [1, 1, 1]} : vector<4x8x8xf32> to vector<1x8x8xf32>
    %106 = vector.shape_cast %105 : vector<1x8x8xf32> to vector<8x8xf32>
    %c0_51 = arith.constant 0 : index
    %c8 = arith.constant 8 : index
    %107 = vector.load %arg24[%c0_51, %c8] : memref<8x32xf32, #tpu.memory_space<vmem>>, vector<8x8xf32>
    tpu.vector_store %arg24[%c0_51, %c8], %106 {strides = array<i32>} : memref<8x32xf32, #tpu.memory_space<vmem>>, vector<8x8xf32>,
    %108 = vector.extract_strided_slice %101 {offsets = [2, 0, 0], sizes = [1, 8, 8], strides = [1, 1, 1]} : vector<4x8x8xf32> to vector<1x8x8xf32>
    %109 = vector.shape_cast %108 : vector<1x8x8xf32> to vector<8x8xf32>
    %c0_52 = arith.constant 0 : index
    %c16 = arith.constant 16 : index
    %110 = vector.load %arg24[%c0_52, %c16] : memref<8x32xf32, #tpu.memory_space<vmem>>, vector<8x8xf32>
    tpu.vector_store %arg24[%c0_52, %c16], %109 {strides = array<i32>} : memref<8x32xf32, #tpu.memory_space<vmem>>, vector<8x8xf32>,
    %111 = vector.extract_strided_slice %101 {offsets = [3, 0, 0], sizes = [1, 8, 8], strides = [1, 1, 1]} : vector<4x8x8xf32> to vector<1x8x8xf32>
    %112 = vector.shape_cast %111 : vector<1x8x8xf32> to vector<8x8xf32>
    %c0_53 = arith.constant 0 : index
    %c24 = arith.constant 24 : index
    %113 = vector.load %arg24[%c0_53, %c24] : memref<8x32xf32, #tpu.memory_space<vmem>>, vector<8x8xf32>
    tpu.vector_store %arg24[%c0_53, %c24], %112 {strides = array<i32>} : memref<8x32xf32, #tpu.memory_space<vmem>>, vector<8x8xf32>,
    %c0_54 = arith.constant 0 : index
    %c0_55 = arith.constant 0 : index
    %114 = vector.load %arg24[%c0_54, %c0_55] : memref<8x32xf32, #tpu.memory_space<vmem>>, vector<8x32xf32>
    %c0_56 = arith.constant 0 : index
    %c0_57 = arith.constant 0 : index
    %115 = vector.load %arg12[%c0_56, %c0_57] : memref<32x32xf32, #tpu.memory_space<vmem>>, vector<32x32xf32>
    %cst_58 = arith.constant dense<0.000000e+00> : vector<8x32xf32>
    %116 = tpu.matmul %114, %115, %cst_58 {dimension_numbers = #tpu.dot_dimension_numbers<[1], [0], [0], [1], [0, 0, 1, 1], [], []>} : vector<8x32xf32>, vector<32x32xf32>, vector<8x32xf32> -> vector<8x32xf32>
    %c0_59 = arith.constant 0 : index
    %c0_60 = arith.constant 0 : index
    %117 = vector.load %arg13[%c0_59, %c0_60] : memref<1x32xf32, #tpu.memory_space<vmem>>, vector<1x32xf32>
    %118 = vector.shape_cast %117 : vector<1x32xf32> to vector<32xf32>
    %119 = vector.shape_cast %118 : vector<32xf32> to vector<1x32xf32>
    %120 = vector.broadcast %119 : vector<1x32xf32> to vector<8x32xf32>
    %121 = arith.addf %116, %120 : vector<8x32xf32>
    %122 = arith.addf %12, %121 : vector<8x32xf32>
    %c0_61 = arith.constant 0 : index
    %c0_62 = arith.constant 0 : index
    %123 = vector.load %arg14[%c0_61, %c0_62] : memref<1x32xf32, #tpu.memory_space<vmem>>, vector<1x32xf32>
    %124 = vector.shape_cast %123 : vector<1x32xf32> to vector<32xf32>
    %c0_63 = arith.constant 0 : index
    %c0_64 = arith.constant 0 : index
    %125 = vector.load %arg15[%c0_63, %c0_64] : memref<1x32xf32, #tpu.memory_space<vmem>>, vector<1x32xf32>
    %126 = vector.shape_cast %125 : vector<1x32xf32> to vector<32xf32>
    %cst_65 = arith.constant dense<0.000000e+00> : vector<8xf32>
    %127 = vector.multi_reduction <add>, %122, %cst_65 [1] : vector<8x32xf32> to vector<8xf32>
    %128 = vector.shape_cast %127 : vector<8xf32> to vector<8x1xf32>
    %cst_66 = arith.constant 3.200000e+01 : f32
    %129 = vector.broadcast %cst_66 : f32 to vector<8x1xf32>
    %130 = arith.divf %128, %129 : vector<8x1xf32>
    %131 = vector.broadcast %130 : vector<8x1xf32> to vector<8x32xf32>
    %132 = arith.subf %122, %131 : vector<8x32xf32>
    %133 = arith.mulf %132, %132 : vector<8x32xf32>
    %cst_67 = arith.constant dense<0.000000e+00> : vector<8xf32>
    %134 = vector.multi_reduction <add>, %133, %cst_67 [1] : vector<8x32xf32> to vector<8xf32>
    %135 = vector.shape_cast %134 : vector<8xf32> to vector<8x1xf32>
    %cst_68 = arith.constant 3.200000e+01 : f32
    %136 = vector.broadcast %cst_68 : f32 to vector<8x1xf32>
    %137 = arith.divf %135, %136 : vector<8x1xf32>
    %138 = vector.broadcast %130 : vector<8x1xf32> to vector<8x32xf32>
    %139 = arith.subf %122, %138 : vector<8x32xf32>
    %cst_69 = arith.constant 9.99999974E-6 : f32
    %140 = vector.broadcast %cst_69 : f32 to vector<8x1xf32>
    %141 = arith.addf %137, %140 : vector<8x1xf32>
    %142 = math.rsqrt %141 : vector<8x1xf32>
    %143 = vector.broadcast %142 : vector<8x1xf32> to vector<8x32xf32>
    %144 = arith.mulf %139, %143 : vector<8x32xf32>
    %145 = vector.shape_cast %124 : vector<32xf32> to vector<1x32xf32>
    %146 = vector.broadcast %145 : vector<1x32xf32> to vector<8x32xf32>
    %147 = arith.mulf %144, %146 : vector<8x32xf32>
    %148 = vector.shape_cast %126 : vector<32xf32> to vector<1x32xf32>
    %149 = vector.broadcast %148 : vector<1x32xf32> to vector<8x32xf32>
    %150 = arith.addf %147, %149 : vector<8x32xf32>
    %c0_70 = arith.constant 0 : index
    %c0_71 = arith.constant 0 : index
    %151 = vector.load %arg16[%c0_70, %c0_71] : memref<32x128xf32, #tpu.memory_space<vmem>>, vector<32x128xf32>
    %cst_72 = arith.constant dense<0.000000e+00> : vector<8x128xf32>
    %152 = tpu.matmul %150, %151, %cst_72 {dimension_numbers = #tpu.dot_dimension_numbers<[1], [0], [0], [1], [0, 0, 1, 1], [], []>} : vector<8x32xf32>, vector<32x128xf32>, vector<8x128xf32> -> vector<8x128xf32>
    %c0_73 = arith.constant 0 : index
    %c0_74 = arith.constant 0 : index
    %153 = vector.load %arg17[%c0_73, %c0_74] : memref<1x128xf32, #tpu.memory_space<vmem>>, vector<1x128xf32>
    %154 = vector.shape_cast %153 : vector<1x128xf32> to vector<128xf32>
    %155 = vector.shape_cast %154 : vector<128xf32> to vector<1x128xf32>
    %156 = vector.broadcast %155 : vector<1x128xf32> to vector<8x128xf32>
    %157 = arith.addf %152, %156 : vector<8x128xf32>
    %cst_75 = arith.constant 0.000000e+00 : f32
    %158 = vector.broadcast %cst_75 : f32 to vector<8x128xf32>
    %159 = arith.maximumf %157, %158 : vector<8x128xf32>
    %c0_76 = arith.constant 0 : index
    %c0_77 = arith.constant 0 : index
    %160 = vector.load %arg18[%c0_76, %c0_77] : memref<128x32xf32, #tpu.memory_space<vmem>>, vector<128x32xf32>
    %cst_78 = arith.constant dense<0.000000e+00> : vector<8x32xf32>
    %161 = tpu.matmul %159, %160, %cst_78 {dimension_numbers = #tpu.dot_dimension_numbers<[1], [0], [0], [1], [0, 0, 1, 1], [], []>} : vector<8x128xf32>, vector<128x32xf32>, vector<8x32xf32> -> vector<8x32xf32>
    %c0_79 = arith.constant 0 : index
    %c0_80 = arith.constant 0 : index
    %162 = vector.load %arg19[%c0_79, %c0_80] : memref<1x32xf32, #tpu.memory_space<vmem>>, vector<1x32xf32>
    %163 = vector.shape_cast %162 : vector<1x32xf32> to vector<32xf32>
    %164 = vector.shape_cast %163 : vector<32xf32> to vector<1x32xf32>
    %165 = vector.broadcast %164 : vector<1x32xf32> to vector<8x32xf32>
    %166 = arith.addf %161, %165 : vector<8x32xf32>
    %167 = arith.addf %122, %166 : vector<8x32xf32>
    %c0_81 = arith.constant 0 : index
    %c0_82 = arith.constant 0 : index
    %c0_83 = arith.constant 0 : index
    %168 = vector.load %arg20[%c0_81, %c0_82, %c0_83] : memref<1x8x32xf32, #tpu.memory_space<vmem>>, vector<1x8x32xf32>
    %169 = vector.shape_cast %168 : vector<1x8x32xf32> to vector<8x32xf32>
    %170 = vector.shape_cast %167 : vector<8x32xf32> to vector<1x8x32xf32>
    tpu.vector_store %arg20[%c0_81, %c0_82, %c0_83], %170 {strides = array<i32>} : memref<1x8x32xf32, #tpu.memory_space<vmem>>, vector<1x8x32xf32>,
    return
  }
  func.func @transform_0(%arg0: i32, %arg1: i32) -> (i32, i32, i32) {
    %c0_i32 = arith.constant 0 : i32
    %c0_i32_0 = arith.constant 0 : i32
    return %arg0, %arg1, %c0_i32 : i32, i32, i32
  }
  func.func @transform_1(%arg0: i32, %arg1: i32) -> (i32, i32, i32) {
    %c0_i32 = arith.constant 0 : i32
    %c0_i32_0 = arith.constant 0 : i32
    %c0_i32_1 = arith.constant 0 : i32
    return %arg0, %c0_i32, %c0_i32_0 : i32, i32, i32
  }
  func.func @transform_2(%arg0: i32, %arg1: i32) -> (i32, i32) {
    %c0_i32 = arith.constant 0 : i32
    %c0_i32_0 = arith.constant 0 : i32
    %c0_i32_1 = arith.constant 0 : i32
    return %c0_i32, %c0_i32_0 : i32, i32
  }
  func.func @transform_3(%arg0: i32, %arg1: i32) -> (i32, i32) {
    %c0_i32 = arith.constant 0 : i32
    %c0_i32_0 = arith.constant 0 : i32
    %c0_i32_1 = arith.constant 0 : i32
    return %c0_i32, %c0_i32_0 : i32, i32
  }
  func.func @transform_4(%arg0: i32, %arg1: i32) -> (i32, i32) {
    %c0_i32 = arith.constant 0 : i32
    %c0_i32_0 = arith.constant 0 : i32
    %c0_i32_1 = arith.constant 0 : i32
    return %c0_i32, %c0_i32_0 : i32, i32
  }
  func.func @transform_5(%arg0: i32, %arg1: i32) -> (i32, i32) {
    %c0_i32 = arith.constant 0 : i32
    %c0_i32_0 = arith.constant 0 : i32
    %c0_i32_1 = arith.constant 0 : i32
    return %c0_i32, %c0_i32_0 : i32, i32
  }
  func.func @transform_6(%arg0: i32, %arg1: i32) -> (i32, i32) {
    %c0_i32 = arith.constant 0 : i32
    %c0_i32_0 = arith.constant 0 : i32
    %c0_i32_1 = arith.constant 0 : i32
    return %c0_i32, %c0_i32_0 : i32, i32
  }
  func.func @transform_7(%arg0: i32, %arg1: i32) -> (i32, i32) {
    %c0_i32 = arith.constant 0 : i32
    %c0_i32_0 = arith.constant 0 : i32
    %c0_i32_1 = arith.constant 0 : i32
    return %c0_i32, %c0_i32_0 : i32, i32
  }
  func.func @transform_8(%arg0: i32, %arg1: i32) -> (i32, i32) {
    %c0_i32 = arith.constant 0 : i32
    %c0_i32_0 = arith.constant 0 : i32
    %c0_i32_1 = arith.constant 0 : i32
    return %c0_i32, %c0_i32_0 : i32, i32
  }
  func.func @transform_9(%arg0: i32, %arg1: i32) -> (i32, i32) {
    %c0_i32 = arith.constant 0 : i32
    %c0_i32_0 = arith.constant 0 : i32
    %c0_i32_1 = arith.constant 0 : i32
    return %c0_i32, %c0_i32_0 : i32, i32
  }
  func.func @transform_10(%arg0: i32, %arg1: i32) -> (i32, i32) {
    %c0_i32 = arith.constant 0 : i32
    %c0_i32_0 = arith.constant 0 : i32
    %c0_i32_1 = arith.constant 0 : i32
    return %c0_i32, %c0_i32_0 : i32, i32
  }
  func.func @transform_11(%arg0: i32, %arg1: i32) -> (i32, i32) {
    %c0_i32 = arith.constant 0 : i32
    %c0_i32_0 = arith.constant 0 : i32
    %c0_i32_1 = arith.constant 0 : i32
    return %c0_i32, %c0_i32_0 : i32, i32
  }
  func.func @transform_12(%arg0: i32, %arg1: i32) -> (i32, i32) {
    %c0_i32 = arith.constant 0 : i32
    %c0_i32_0 = arith.constant 0 : i32
    %c0_i32_1 = arith.constant 0 : i32
    return %c0_i32, %c0_i32_0 : i32, i32
  }
  func.func @transform_13(%arg0: i32, %arg1: i32) -> (i32, i32) {
    %c0_i32 = arith.constant 0 : i32
    %c0_i32_0 = arith.constant 0 : i32
    %c0_i32_1 = arith.constant 0 : i32
    return %c0_i32, %c0_i32_0 : i32, i32
  }
  func.func @transform_14(%arg0: i32, %arg1: i32) -> (i32, i32) {
    %c0_i32 = arith.constant 0 : i32
    %c0_i32_0 = arith.constant 0 : i32
    %c0_i32_1 = arith.constant 0 : i32
    return %c0_i32, %c0_i32_0 : i32, i32
  }
  func.func @transform_15(%arg0: i32, %arg1: i32) -> (i32, i32) {
    %c0_i32 = arith.constant 0 : i32
    %c0_i32_0 = arith.constant 0 : i32
    %c0_i32_1 = arith.constant 0 : i32
    return %c0_i32, %c0_i32_0 : i32, i32
  }
  func.func @transform_16(%arg0: i32, %arg1: i32) -> (i32, i32) {
    %c0_i32 = arith.constant 0 : i32
    %c0_i32_0 = arith.constant 0 : i32
    %c0_i32_1 = arith.constant 0 : i32
    return %c0_i32, %c0_i32_0 : i32, i32
  }
  func.func @transform_17(%arg0: i32, %arg1: i32) -> (i32, i32) {
    %c0_i32 = arith.constant 0 : i32
    %c0_i32_0 = arith.constant 0 : i32
    %c0_i32_1 = arith.constant 0 : i32
    return %c0_i32, %c0_i32_0 : i32, i32
  }
  func.func @transform_18(%arg0: i32, %arg1: i32) -> (i32, i32, i32) {
    %c0_i32 = arith.constant 0 : i32
    %c0_i32_0 = arith.constant 0 : i32
    return %arg0, %arg1, %c0_i32 : i32, i32, i32
  }
}

</mosaic_0001>

<llo_original>
// kernel: tpu_custom_call.1
$region0: #{tpu_custom_call.1}
  #allocation0 [shape = 'u32[]', space=smem, size = 0x4, offset = 0x4, fixed_abs, tag = 'smem constant byte address 0x4 - core index']
  #allocation1 [shape = 'u32[144,128]{1,0:T(1,128)}', space=vmem, size = 0x12000, scoped, tag = 'internal scratch']
  #allocation2 [shape = 'f32[4,8,8]{2,1,0:T(8,128)}', space=vmem, size = 0x4000, scoped, tag = 'scratch operand']
  #allocation3 [shape = 'f32[4,8,8]{2,1,0:T(8,128)}', space=vmem, size = 0x4000, scoped, tag = 'scratch operand']
  #allocation4 [shape = 'f32[4,8,8]{2,1,0:T(8,128)}', space=vmem, size = 0x4000, scoped, tag = 'scratch operand']
  #allocation5 [shape = 'f32[8,32]{1,0:T(8,128)}', space=vmem, size = 0x1000, scoped, tag = 'scratch operand']
  %s0 = inlined_call_operand.vmem [shape: f32[2,8,32], index: 0, kind: input, shape index: {}]
  %s1 = inlined_call_operand.vmem [shape: f32[2,8,32], index: 1, kind: input, shape index: {}]
  %s2 = inlined_call_operand.vmem [shape: f32[1,32], index: 2, kind: input, shape index: {}]
  %s3 = inlined_call_operand.vmem [shape: f32[1,32], index: 3, kind: input, shape index: {}]
  %s4 = inlined_call_operand.vmem [shape: f32[1,32], index: 4, kind: input, shape index: {}]
  %s5 = inlined_call_operand.vmem [shape: f32[1,32], index: 5, kind: input, shape index: {}]
  %s6 = inlined_call_operand.vmem [shape: f32[32,32], index: 6, kind: input, shape index: {}]
  %s7 = inlined_call_operand.vmem [shape: f32[1,32], index: 7, kind: input, shape index: {}]
  %s8 = inlined_call_operand.vmem [shape: f32[32,64], index: 8, kind: input, shape index: {}]
  %s9 = inlined_call_operand.vmem [shape: f32[1,64], index: 9, kind: input, shape index: {}]
  %s10 = inlined_call_operand.vmem [shape: f32[32,32], index: 10, kind: input, shape index: {}]
  %s11 = inlined_call_operand.vmem [shape: f32[1,32], index: 11, kind: input, shape index: {}]
  %s12 = inlined_call_operand.vmem [shape: f32[1,32], index: 12, kind: input, shape index: {}]
  %s13 = inlined_call_operand.vmem [shape: f32[1,32], index: 13, kind: input, shape index: {}]
  %s14 = inlined_call_operand.vmem [shape: f32[32,128], index: 14, kind: input, shape index: {}]
  %s15 = inlined_call_operand.vmem [shape: f32[1,128], index: 15, kind: input, shape index: {}]
  %s16 = inlined_call_operand.vmem [shape: f32[128,32], index: 16, kind: input, shape index: {}]
  %s17 = inlined_call_operand.vmem [shape: f32[1,32], index: 17, kind: input, shape index: {}]
  %s18 = inlined_call_operand.hbm [shape: f32[2,8,32], index: 18, kind: output, shape index: {}]
  %s19 = sld [smem:[#allocation0]]
  $region109: #{tpu_custom_call.1} parent=0
    _
  %s21 = ssub.s32 1, %s19
  %s22 = scalar_select 0, %s21, %s19
  $region1: #{tpu_custom_call.1} parent=0
    #allocation6 [shape = 'u8[8192]{0}', space=vmem, size = 0x2000, scoped, tag = 'output window, operand 0']
    #allocation7 [shape = 's32[2]{0}', space=sflag, size = 0x8, scoped, tag = 'scoped memory for tpu_custom_call.1']
    %23 = vsyncpa [#allocation7], 0
    %s24 = scalar_lea.sflag [#allocation7], 1
    %25 = vsyncpa %s24, 0
    loop: start=0, step=1, limit=4
    $region2: #{tpu_custom_call.1} parent=1 // loop_pre_header
      _
    $region3: #{tpu_custom_call.1} parent=1 // loop_header
      %s27 = sphi 0, %s31
      %p28 = scmp.ge.s32.totalorder %s27, 4
      %s34 = sphi 0, %s46
      %s35 = sphi 0, %s42
      %s36 = sphi 0, %s34
      %s37 = sphi 0, %s35
      %s38 = sphi 0, %s36
      %s39 = sphi 0, %s37
      %s51 = sphi 0, %s53
      %s54 = sphi 0, %s51
      %s55 = sphi 0, %s54
      %s71 = sphi 0, %s55
      %s77 = sphi 0, %s79
      %s80 = sphi 0, %s77
      %s81 = sphi 0, %s80
      %s97 = sphi 0, %s81
      %s101 = sphi 0, %s101
      %s103 = sphi 0, %s101
      %s104 = sphi 0, %s103
      %s118 = sphi 0, %s104
      %s122 = sphi 0, %s122
      %s124 = sphi 0, %s122
      %s125 = sphi 0, %s124
      %s139 = sphi 0, %s125
      %s143 = sphi 0, %s143
      %s145 = sphi 0, %s143
      %s146 = sphi 0, %s145
      %s160 = sphi 0, %s146
      %s164 = sphi 0, %s164
      %s166 = sphi 0, %s164
      %s167 = sphi 0, %s166
      %s181 = sphi 0, %s167
      %s185 = sphi 0, %s185
      %s187 = sphi 0, %s185
      %s188 = sphi 0, %s187
      %s202 = sphi 0, %s188
      %s206 = sphi 0, %s206
      %s208 = sphi 0, %s206
      %s209 = sphi 0, %s208
      %s223 = sphi 0, %s209
      %s227 = sphi 0, %s227
      %s229 = sphi 0, %s227
      %s230 = sphi 0, %s229
      %s244 = sphi 0, %s230
      %s248 = sphi 0, %s248
      %s250 = sphi 0, %s248
      %s251 = sphi 0, %s250
      %s265 = sphi 0, %s251
      %s269 = sphi 0, %s269
      %s271 = sphi 0, %s269
      %s272 = sphi 0, %s271
      %s286 = sphi 0, %s272
      %s290 = sphi 0, %s290
      %s292 = sphi 0, %s290
      %s293 = sphi 0, %s292
      %s307 = sphi 0, %s293
      %s311 = sphi 0, %s311
      %s313 = sphi 0, %s311
      %s314 = sphi 0, %s313
      %s328 = sphi 0, %s314
      %s332 = sphi 0, %s332
      %s334 = sphi 0, %s332
      %s335 = sphi 0, %s334
      %s349 = sphi 0, %s335
      %s353 = sphi 0, %s353
      %s355 = sphi 0, %s353
      %s356 = sphi 0, %s355
      %s370 = sphi 0, %s356
      %s374 = sphi 0, %s374
      %s376 = sphi 0, %s374
      %s377 = sphi 0, %s376
      %s391 = sphi 0, %s377
      %s395 = sphi 0, %s395
      %s397 = sphi 0, %s395
      %s398 = sphi 0, %s397
      %s412 = sphi 0, %s398
      %s416 = sphi 0, %s416
      %s418 = sphi 0, %s416
      %s419 = sphi 0, %s418
      %s433 = sphi 0, %s419
      %s441 = sphi 0, %s443
      %s444 = sphi 0, %s441
      %s445 = sphi 0, %s444
      %s461 = sphi 0, %s445
    $region4: #{tpu_custom_call.1} parent=1 // loop_header_branch
      %30 = sbr.rel (%p28) target = $region8
    $region5: #{tpu_custom_call.1} parent=1 // loop_body
      %s32 = ssub.s32 %s27, 1
      %s33 = ssub.s32 %s27, 2
      %s40 = sadd.s32 1, %s35
      %p41 = scmp.ge.s32.totalorder %s40, 1
      %s42 = scalar_select %p41, 0, %s40
      %s43 = sadd.s32 1, %s34
      %s44 = scalar_select %p41, %s43, %s34
      %p45 = scmp.ge.s32.totalorder %s44, 2
      %s46 = scalar_select %p45, 0, %s44
      %s47 = ssub.s32 %s34, %s46
      %s48 = ssub.s32 %s35, %s42
      %s49 = sor.u32 %s47, %s48
      %p50 = scmp.eq.s32.totalorder %s49, 0
      %s52 = sadd.s32 %s51, 1
      %s53 = scalar_select %p50, %s51, %s52
      %p56 = pneg %p50
      %p57 = scmp.eq.s32.totalorder %s27, 1
      %p58 = por %p56, %p57
      %p59 = scmp.ne.s32.totalorder %s51, %s54
      %p60 = scmp.eq.s32.totalorder %s27, 0
      %p61 = por %p59, %p60
      %p62 = scmp.ne.s32.totalorder %s51, %s54
      %p63 = scmp.eq.s32.totalorder %s32, 1
      %p64 = por %p62, %p63
      %p65 = scmp.ne.s32.totalorder %s54, %s55
      %p66 = scmp.eq.s32.totalorder %s32, 0
      %p67 = por %p65, %p66
      %p68 = scmp.ne.s32.totalorder %s54, %s55
      %p69 = scmp.eq.s32.totalorder %s33, 1
      %p70 = por %p68, %p69
      %p72 = scmp.ne.s32.totalorder %s55, %s71
      %p73 = scmp.eq.s32.totalorder %s33, 0
      %p74 = por %p72, %p73
      %s75 = ssub.s32 %s34, %s46
      %p76 = scmp.eq.s32.totalorder %s75, 0
      %s78 = sadd.s32 %s77, 1
      %s79 = scalar_select %p76, %s77, %s78
      %p82 = pneg %p76
      %p83 = scmp.eq.s32.totalorder %s27, 1
      %p84 = por %p82, %p83
      %p85 = scmp.ne.s32.totalorder %s77, %s80
      %p86 = scmp.eq.s32.totalorder %s27, 0
      %p87 = por %p85, %p86
      %p88 = scmp.ne.s32.totalorder %s77, %s80
      %p89 = scmp.eq.s32.totalorder %s32, 1
      %p90 = por %p88, %p89
      %p91 = scmp.ne.s32.totalorder %s80, %s81
      %p92 = scmp.eq.s32.totalorder %s32, 0
      %p93 = por %p91, %p92
      %p94 = scmp.ne.s32.totalorder %s80, %s81
      %p95 = scmp.eq.s32.totalorder %s33, 1
      %p96 = por %p94, %p95
      %p98 = scmp.ne.s32.totalorder %s81, %s97
      %p99 = scmp.eq.s32.totalorder %s33, 0
      %p100 = por %p98, %p99
      %s102 = sadd.s32 %s101, 1
      %p105 = scmp.eq.s32.totalorder %s27, 1
      %p106 = scmp.ne.s32.totalorder %s101, %s103
      %p107 = scmp.eq.s32.totalorder %s27, 0
      %p108 = por %p106, %p107
      %p109 = scmp.ne.s32.totalorder %s101, %s103
      %p110 = scmp.eq.s32.totalorder %s32, 1
      %p111 = por %p109, %p110
      %p112 = scmp.ne.s32.totalorder %s103, %s104
      %p113 = scmp.eq.s32.totalorder %s32, 0
      %p114 = por %p112, %p113
      %p115 = scmp.ne.s32.totalorder %s103, %s104
      %p116 = scmp.eq.s32.totalorder %s33, 1
      %p117 = por %p115, %p116
      %p119 = scmp.ne.s32.totalorder %s104, %s118
      %p120 = scmp.eq.s32.totalorder %s33, 0
      %p121 = por %p119, %p120
      %s123 = sadd.s32 %s122, 1
      %p126 = scmp.eq.s32.totalorder %s27, 1
      %p127 = scmp.ne.s32.totalorder %s122, %s124
      %p128 = scmp.eq.s32.totalorder %s27, 0
      %p129 = por %p127, %p128
      %p130 = scmp.ne.s32.totalorder %s122, %s124
      %p131 = scmp.eq.s32.totalorder %s32, 1
      %p132 = por %p130, %p131
      %p133 = scmp.ne.s32.totalorder %s124, %s125
      %p134 = scmp.eq.s32.totalorder %s32, 0
      %p135 = por %p133, %p134
      %p136 = scmp.ne.s32.totalorder %s124, %s125
      %p137 = scmp.eq.s32.totalorder %s33, 1
      %p138 = por %p136, %p137
      %p140 = scmp.ne.s32.totalorder %s125, %s139
      %p141 = scmp.eq.s32.totalorder %s33, 0
      %p142 = por %p140, %p141
      %s144 = sadd.s32 %s143, 1
      %p147 = scmp.eq.s32.totalorder %s27, 1
      %p148 = scmp.ne.s32.totalorder %s143, %s145
      %p149 = scmp.eq.s32.totalorder %s27, 0
      %p150 = por %p148, %p149
      %p151 = scmp.ne.s32.totalorder %s143, %s145
      %p152 = scmp.eq.s32.totalorder %s32, 1
      %p153 = por %p151, %p152
      %p154 = scmp.ne.s32.totalorder %s145, %s146
      %p155 = scmp.eq.s32.totalorder %s32, 0
      %p156 = por %p154, %p155
      %p157 = scmp.ne.s32.totalorder %s145, %s146
      %p158 = scmp.eq.s32.totalorder %s33, 1
      %p159 = por %p157, %p158
      %p161 = scmp.ne.s32.totalorder %s146, %s160
      %p162 = scmp.eq.s32.totalorder %s33, 0
      %p163 = por %p161, %p162
      %s165 = sadd.s32 %s164, 1
      %p168 = scmp.eq.s32.totalorder %s27, 1
      %p169 = scmp.ne.s32.totalorder %s164, %s166
      %p170 = scmp.eq.s32.totalorder %s27, 0
      %p171 = por %p169, %p170
      %p172 = scmp.ne.s32.totalorder %s164, %s166
      %p173 = scmp.eq.s32.totalorder %s32, 1
      %p174 = por %p172, %p173
      %p175 = scmp.ne.s32.totalorder %s166, %s167
      %p176 = scmp.eq.s32.totalorder %s32, 0
      %p177 = por %p175, %p176
      %p178 = scmp.ne.s32.totalorder %s166, %s167
      %p179 = scmp.eq.s32.totalorder %s33, 1
      %p180 = por %p178, %p179
      %p182 = scmp.ne.s32.totalorder %s167, %s181
      %p183 = scmp.eq.s32.totalorder %s33, 0
      %p184 = por %p182, %p183
      %s186 = sadd.s32 %s185, 1
      %p189 = scmp.eq.s32.totalorder %s27, 1
      %p190 = scmp.ne.s32.totalorder %s185, %s187
      %p191 = scmp.eq.s32.totalorder %s27, 0
      %p192 = por %p190, %p191
      %p193 = scmp.ne.s32.totalorder %s185, %s187
      %p194 = scmp.eq.s32.totalorder %s32, 1
      %p195 = por %p193, %p194
      %p196 = scmp.ne.s32.totalorder %s187, %s188
      %p197 = scmp.eq.s32.totalorder %s32, 0
      %p198 = por %p196, %p197
      %p199 = scmp.ne.s32.totalorder %s187, %s188
      %p200 = scmp.eq.s32.totalorder %s33, 1
      %p201 = por %p199, %p200
      %p203 = scmp.ne.s32.totalorder %s188, %s202
      %p204 = scmp.eq.s32.totalorder %s33, 0
      %p205 = por %p203, %p204
      %s207 = sadd.s32 %s206, 1
      %p210 = scmp.eq.s32.totalorder %s27, 1
      %p211 = scmp.ne.s32.totalorder %s206, %s208
      %p212 = scmp.eq.s32.totalorder %s27, 0
      %p213 = por %p211, %p212
      %p214 = scmp.ne.s32.totalorder %s206, %s208
      %p215 = scmp.eq.s32.totalorder %s32, 1
      %p216 = por %p214, %p215
      %p217 = scmp.ne.s32.totalorder %s208, %s209
      %p218 = scmp.eq.s32.totalorder %s32, 0
      %p219 = por %p217, %p218
      %p220 = scmp.ne.s32.totalorder %s208, %s209
      %p221 = scmp.eq.s32.totalorder %s33, 1
      %p222 = por %p220, %p221
      %p224 = scmp.ne.s32.totalorder %s209, %s223
      %p225 = scmp.eq.s32.totalorder %s33, 0
      %p226 = por %p224, %p225
      %s228 = sadd.s32 %s227, 1
      %p231 = scmp.eq.s32.totalorder %s27, 1
      %p232 = scmp.ne.s32.totalorder %s227, %s229
      %p233 = scmp.eq.s32.totalorder %s27, 0
      %p234 = por %p232, %p233
      %p235 = scmp.ne.s32.totalorder %s227, %s229
      %p236 = scmp.eq.s32.totalorder %s32, 1
      %p237 = por %p235, %p236
      %p238 = scmp.ne.s32.totalorder %s229, %s230
      %p239 = scmp.eq.s32.totalorder %s32, 0
      %p240 = por %p238, %p239
      %p241 = scmp.ne.s32.totalorder %s229, %s230
      %p242 = scmp.eq.s32.totalorder %s33, 1
      %p243 = por %p241, %p242
      %p245 = scmp.ne.s32.totalorder %s230, %s244
      %p246 = scmp.eq.s32.totalorder %s33, 0
      %p247 = por %p245, %p246
      %s249 = sadd.s32 %s248, 1
      %p252 = scmp.eq.s32.totalorder %s27, 1
      %p253 = scmp.ne.s32.totalorder %s248, %s250
      %p254 = scmp.eq.s32.totalorder %s27, 0
      %p255 = por %p253, %p254
      %p256 = scmp.ne.s32.totalorder %s248, %s250
      %p257 = scmp.eq.s32.totalorder %s32, 1
      %p258 = por %p256, %p257
      %p259 = scmp.ne.s32.totalorder %s250, %s251
      %p260 = scmp.eq.s32.totalorder %s32, 0
      %p261 = por %p259, %p260
      %p262 = scmp.ne.s32.totalorder %s250, %s251
      %p263 = scmp.eq.s32.totalorder %s33, 1
      %p264 = por %p262, %p263
      %p266 = scmp.ne.s32.totalorder %s251, %s265
      %p267 = scmp.eq.s32.totalorder %s33, 0
      %p268 = por %p266, %p267
      %s270 = sadd.s32 %s269, 1
      %p273 = scmp.eq.s32.totalorder %s27, 1
      %p274 = scmp.ne.s32.totalorder %s269, %s271
      %p275 = scmp.eq.s32.totalorder %s27, 0
      %p276 = por %p274, %p275
      %p277 = scmp.ne.s32.totalorder %s269, %s271
      %p278 = scmp.eq.s32.totalorder %s32, 1
      %p279 = por %p277, %p278
      %p280 = scmp.ne.s32.totalorder %s271, %s272
      %p281 = scmp.eq.s32.totalorder %s32, 0
      %p282 = por %p280, %p281
      %p283 = scmp.ne.s32.totalorder %s271, %s272
      %p284 = scmp.eq.s32.totalorder %s33, 1
      %p285 = por %p283, %p284
      %p287 = scmp.ne.s32.totalorder %s272, %s286
      %p288 = scmp.eq.s32.totalorder %s33, 0
      %p289 = por %p287, %p288
      %s291 = sadd.s32 %s290, 1
      %p294 = scmp.eq.s32.totalorder %s27, 1
      %p295 = scmp.ne.s32.totalorder %s290, %s292
      %p296 = scmp.eq.s32.totalorder %s27, 0
      %p297 = por %p295, %p296
      %p298 = scmp.ne.s32.totalorder %s290, %s292
      %p299 = scmp.eq.s32.totalorder %s32, 1
      %p300 = por %p298, %p299
      %p301 = scmp.ne.s32.totalorder %s292, %s293
      %p302 = scmp.eq.s32.totalorder %s32, 0
      %p303 = por %p301, %p302
      %p304 = scmp.ne.s32.totalorder %s292, %s293
      %p305 = scmp.eq.s32.totalorder %s33, 1
      %p306 = por %p304, %p305
      %p308 = scmp.ne.s32.totalorder %s293, %s307
      %p309 = scmp.eq.s32.totalorder %s33, 0
      %p310 = por %p308, %p309
      %s312 = sadd.s32 %s311, 1
      %p315 = scmp.eq.s32.totalorder %s27, 1
      %p316 = scmp.ne.s32.totalorder %s311, %s313
      %p317 = scmp.eq.s32.totalorder %s27, 0
      %p318 = por %p316, %p317
      %p319 = scmp.ne.s32.totalorder %s311, %s313
      %p320 = scmp.eq.s32.totalorder %s32, 1
      %p321 = por %p319, %p320
      %p322 = scmp.ne.s32.totalorder %s313, %s314
      %p323 = scmp.eq.s32.totalorder %s32, 0
      %p324 = por %p322, %p323
      %p325 = scmp.ne.s32.totalorder %s313, %s314
      %p326 = scmp.eq.s32.totalorder %s33, 1
      %p327 = por %p325, %p326
      %p329 = scmp.ne.s32.totalorder %s314, %s328
      %p330 = scmp.eq.s32.totalorder %s33, 0
      %p331 = por %p329, %p330
      %s333 = sadd.s32 %s332, 1
      %p336 = scmp.eq.s32.totalorder %s27, 1
      %p337 = scmp.ne.s32.totalorder %s332, %s334
      %p338 = scmp.eq.s32.totalorder %s27, 0
      %p339 = por %p337, %p338
      %p340 = scmp.ne.s32.totalorder %s332, %s334
      %p341 = scmp.eq.s32.totalorder %s32, 1
      %p342 = por %p340, %p341
      %p343 = scmp.ne.s32.totalorder %s334, %s335
      %p344 = scmp.eq.s32.totalorder %s32, 0
      %p345 = por %p343, %p344
      %p346 = scmp.ne.s32.totalorder %s334, %s335
      %p347 = scmp.eq.s32.totalorder %s33, 1
      %p348 = por %p346, %p347
      %p350 = scmp.ne.s32.totalorder %s335, %s349
      %p351 = scmp.eq.s32.totalorder %s33, 0
      %p352 = por %p350, %p351
      %s354 = sadd.s32 %s353, 1
      %p357 = scmp.eq.s32.totalorder %s27, 1
      %p358 = scmp.ne.s32.totalorder %s353, %s355
      %p359 = scmp.eq.s32.totalorder %s27, 0
      %p360 = por %p358, %p359
      %p361 = scmp.ne.s32.totalorder %s353, %s355
      %p362 = scmp.eq.s32.totalorder %s32, 1
      %p363 = por %p361, %p362
      %p364 = scmp.ne.s32.totalorder %s355, %s356
      %p365 = scmp.eq.s32.totalorder %s32, 0
      %p366 = por %p364, %p365
      %p367 = scmp.ne.s32.totalorder %s355, %s356
      %p368 = scmp.eq.s32.totalorder %s33, 1
      %p369 = por %p367, %p368
      %p371 = scmp.ne.s32.totalorder %s356, %s370
      %p372 = scmp.eq.s32.totalorder %s33, 0
      %p373 = por %p371, %p372
      %s375 = sadd.s32 %s374, 1
      %p378 = scmp.eq.s32.totalorder %s27, 1
      %p379 = scmp.ne.s32.totalorder %s374, %s376
      %p380 = scmp.eq.s32.totalorder %s27, 0
      %p381 = por %p379, %p380
      %p382 = scmp.ne.s32.totalorder %s374, %s376
      %p383 = scmp.eq.s32.totalorder %s32, 1
      %p384 = por %p382, %p383
      %p385 = scmp.ne.s32.totalorder %s376, %s377
      %p386 = scmp.eq.s32.totalorder %s32, 0
      %p387 = por %p385, %p386
      %p388 = scmp.ne.s32.totalorder %s376, %s377
      %p389 = scmp.eq.s32.totalorder %s33, 1
      %p390 = por %p388, %p389
      %p392 = scmp.ne.s32.totalorder %s377, %s391
      %p393 = scmp.eq.s32.totalorder %s33, 0
      %p394 = por %p392, %p393
      %s396 = sadd.s32 %s395, 1
      %p399 = scmp.eq.s32.totalorder %s27, 1
      %p400 = scmp.ne.s32.totalorder %s395, %s397
      %p401 = scmp.eq.s32.totalorder %s27, 0
      %p402 = por %p400, %p401
      %p403 = scmp.ne.s32.totalorder %s395, %s397
      %p404 = scmp.eq.s32.totalorder %s32, 1
      %p405 = por %p403, %p404
      %p406 = scmp.ne.s32.totalorder %s397, %s398
      %p407 = scmp.eq.s32.totalorder %s32, 0
      %p408 = por %p406, %p407
      %p409 = scmp.ne.s32.totalorder %s397, %s398
      %p410 = scmp.eq.s32.totalorder %s33, 1
      %p411 = por %p409, %p410
      %p413 = scmp.ne.s32.totalorder %s398, %s412
      %p414 = scmp.eq.s32.totalorder %s33, 0
      %p415 = por %p413, %p414
      %s417 = sadd.s32 %s416, 1
      %p420 = scmp.eq.s32.totalorder %s27, 1
      %p421 = scmp.ne.s32.totalorder %s416, %s418
      %p422 = scmp.eq.s32.totalorder %s27, 0
      %p423 = por %p421, %p422
      %p424 = scmp.ne.s32.totalorder %s416, %s418
      %p425 = scmp.eq.s32.totalorder %s32, 1
      %p426 = por %p424, %p425
      %p427 = scmp.ne.s32.totalorder %s418, %s419
      %p428 = scmp.eq.s32.totalorder %s32, 0
      %p429 = por %p427, %p428
      %p430 = scmp.ne.s32.totalorder %s418, %s419
      %p431 = scmp.eq.s32.totalorder %s33, 1
      %p432 = por %p430, %p431
      %p434 = scmp.ne.s32.totalorder %s419, %s433
      %p435 = scmp.eq.s32.totalorder %s33, 0
      %p436 = por %p434, %p435
      %s437 = ssub.s32 %s34, %s46
      %s438 = ssub.s32 %s35, %s42
      %s439 = sor.u32 %s437, %s438
      %p440 = scmp.eq.s32.totalorder %s439, 0
      %s442 = sadd.s32 %s441, 1
      %s443 = scalar_select %p440, %s441, %s442
      %p446 = pneg %p440
      %p447 = scmp.eq.s32.totalorder %s27, 1
      %p448 = por %p446, %p447
      %p449 = scmp.ne.s32.totalorder %s441, %s444
      %p450 = scmp.eq.s32.totalorder %s27, 0
      %p451 = por %p449, %p450
      %p452 = scmp.ne.s32.totalorder %s441, %s444
      %p453 = scmp.eq.s32.totalorder %s32, 1
      %p454 = por %p452, %p453
      %p455 = scmp.ne.s32.totalorder %s444, %s445
      %p456 = scmp.eq.s32.totalorder %s32, 0
      %p457 = por %p455, %p456
      %p458 = scmp.ne.s32.totalorder %s444, %s445
      %p459 = scmp.eq.s32.totalorder %s33, 1
      %p460 = por %p458, %p459
      %p462 = scmp.ne.s32.totalorder %s445, %s461
      %p463 = scmp.eq.s32.totalorder %s33, 0
      %p464 = por %p462, %p463
      %p465 = scmp.le.s32.totalorder 1, %s27
      %p466 = scmp.lt.s32.totalorder %s27, 3
      %p467 = pnand %p465, %p466
      %p468 = pneg %p467
      // Predicated region
      $region9: #{tpu_custom_call.1} parent=5 // pred_check
        _
      $region10: #{tpu_custom_call.1} parent=5 // pred_check_branch
        %470 = sbr.rel (%p467) target = $region12
      $region11: #{tpu_custom_call.1} parent=5 // pred_region
        %s471 = ssub.s32 %s27, 1
        // Predicated region
        $region13: #{tpu_custom_call.1} parent=11 // pred_check
          %p472 = pneg %p114
        $region14: #{tpu_custom_call.1} parent=11 // pred_check_branch
          %474 = sbr.rel (%p472) target = $region16
        $region15: #{tpu_custom_call.1} parent=11 // pred_region
          _
        $region16: #{tpu_custom_call.1} parent=11 // pred_fallthru
          _
        // Predicated region
        $region17: #{tpu_custom_call.1} parent=11 // pred_check
          %p475 = pneg %p135
        $region18: #{tpu_custom_call.1} parent=11 // pred_check_branch
          %477 = sbr.rel (%p475) target = $region20
        $region19: #{tpu_custom_call.1} parent=11 // pred_region
          _
        $region20: #{tpu_custom_call.1} parent=11 // pred_fallthru
          _
        // Predicated region
        $region21: #{tpu_custom_call.1} parent=11 // pred_check
          %p478 = pneg %p156
        $region22: #{tpu_custom_call.1} parent=11 // pred_check_branch
          %480 = sbr.rel (%p478) target = $region24
        $region23: #{tpu_custom_call.1} parent=11 // pred_region
          _
        $region24: #{tpu_custom_call.1} parent=11 // pred_fallthru
          _
        // Predicated region
        $region25: #{tpu_custom_call.1} parent=11 // pred_check
          %p481 = pneg %p177
        $region26: #{tpu_custom_call.1} parent=11 // pred_check_branch
          %483 = sbr.rel (%p481) target = $region28
        $region27: #{tpu_custom_call.1} parent=11 // pred_region
          _
        $region28: #{tpu_custom_call.1} parent=11 // pred_fallthru
          _
        // Predicated region
        $region29: #{tpu_custom_call.1} parent=11 // pred_check
          %p484 = pneg %p198
        $region30: #{tpu_custom_call.1} parent=11 // pred_check_branch
          %486 = sbr.rel (%p484) target = $region32
        $region31: #{tpu_custom_call.1} parent=11 // pred_region
          _
        $region32: #{tpu_custom_call.1} parent=11 // pred_fallthru
          _
        // Predicated region
        $region33: #{tpu_custom_call.1} parent=11 // pred_check
          %p487 = pneg %p219
        $region34: #{tpu_custom_call.1} parent=11 // pred_check_branch
          %489 = sbr.rel (%p487) target = $region36
        $region35: #{tpu_custom_call.1} parent=11 // pred_region
          _
        $region36: #{tpu_custom_call.1} parent=11 // pred_fallthru
          _
        // Predicated region
        $region37: #{tpu_custom_call.1} parent=11 // pred_check
          %p490 = pneg %p240
        $region38: #{tpu_custom_call.1} parent=11 // pred_check_branch
          %492 = sbr.rel (%p490) target = $region40
        $region39: #{tpu_custom_call.1} parent=11 // pred_region
          _
        $region40: #{tpu_custom_call.1} parent=11 // pred_fallthru
          _
        // Predicated region
        $region41: #{tpu_custom_call.1} parent=11 // pred_check
          %p493 = pneg %p261
        $region42: #{tpu_custom_call.1} parent=11 // pred_check_branch
          %495 = sbr.rel (%p493) target = $region44
        $region43: #{tpu_custom_call.1} parent=11 // pred_region
          _
        $region44: #{tpu_custom_call.1} parent=11 // pred_fallthru
          _
        // Predicated region
        $region45: #{tpu_custom_call.1} parent=11 // pred_check
          %p496 = pneg %p282
        $region46: #{tpu_custom_call.1} parent=11 // pred_check_branch
          %498 = sbr.rel (%p496) target = $region48
        $region47: #{tpu_custom_call.1} parent=11 // pred_region
          _
        $region48: #{tpu_custom_call.1} parent=11 // pred_fallthru
          _
        // Predicated region
        $region49: #{tpu_custom_call.1} parent=11 // pred_check
          %p499 = pneg %p303
        $region50: #{tpu_custom_call.1} parent=11 // pred_check_branch
          %501 = sbr.rel (%p499) target = $region52
        $region51: #{tpu_custom_call.1} parent=11 // pred_region
          _
        $region52: #{tpu_custom_call.1} parent=11 // pred_fallthru
          _
        // Predicated region
        $region53: #{tpu_custom_call.1} parent=11 // pred_check
          %p502 = pneg %p324
        $region54: #{tpu_custom_call.1} parent=11 // pred_check_branch
          %504 = sbr.rel (%p502) target = $region56
        $region55: #{tpu_custom_call.1} parent=11 // pred_region
          _
        $region56: #{tpu_custom_call.1} parent=11 // pred_fallthru
          _
        // Predicated region
        $region57: #{tpu_custom_call.1} parent=11 // pred_check
          %p505 = pneg %p345
        $region58: #{tpu_custom_call.1} parent=11 // pred_check_branch
          %507 = sbr.rel (%p505) target = $region60
        $region59: #{tpu_custom_call.1} parent=11 // pred_region
          _
        $region60: #{tpu_custom_call.1} parent=11 // pred_fallthru
          _
        // Predicated region
        $region61: #{tpu_custom_call.1} parent=11 // pred_check
          %p508 = pneg %p366
        $region62: #{tpu_custom_call.1} parent=11 // pred_check_branch
          %510 = sbr.rel (%p508) target = $region64
        $region63: #{tpu_custom_call.1} parent=11 // pred_region
          _
        $region64: #{tpu_custom_call.1} parent=11 // pred_fallthru
          _
        // Predicated region
        $region65: #{tpu_custom_call.1} parent=11 // pred_check
          %p511 = pneg %p387
        $region66: #{tpu_custom_call.1} parent=11 // pred_check_branch
          %513 = sbr.rel (%p511) target = $region68
        $region67: #{tpu_custom_call.1} parent=11 // pred_region
          _
        $region68: #{tpu_custom_call.1} parent=11 // pred_fallthru
          _
        // Predicated region
        $region69: #{tpu_custom_call.1} parent=11 // pred_check
          %p514 = pneg %p408
        $region70: #{tpu_custom_call.1} parent=11 // pred_check_branch
          %516 = sbr.rel (%p514) target = $region72
        $region71: #{tpu_custom_call.1} parent=11 // pred_region
          _
        $region72: #{tpu_custom_call.1} parent=11 // pred_fallthru
          _
        // Predicated region
        $region73: #{tpu_custom_call.1} parent=11 // pred_check
          %p517 = pneg %p429
        $region74: #{tpu_custom_call.1} parent=11 // pred_check_branch
          %519 = sbr.rel (%p517) target = $region76
        $region75: #{tpu_custom_call.1} parent=11 // pred_region
          _
        $region76: #{tpu_custom_call.1} parent=11 // pred_fallthru
          _
      $region12: #{tpu_custom_call.1} parent=5 // pred_fallthru
        _
      %p520 = scmp.lt.s32.totalorder %s27, 2
      // Predicated region
      $region77: #{tpu_custom_call.1} parent=5 // pred_check
        %p521 = pneg %p520
      $region78: #{tpu_custom_call.1} parent=5 // pred_check_branch
        %523 = sbr.rel (%p521) target = $region80
      $region79: #{tpu_custom_call.1} parent=5 // pred_region
        // Predicated region
        $region81: #{tpu_custom_call.1} parent=79 // pred_check
          %p524 = pneg %p61
        $region82: #{tpu_custom_call.1} parent=79 // pred_check_branch
          %526 = sbr.rel (%p524) target = $region84
        $region83: #{tpu_custom_call.1} parent=79 // pred_region
          %p527 = scmp.lt.s32.totalorder %s34, 1
          %s528 = scalar_select %p527, %s34, 1
          %p529 = scmp.lt.s32.totalorder %s35, 0
          %s530 = scalar_select %p529, %s35, 0
          %s531 = sadd.s32 %s530, %s528
          %s532 = smul.addr %s531, 8
          %s533 = scalar_lea.vmem %s0, %s532
        $region84: #{tpu_custom_call.1} parent=79 // pred_fallthru
          _
        // Predicated region
        $region85: #{tpu_custom_call.1} parent=79 // pred_check
          %p534 = pneg %p87
        $region86: #{tpu_custom_call.1} parent=79 // pred_check_branch
          %536 = sbr.rel (%p534) target = $region88
        $region87: #{tpu_custom_call.1} parent=79 // pred_region
          %p537 = scmp.lt.s32.totalorder %s34, 1
          %s538 = scalar_select %p537, %s34, 1
          %s539 = smul.addr %s538, 8
          %s540 = scalar_lea.vmem %s1, %s539
        $region88: #{tpu_custom_call.1} parent=79 // pred_fallthru
          _
      $region80: #{tpu_custom_call.1} parent=5 // pred_fallthru
        _
      %p541 = scmp.le.s32.totalorder 1, %s27
      %p542 = scmp.lt.s32.totalorder %s27, 3
      %p543 = pnand %p541, %p542
      %p544 = pneg %p543
      // Predicated region
      $region89: #{tpu_custom_call.1} parent=5 // pred_check
        _
      $region90: #{tpu_custom_call.1} parent=5 // pred_check_branch
        %546 = sbr.rel (%p543) target = $region92
      $region91: #{tpu_custom_call.1} parent=5 // pred_region
        %s547 = ssub.s32 %s27, 1
        %p548 = scmp.lt.s32.totalorder %s36, 1
        %s549 = scalar_select %p548, %s36, 1
        %p550 = scmp.lt.s32.totalorder %s37, 0
        %s551 = scalar_select %p550, %s37, 0
        %s552 = sadd.s32 %s551, %s549
        %s553 = smul.addr %s552, 8
        %s554 = scalar_lea.vmem %s0, %s553
        %p555 = pneg %p67
        %p556 = pneg %p64
        %p557 = scmp.lt.s32.totalorder %s36, 1
        %s558 = scalar_select %p557, %s36, 1
        %s559 = smul.addr %s558, 8
        %s560 = scalar_lea.vmem %s1, %s559
        %p561 = pneg %p93
        %p562 = pneg %p90
        %p563 = pneg %p114
        %p564 = pneg %p111
        %p565 = pneg %p135
        %p566 = pneg %p132
        %p567 = pneg %p156
        %p568 = pneg %p153
        %p569 = pneg %p177
        %p570 = pneg %p174
        %p571 = pneg %p198
        %p572 = pneg %p195
        %p573 = pneg %p219
        %p574 = pneg %p216
        %p575 = pneg %p240
        %p576 = pneg %p237
        %p577 = pneg %p261
        %p578 = pneg %p258
        %p579 = pneg %p282
        %p580 = pneg %p279
        %p581 = pneg %p303
        %p582 = pneg %p300
        %p583 = pneg %p324
        %p584 = pneg %p321
        %p585 = pneg %p345
        %p586 = pneg %p342
        %p587 = pneg %p366
        %p588 = pneg %p363
        %p589 = pneg %p387
        %p590 = pneg %p384
        %p591 = pneg %p408
        %p592 = pneg %p405
        %p593 = pneg %p429
        %p594 = pneg %p426
        %p595 = pneg %p457
        %p596 = pneg %p454
        %s597 = sand.u32 %s444, 1
        %s598 = scalar_lea.sflag [#allocation7], %s597
        %s599 = sand.u32 %s444, 1
        %s600 = smul.addr %s599, 8
        %s601 = scalar_lea.vmem [#allocation6], %s600
        %p602 = scmp.lt.s32.totalorder %s36, 1
        %s603 = scalar_select %p602, %s36, 1
        %p604 = scmp.lt.s32.totalorder %s37, 0
        %s605 = scalar_select %p604, %s37, 0
        %s606 = sadd.s32 %s605, %s603
        %s607 = smul.addr %s606, 8
        %s608 = scalar_lea.vmem %s0, %s607
        %p609 = scmp.lt.s32.totalorder %s36, 1
        %s610 = scalar_select %p609, %s36, 1
        %s611 = smul.addr %s610, 8
        %s612 = scalar_lea.vmem %s1, %s611
        %v613 = vld [vmem:[%s2] sm:$0x1]
        %v614 = vld [vmem:[%s3] sm:$0x1]
        %v615 = vld [vmem:[%s4] sm:$0x1]
        %v616 = vld [vmem:[%s5] sm:$0x1]
        %p617 = scmp.eq.s32.totalorder %s37, 0
        // Predicated region
        $region93: #{tpu_custom_call.1} parent=91 // pred_check
          %p618 = pneg %p617
        $region94: #{tpu_custom_call.1} parent=91 // pred_check_branch
          %620 = sbr.rel (%p618) target = $region96
        $region95: #{tpu_custom_call.1} parent=91 // pred_region
          %v621 = vld [vmem:[%s612] sm:$0xff]
          %vm622 = vcmask 261120
          %v623 = vsel %vm622, %v621, 0.0
          %624 = vadd.xlane.f32.xlu0 %v623
          %v625 = vpop.xlane.xlu0 %624
          %v626 = vrcp.pop 32.0
          %v627 = vmul.f32 %v625, %v626
          %v628 = vsub.f32 %v621, %v627
          %v629 = vmul.f32 %v628, %v628
          %v630 = vsel %vm622, %v629, 0.0
          %631 = vadd.xlane.f32.xlu0 %v630
          %v632 = vpop.xlane.xlu0 %631
          %v633 = vmul.f32 %v632, %v626
          %v634 = vadd.f32 %v633, 1e-05
          %v635 = vrsqrt.pop %v634
          %v636 = vmul.f32 %v628, %v635
          %v638 = vlaneseq
          %v639 = vshrl.u32 %v638, 7
          %v640 = vsub.s32 0, %v639
          %v641 = vrot.slane %v613, %v640
          %v643 = vmul.f32 %v636, %v641
          %v645 = vlaneseq
          %v646 = vshrl.u32 %v645, 7
          %v647 = vsub.s32 0, %v646
          %v648 = vrot.slane %v614, %v647
          %v650 = vadd.f32 %v643, %v648
          %v651 = vsel %vm622, %v650, 0.0
          %652 = vadd.xlane.f32.xlu0 %v651
          %v653 = vpop.xlane.xlu0 %652
          %v654 = vmul.f32 %v653, %v626
          %v655 = vsub.f32 %v650, %v654
          %v656 = vmul.f32 %v655, %v655
          %v657 = vsel %vm622, %v656, 0.0
          %658 = vadd.xlane.f32.xlu0 %v657
          %v659 = vpop.xlane.xlu0 %658
          %v660 = vmul.f32 %v659, %v626
          %v661 = vadd.f32 %v660, 1e-05
          %v662 = vrsqrt.pop %v661
          %v663 = vmul.f32 %v655, %v662
          %v665 = vlaneseq
          %v666 = vshrl.u32 %v665, 7
          %v667 = vsub.s32 0, %v666
          %v668 = vrot.slane %v615, %v667
          %v670 = vmul.f32 %v663, %v668
          %v672 = vlaneseq
          %v673 = vshrl.u32 %v672, 7
          %v674 = vsub.s32 0, %v673
          %v675 = vrot.slane %v616, %v674
          %v677 = vadd.f32 %v670, %v675
          %v678 = vld [vmem:[%s8] sm:$0xff]
          %v679 = vld [vmem:[%s8 + $0x8] sm:$0xff]
          %v680 = vld [vmem:[%s8 + $0x10] sm:$0xff]
          %v681 = vld [vmem:[%s8 + $0x18] sm:$0xff]
          %v682 = vld [vmem:[%s9] sm:$0x1]
          %v684 = vlaneseq
          %v685 = vshrl.u32 %v684, 7
          %v686 = vsub.s32 0, %v685
          %v687 = vrot.slane %v682, %v686
          %v690 = vsel %vm622, %v677, 0
          %692 = vmatprep.subr.mxu0 0.0
          %693 = vmatpush1.msra.mxu0 %v678
          %694 = vmatprep.subr.mxu0 0.0
          %695 = vmatpush1.msra.mxu0 %v679
          %696 = vmatprep.subr.mxu0 0.0
          %697 = vmatpush1.msra.mxu0 %v680
          %698 = vmatprep.subr.mxu0 0.0
          %699 = vmatpush1.msra.mxu0 %v681
          %700 = vmatprep.subr.mxu0 0.0
          %701 = vmatpush1.msra.mxu0 0.0
          %702 = vmatprep.subr.mxu0 0.0
          %703 = vmatpush1.msra.mxu0 0.0
          %704 = vmatprep.subr.mxu0 0.0
          %705 = vmatpush1.msra.mxu0 0.0
          %706 = vmatprep.subr.mxu0 0.0
          %707 = vmatpush1.msra.mxu0 0.0
          %708 = vmatprep.subr.mxu0 0.0
          %709 = vmatpush1.msra.mxu0 0.0
          %710 = vmatprep.subr.mxu0 0.0
          %711 = vmatpush1.msra.mxu0 0.0
          %712 = vmatprep.subr.mxu0 0.0
          %713 = vmatpush1.msra.mxu0 0.0
          %714 = vmatprep.subr.mxu0 0.0
          %715 = vmatpush1.msra.mxu0 0.0
          %716 = vmatprep.subr.mxu0 0.0
          %717 = vmatpush1.msra.mxu0 0.0
          %718 = vmatprep.subr.mxu0 0.0
          %719 = vmatpush1.msra.mxu0 0.0
          %720 = vmatprep.subr.mxu0 0.0
          %721 = vmatpush1.msra.mxu0 0.0
          %722 = vmatprep.subr.mxu0 0.0
          %723 = vmatpush1.msra.mxu0 0.0
          %724 = vmatprep.subr.mxu0 0.0
          %725 = vmatpush1.msra.mxu0 0.0
          %726 = vmatprep.subr.mxu0 0.0
          %727 = vmatpush1.msra.mxu0 0.0
          %728 = vmatprep.subr.mxu0 0.0
          %729 = vmatpush1.msra.mxu0 0.0
          %730 = vmatprep.subr.mxu0 0.0
          %731 = vmatpush1.msra.mxu0 0.0
          %732 = vmatprep.subr.mxu0 0.0
          %733 = vmatpush1.msra.mxu0 0.0
          %734 = vmatprep.subr.mxu0 0.0
          %735 = vmatpush1.msra.mxu0 0.0
          %736 = vmatprep.subr.mxu0 0.0
          %737 = vmatpush1.msra.mxu0 0.0
          %738 = vmatprep.subr.mxu0 0.0
          %739 = vmatpush1.msra.mxu0 0.0
          %740 = vmatprep.subr.mxu0 0.0
          %741 = vmatpush1.msra.mxu0 0.0
          %742 = vmatprep.subr.mxu0 0.0
          %743 = vmatpush1.msra.mxu0 0.0
          %744 = vmatprep.subr.mxu0 0.0
          %745 = vmatpush1.msra.mxu0 0.0
          %746 = vmatprep.subr.mxu0 0.0
          %747 = vmatpush1.msra.mxu0 0.0
          %748 = vmatprep.subr.mxu0 0.0
          %749 = vmatpush1.msra.mxu0 0.0
          %750 = vmatprep.subr.mxu0 0.0
          %751 = vmatpush1.msra.mxu0 0.0
          %752 = vmatprep.subr.mxu0 0.0
          %753 = vmatpush1.msra.mxu0 0.0
          %754 = vmatprep.subr.mxu0 0.0
          %755 = vmatpush1.msra.mxu0 0.0
          %756 = vmatprep.mubr.f32.mxu0 0.0
          %757 = vmatmul.mubr.f32.gmra.mrb[0].mxu0 %v690
          %v758 = vpop.f32.mrb[0].mxu0
          %v759 = vadd.f32 %v687, %v758
          %v760 = vpop.f32.mrb[0].mxu0
          %761 = vdwg.mxu0
          %vm762 = vcmask 64512
          %763 = vst.msk [vmem:[#allocation2] sm:$0xff] %vm762, %v759
          %765 = vrot.lane.b32.xlu0 %v759, 96
          %v766 = vpop.permute.xlu0 %765
          %768 = vst.msk [vmem:[#allocation3] sm:$0xff] %vm762, %v766
          %769 = vrot.lane.b32.xlu0 %v759, 120
          %v770 = vpop.permute.xlu0 %769
          %s772 = scalar_lea.vmem [#allocation2], 8
          %773 = vst.msk [vmem:[%s772] sm:$0xff] %vm762, %v770
          %774 = vrot.lane.b32.xlu0 %v759, 88
          %v775 = vpop.permute.xlu0 %774
          %s777 = scalar_lea.vmem [#allocation3], 8
          %778 = vst.msk [vmem:[%s777] sm:$0xff] %vm762, %v775
          %779 = vrot.lane.b32.xlu0 %v759, 112
          %v780 = vpop.permute.xlu0 %779
          %s782 = scalar_lea.vmem [#allocation2], 16
          %783 = vst.msk [vmem:[%s782] sm:$0xff] %vm762, %v780
          %784 = vrot.lane.b32.xlu0 %v759, 80
          %v785 = vpop.permute.xlu0 %784
          %s787 = scalar_lea.vmem [#allocation3], 16
          %788 = vst.msk [vmem:[%s787] sm:$0xff] %vm762, %v785
          %789 = vrot.lane.b32.xlu0 %v759, 104
          %v790 = vpop.permute.xlu0 %789
          %s792 = scalar_lea.vmem [#allocation2], 24
          %793 = vst.msk [vmem:[%s792] sm:$0xff] %vm762, %v790
          %794 = vrot.lane.b32.xlu0 %v759, 72
          %v795 = vpop.permute.xlu0 %794
          %s797 = scalar_lea.vmem [#allocation3], 24
          %798 = vst.msk [vmem:[%s797] sm:$0xff] %vm762, %v795
        $region96: #{tpu_custom_call.1} parent=91 // pred_fallthru
          _
        %v799 = vld [vmem:[%s608] sm:$0xff]
        %vm800 = vcmask 261120
        %v801 = vsel %vm800, %v799, 0.0
        %802 = vadd.xlane.f32.xlu0 %v801
        %v803 = vpop.xlane.xlu0 %802
        %v804 = vrcp.pop 32.0
        %v805 = vmul.f32 %v803, %v804
        %v806 = vsub.f32 %v799, %v805
        %v807 = vmul.f32 %v806, %v806
        %v808 = vsel %vm800, %v807, 0.0
        %809 = vadd.xlane.f32.xlu0 %v808
        %v810 = vpop.xlane.xlu0 %809
        %v811 = vmul.f32 %v810, %v804
        %v812 = vadd.f32 %v811, 1e-05
        %v813 = vrsqrt.pop %v812
        %v814 = vmul.f32 %v806, %v813
        %v816 = vlaneseq
        %v817 = vshrl.u32 %v816, 7
        %v818 = vsub.s32 0, %v817
        %v819 = vrot.slane %v613, %v818
        %v821 = vmul.f32 %v814, %v819
        %v823 = vlaneseq
        %v824 = vshrl.u32 %v823, 7
        %v825 = vsub.s32 0, %v824
        %v826 = vrot.slane %v614, %v825
        %v828 = vadd.f32 %v821, %v826
        %v829 = vsel %vm800, %v828, 0.0
        %830 = vadd.xlane.f32.xlu0 %v829
        %v831 = vpop.xlane.xlu0 %830
        %v832 = vmul.f32 %v831, %v804
        %v833 = vsub.f32 %v828, %v832
        %v834 = vmul.f32 %v833, %v833
        %v835 = vsel %vm800, %v834, 0.0
        %836 = vadd.xlane.f32.xlu0 %v835
        %v837 = vpop.xlane.xlu0 %836
        %v838 = vmul.f32 %v837, %v804
        %v839 = vadd.f32 %v838, 1e-05
        %v840 = vrsqrt.pop %v839
        %v841 = vmul.f32 %v833, %v840
        %v843 = vlaneseq
        %v844 = vshrl.u32 %v843, 7
        %v845 = vsub.s32 0, %v844
        %v846 = vrot.slane %v615, %v845
        %v848 = vmul.f32 %v841, %v846
        %v850 = vlaneseq
        %v851 = vshrl.u32 %v850, 7
        %v852 = vsub.s32 0, %v851
        %v853 = vrot.slane %v616, %v852
        %v855 = vadd.f32 %v848, %v853
        %v856 = vld [vmem:[%s6] sm:$0xff]
        %v857 = vld [vmem:[%s6 + $0x8] sm:$0xff]
        %v858 = vld [vmem:[%s6 + $0x10] sm:$0xff]
        %v859 = vld [vmem:[%s6 + $0x18] sm:$0xff]
        %v860 = vld [vmem:[%s7] sm:$0x1]
        %v862 = vlaneseq
        %v863 = vshrl.u32 %v862, 7
        %v864 = vsub.s32 0, %v863
        %v865 = vrot.slane %v860, %v864
        %v868 = vsel %vm800, %v855, 0
        %870 = vmatprep.subr.mxu0 0.0
        %871 = vmatpush1.msra.mxu0 %v856
        %872 = vmatprep.subr.mxu0 0.0
        %873 = vmatpush1.msra.mxu0 %v857
        %874 = vmatprep.subr.mxu0 0.0
        %875 = vmatpush1.msra.mxu0 %v858
        %876 = vmatprep.subr.mxu0 0.0
        %877 = vmatpush1.msra.mxu0 %v859
        %878 = vmatprep.subr.mxu0 0.0
        %879 = vmatpush1.msra.mxu0 0.0
        %880 = vmatprep.subr.mxu0 0.0
        %881 = vmatpush1.msra.mxu0 0.0
        %882 = vmatprep.subr.mxu0 0.0
        %883 = vmatpush1.msra.mxu0 0.0
        %884 = vmatprep.subr.mxu0 0.0
        %885 = vmatpush1.msra.mxu0 0.0
        %886 = vmatprep.subr.mxu0 0.0
        %887 = vmatpush1.msra.mxu0 0.0
        %888 = vmatprep.subr.mxu0 0.0
        %889 = vmatpush1.msra.mxu0 0.0
        %890 = vmatprep.subr.mxu0 0.0
        %891 = vmatpush1.msra.mxu0 0.0
        %892 = vmatprep.subr.mxu0 0.0
        %893 = vmatpush1.msra.mxu0 0.0
        %894 = vmatprep.subr.mxu0 0.0
        %895 = vmatpush1.msra.mxu0 0.0
        %896 = vmatprep.subr.mxu0 0.0
        %897 = vmatpush1.msra.mxu0 0.0
        %898 = vmatprep.subr.mxu0 0.0
        %899 = vmatpush1.msra.mxu0 0.0
        %900 = vmatprep.subr.mxu0 0.0
        %901 = vmatpush1.msra.mxu0 0.0
        %902 = vmatprep.subr.mxu0 0.0
        %903 = vmatpush1.msra.mxu0 0.0
        %904 = vmatprep.subr.mxu0 0.0
        %905 = vmatpush1.msra.mxu0 0.0
        %906 = vmatprep.subr.mxu0 0.0
        %907 = vmatpush1.msra.mxu0 0.0
        %908 = vmatprep.subr.mxu0 0.0
        %909 = vmatpush1.msra.mxu0 0.0
        %910 = vmatprep.subr.mxu0 0.0
        %911 = vmatpush1.msra.mxu0 0.0
        %912 = vmatprep.subr.mxu0 0.0
        %913 = vmatpush1.msra.mxu0 0.0
        %914 = vmatprep.subr.mxu0 0.0
        %915 = vmatpush1.msra.mxu0 0.0
        %916 = vmatprep.subr.mxu0 0.0
        %917 = vmatpush1.msra.mxu0 0.0
        %918 = vmatprep.subr.mxu0 0.0
        %919 = vmatpush1.msra.mxu0 0.0
        %920 = vmatprep.subr.mxu0 0.0
        %921 = vmatpush1.msra.mxu0 0.0
        %922 = vmatprep.subr.mxu0 0.0
        %923 = vmatpush1.msra.mxu0 0.0
        %924 = vmatprep.subr.mxu0 0.0
        %925 = vmatpush1.msra.mxu0 0.0
        %926 = vmatprep.subr.mxu0 0.0
        %927 = vmatpush1.msra.mxu0 0.0
        %928 = vmatprep.subr.mxu0 0.0
        %929 = vmatpush1.msra.mxu0 0.0
        %930 = vmatprep.subr.mxu0 0.0
        %931 = vmatpush1.msra.mxu0 0.0
        %932 = vmatprep.subr.mxu0 0.0
        %933 = vmatpush1.msra.mxu0 0.0
        %934 = vmatprep.mubr.f32.mxu0 0.0
        %935 = vmatmul.mubr.f32.gmra.mrb[0].mxu0 %v868
        %v936 = vpop.f32.mrb[0].mxu0
        %v937 = vadd.f32 %v865, %v936
        %v938 = vpop.f32.mrb[0].mxu0
        %939 = vdwg.mxu0
        %v940 = vmul.f32 %v937, 0.35355338
        %vm941 = vcmask 64512
        %942 = vst.msk [vmem:[#allocation4] sm:$0xff] %vm941, %v940
        %944 = vrot.lane.b32.xlu0 %v940, 120
        %v945 = vpop.permute.xlu0 %944
        %s947 = scalar_lea.vmem [#allocation4], 8
        %948 = vst.msk [vmem:[%s947] sm:$0xff] %vm941, %v945
        %949 = vrot.lane.b32.xlu0 %v940, 112
        %v950 = vpop.permute.xlu0 %949
        %s952 = scalar_lea.vmem [#allocation4], 16
        %953 = vst.msk [vmem:[%s952] sm:$0xff] %vm941, %v950
        %954 = vrot.lane.b32.xlu0 %v940, 104
        %v955 = vpop.permute.xlu0 %954
        %s957 = scalar_lea.vmem [#allocation4], 24
        %958 = vst.msk [vmem:[%s957] sm:$0xff] %vm941, %v955
        %v959 = vld [vmem:[#allocation4] sm:$0xff]
        %v960 = vld [vmem:[#allocation4 + $0x8] sm:$0xff]
        %v961 = vld [vmem:[#allocation4 + $0x10] sm:$0xff]
        %v962 = vld [vmem:[#allocation4 + $0x18] sm:$0xff]
        %v963 = vld [vmem:[#allocation2] sm:$0xff]
        %v964 = vld [vmem:[#allocation2 + $0x8] sm:$0xff]
        %v965 = vld [vmem:[#allocation2 + $0x10] sm:$0xff]
        %v966 = vld [vmem:[#allocation2 + $0x18] sm:$0xff]
        %v968 = vsel %vm941, %v959, 0
        %v971 = vsel %vm941, %v963, 0
        %973 = vmatprep.subr.mxu0 0.0
        %974 = vmatpush1.xpose.msra.mxu0 %v971
        %975 = vmatprep.subr.mxu0 0.0
        %976 = vmatpush1.xpose.msra.mxu0 0.0
        %977 = vmatprep.subr.mxu0 0.0
        %978 = vmatpush1.xpose.msra.mxu0 0.0
        %979 = vmatprep.subr.mxu0 0.0
        %980 = vmatpush1.xpose.msra.mxu0 0.0
        %981 = vmatprep.subr.mxu0 0.0
        %982 = vmatpush1.xpose.msra.mxu0 0.0
        %983 = vmatprep.subr.mxu0 0.0
        %984 = vmatpush1.xpose.msra.mxu0 0.0
        %985 = vmatprep.subr.mxu0 0.0
        %986 = vmatpush1.xpose.msra.mxu0 0.0
        %987 = vmatprep.subr.mxu0 0.0
        %988 = vmatpush1.xpose.msra.mxu0 0.0
        %989 = vmatprep.subr.mxu0 0.0
        %990 = vmatpush1.xpose.msra.mxu0 0.0
        %991 = vmatprep.subr.mxu0 0.0
        %992 = vmatpush1.xpose.msra.mxu0 0.0
        %993 = vmatprep.subr.mxu0 0.0
        %994 = vmatpush1.xpose.msra.mxu0 0.0
        %995 = vmatprep.subr.mxu0 0.0
        %996 = vmatpush1.xpose.msra.mxu0 0.0
        %997 = vmatprep.subr.mxu0 0.0
        %998 = vmatpush1.xpose.msra.mxu0 0.0
        %999 = vmatprep.subr.mxu0 0.0
        %1000 = vmatpush1.xpose.msra.mxu0 0.0
        %1001 = vmatprep.subr.mxu0 0.0
        %1002 = vmatpush1.xpose.msra.mxu0 0.0
        %1003 = vmatprep.subr.mxu0 0.0
        %1004 = vmatpush1.xpose.msra.mxu0 0.0
        %1005 = vmatprep.subr.mxu0 0.0
        %1006 = vmatpush1.xpose.msra.mxu0 0.0
        %1007 = vmatprep.subr.mxu0 0.0
        %1008 = vmatpush1.xpose.msra.mxu0 0.0
        %1009 = vmatprep.subr.mxu0 0.0
        %1010 = vmatpush1.xpose.msra.mxu0 0.0
        %1011 = vmatprep.subr.mxu0 0.0
        %1012 = vmatpush1.xpose.msra.mxu0 0.0
        %1013 = vmatprep.subr.mxu0 0.0
        %1014 = vmatpush1.xpose.msra.mxu0 0.0
        %1015 = vmatprep.subr.mxu0 0.0
        %1016 = vmatpush1.xpose.msra.mxu0 0.0
        %1017 = vmatprep.subr.mxu0 0.0
        %1018 = vmatpush1.xpose.msra.mxu0 0.0
        %1019 = vmatprep.subr.mxu0 0.0
        %1020 = vmatpush1.xpose.msra.mxu0 0.0
        %1021 = vmatprep.subr.mxu0 0.0
        %1022 = vmatpush1.xpose.msra.mxu0 0.0
        %1023 = vmatprep.subr.mxu0 0.0
        %1024 = vmatpush1.xpose.msra.mxu0 0.0
        %1025 = vmatprep.subr.mxu0 0.0
        %1026 = vmatpush1.xpose.msra.mxu0 0.0
        %1027 = vmatprep.subr.mxu0 0.0
        %1028 = vmatpush1.xpose.msra.mxu0 0.0
        %1029 = vmatprep.subr.mxu0 0.0
        %1030 = vmatpush1.xpose.msra.mxu0 0.0
        %1031 = vmatprep.subr.mxu0 0.0
        %1032 = vmatpush1.xpose.msra.mxu0 0.0
        %1033 = vmatprep.subr.mxu0 0.0
        %1034 = vmatpush1.xpose.msra.mxu0 0.0
        %1035 = vmatprep.subr.mxu0 0.0
        %1036 = vmatpush1.xpose.msra.mxu0 0.0
        %1037 = vmatprep.mubr.f32.mxu0 0.0
        %1038 = vmatmul.mubr.f32.gmra.mrb[0].mxu0 %v968
        %v1039 = vpop.f32.mrb[0].mxu0
        %v1040 = vadd.f32 0.0, %v1039
        %v1041 = vpop.f32.mrb[0].mxu0
        %1042 = vdwg.mxu0
        %v1044 = vsel %vm941, %v960, 0
        %v1047 = vsel %vm941, %v964, 0
        %1049 = vmatprep.subr.mxu0 0.0
        %1050 = vmatpush1.xpose.msra.mxu0 %v1047
        %1051 = vmatprep.subr.mxu0 0.0
        %1052 = vmatpush1.xpose.msra.mxu0 0.0
        %1053 = vmatprep.subr.mxu0 0.0
        %1054 = vmatpush1.xpose.msra.mxu0 0.0
        %1055 = vmatprep.subr.mxu0 0.0
        %1056 = vmatpush1.xpose.msra.mxu0 0.0
        %1057 = vmatprep.subr.mxu0 0.0
        %1058 = vmatpush1.xpose.msra.mxu0 0.0
        %1059 = vmatprep.subr.mxu0 0.0
        %1060 = vmatpush1.xpose.msra.mxu0 0.0
        %1061 = vmatprep.subr.mxu0 0.0
        %1062 = vmatpush1.xpose.msra.mxu0 0.0
        %1063 = vmatprep.subr.mxu0 0.0
        %1064 = vmatpush1.xpose.msra.mxu0 0.0
        %1065 = vmatprep.subr.mxu0 0.0
        %1066 = vmatpush1.xpose.msra.mxu0 0.0
        %1067 = vmatprep.subr.mxu0 0.0
        %1068 = vmatpush1.xpose.msra.mxu0 0.0
        %1069 = vmatprep.subr.mxu0 0.0
        %1070 = vmatpush1.xpose.msra.mxu0 0.0
        %1071 = vmatprep.subr.mxu0 0.0
        %1072 = vmatpush1.xpose.msra.mxu0 0.0
        %1073 = vmatprep.subr.mxu0 0.0
        %1074 = vmatpush1.xpose.msra.mxu0 0.0
        %1075 = vmatprep.subr.mxu0 0.0
        %1076 = vmatpush1.xpose.msra.mxu0 0.0
        %1077 = vmatprep.subr.mxu0 0.0
        %1078 = vmatpush1.xpose.msra.mxu0 0.0
        %1079 = vmatprep.subr.mxu0 0.0
        %1080 = vmatpush1.xpose.msra.mxu0 0.0
        %1081 = vmatprep.subr.mxu0 0.0
        %1082 = vmatpush1.xpose.msra.mxu0 0.0
        %1083 = vmatprep.subr.mxu0 0.0
        %1084 = vmatpush1.xpose.msra.mxu0 0.0
        %1085 = vmatprep.subr.mxu0 0.0
        %1086 = vmatpush1.xpose.msra.mxu0 0.0
        %1087 = vmatprep.subr.mxu0 0.0
        %1088 = vmatpush1.xpose.msra.mxu0 0.0
        %1089 = vmatprep.subr.mxu0 0.0
        %1090 = vmatpush1.xpose.msra.mxu0 0.0
        %1091 = vmatprep.subr.mxu0 0.0
        %1092 = vmatpush1.xpose.msra.mxu0 0.0
        %1093 = vmatprep.subr.mxu0 0.0
        %1094 = vmatpush1.xpose.msra.mxu0 0.0
        %1095 = vmatprep.subr.mxu0 0.0
        %1096 = vmatpush1.xpose.msra.mxu0 0.0
        %1097 = vmatprep.subr.mxu0 0.0
        %1098 = vmatpush1.xpose.msra.mxu0 0.0
        %1099 = vmatprep.subr.mxu0 0.0
        %1100 = vmatpush1.xpose.msra.mxu0 0.0
        %1101 = vmatprep.subr.mxu0 0.0
        %1102 = vmatpush1.xpose.msra.mxu0 0.0
        %1103 = vmatprep.subr.mxu0 0.0
        %1104 = vmatpush1.xpose.msra.mxu0 0.0
        %1105 = vmatprep.subr.mxu0 0.0
        %1106 = vmatpush1.xpose.msra.mxu0 0.0
        %1107 = vmatprep.subr.mxu0 0.0
        %1108 = vmatpush1.xpose.msra.mxu0 0.0
        %1109 = vmatprep.subr.mxu0 0.0
        %1110 = vmatpush1.xpose.msra.mxu0 0.0
        %1111 = vmatprep.subr.mxu0 0.0
        %1112 = vmatpush1.xpose.msra.mxu0 0.0
        %1113 = vmatprep.mubr.f32.mxu0 0.0
        %1114 = vmatmul.mubr.f32.gmra.mrb[0].mxu0 %v1044
        %v1115 = vpop.f32.mrb[0].mxu0
        %v1116 = vadd.f32 0.0, %v1115
        %v1117 = vpop.f32.mrb[0].mxu0
        %1118 = vdwg.mxu0
        %v1120 = vsel %vm941, %v961, 0
        %v1123 = vsel %vm941, %v965, 0
        %1125 = vmatprep.subr.mxu0 0.0
        %1126 = vmatpush1.xpose.msra.mxu0 %v1123
        %1127 = vmatprep.subr.mxu0 0.0
        %1128 = vmatpush1.xpose.msra.mxu0 0.0
        %1129 = vmatprep.subr.mxu0 0.0
        %1130 = vmatpush1.xpose.msra.mxu0 0.0
        %1131 = vmatprep.subr.mxu0 0.0
        %1132 = vmatpush1.xpose.msra.mxu0 0.0
        %1133 = vmatprep.subr.mxu0 0.0
        %1134 = vmatpush1.xpose.msra.mxu0 0.0
        %1135 = vmatprep.subr.mxu0 0.0
        %1136 = vmatpush1.xpose.msra.mxu0 0.0
        %1137 = vmatprep.subr.mxu0 0.0
        %1138 = vmatpush1.xpose.msra.mxu0 0.0
        %1139 = vmatprep.subr.mxu0 0.0
        %1140 = vmatpush1.xpose.msra.mxu0 0.0
        %1141 = vmatprep.subr.mxu0 0.0
        %1142 = vmatpush1.xpose.msra.mxu0 0.0
        %1143 = vmatprep.subr.mxu0 0.0
        %1144 = vmatpush1.xpose.msra.mxu0 0.0
        %1145 = vmatprep.subr.mxu0 0.0
        %1146 = vmatpush1.xpose.msra.mxu0 0.0
        %1147 = vmatprep.subr.mxu0 0.0
        %1148 = vmatpush1.xpose.msra.mxu0 0.0
        %1149 = vmatprep.subr.mxu0 0.0
        %1150 = vmatpush1.xpose.msra.mxu0 0.0
        %1151 = vmatprep.subr.mxu0 0.0
        %1152 = vmatpush1.xpose.msra.mxu0 0.0
        %1153 = vmatprep.subr.mxu0 0.0
        %1154 = vmatpush1.xpose.msra.mxu0 0.0
        %1155 = vmatprep.subr.mxu0 0.0
        %1156 = vmatpush1.xpose.msra.mxu0 0.0
        %1157 = vmatprep.subr.mxu0 0.0
        %1158 = vmatpush1.xpose.msra.mxu0 0.0
        %1159 = vmatprep.subr.mxu0 0.0
        %1160 = vmatpush1.xpose.msra.mxu0 0.0
        %1161 = vmatprep.subr.mxu0 0.0
        %1162 = vmatpush1.xpose.msra.mxu0 0.0
        %1163 = vmatprep.subr.mxu0 0.0
        %1164 = vmatpush1.xpose.msra.mxu0 0.0
        %1165 = vmatprep.subr.mxu0 0.0
        %1166 = vmatpush1.xpose.msra.mxu0 0.0
        %1167 = vmatprep.subr.mxu0 0.0
        %1168 = vmatpush1.xpose.msra.mxu0 0.0
        %1169 = vmatprep.subr.mxu0 0.0
        %1170 = vmatpush1.xpose.msra.mxu0 0.0
        %1171 = vmatprep.subr.mxu0 0.0
        %1172 = vmatpush1.xpose.msra.mxu0 0.0
        %1173 = vmatprep.subr.mxu0 0.0
        %1174 = vmatpush1.xpose.msra.mxu0 0.0
        %1175 = vmatprep.subr.mxu0 0.0
        %1176 = vmatpush1.xpose.msra.mxu0 0.0
        %1177 = vmatprep.subr.mxu0 0.0
        %1178 = vmatpush1.xpose.msra.mxu0 0.0
        %1179 = vmatprep.subr.mxu0 0.0
        %1180 = vmatpush1.xpose.msra.mxu0 0.0
        %1181 = vmatprep.subr.mxu0 0.0
        %1182 = vmatpush1.xpose.msra.mxu0 0.0
        %1183 = vmatprep.subr.mxu0 0.0
        %1184 = vmatpush1.xpose.msra.mxu0 0.0
        %1185 = vmatprep.subr.mxu0 0.0
        %1186 = vmatpush1.xpose.msra.mxu0 0.0
        %1187 = vmatprep.subr.mxu0 0.0
        %1188 = vmatpush1.xpose.msra.mxu0 0.0
        %1189 = vmatprep.mubr.f32.mxu0 0.0
        %1190 = vmatmul.mubr.f32.gmra.mrb[0].mxu0 %v1120
        %v1191 = vpop.f32.mrb[0].mxu0
        %v1192 = vadd.f32 0.0, %v1191
        %v1193 = vpop.f32.mrb[0].mxu0
        %1194 = vdwg.mxu0
        %v1196 = vsel %vm941, %v962, 0
        %v1199 = vsel %vm941, %v966, 0
        %1201 = vmatprep.subr.mxu0 0.0
        %1202 = vmatpush1.xpose.msra.mxu0 %v1199
        %1203 = vmatprep.subr.mxu0 0.0
        %1204 = vmatpush1.xpose.msra.mxu0 0.0
        %1205 = vmatprep.subr.mxu0 0.0
        %1206 = vmatpush1.xpose.msra.mxu0 0.0
        %1207 = vmatprep.subr.mxu0 0.0
        %1208 = vmatpush1.xpose.msra.mxu0 0.0
        %1209 = vmatprep.subr.mxu0 0.0
        %1210 = vmatpush1.xpose.msra.mxu0 0.0
        %1211 = vmatprep.subr.mxu0 0.0
        %1212 = vmatpush1.xpose.msra.mxu0 0.0
        %1213 = vmatprep.subr.mxu0 0.0
        %1214 = vmatpush1.xpose.msra.mxu0 0.0
        %1215 = vmatprep.subr.mxu0 0.0
        %1216 = vmatpush1.xpose.msra.mxu0 0.0
        %1217 = vmatprep.subr.mxu0 0.0
        %1218 = vmatpush1.xpose.msra.mxu0 0.0
        %1219 = vmatprep.subr.mxu0 0.0
        %1220 = vmatpush1.xpose.msra.mxu0 0.0
        %1221 = vmatprep.subr.mxu0 0.0
        %1222 = vmatpush1.xpose.msra.mxu0 0.0
        %1223 = vmatprep.subr.mxu0 0.0
        %1224 = vmatpush1.xpose.msra.mxu0 0.0
        %1225 = vmatprep.subr.mxu0 0.0
        %1226 = vmatpush1.xpose.msra.mxu0 0.0
        %1227 = vmatprep.subr.mxu0 0.0
        %1228 = vmatpush1.xpose.msra.mxu0 0.0
        %1229 = vmatprep.subr.mxu0 0.0
        %1230 = vmatpush1.xpose.msra.mxu0 0.0
        %1231 = vmatprep.subr.mxu0 0.0
        %1232 = vmatpush1.xpose.msra.mxu0 0.0
        %1233 = vmatprep.subr.mxu0 0.0
        %1234 = vmatpush1.xpose.msra.mxu0 0.0
        %1235 = vmatprep.subr.mxu0 0.0
        %1236 = vmatpush1.xpose.msra.mxu0 0.0
        %1237 = vmatprep.subr.mxu0 0.0
        %1238 = vmatpush1.xpose.msra.mxu0 0.0
        %1239 = vmatprep.subr.mxu0 0.0
        %1240 = vmatpush1.xpose.msra.mxu0 0.0
        %1241 = vmatprep.subr.mxu0 0.0
        %1242 = vmatpush1.xpose.msra.mxu0 0.0
        %1243 = vmatprep.subr.mxu0 0.0
        %1244 = vmatpush1.xpose.msra.mxu0 0.0
        %1245 = vmatprep.subr.mxu0 0.0
        %1246 = vmatpush1.xpose.msra.mxu0 0.0
        %1247 = vmatprep.subr.mxu0 0.0
        %1248 = vmatpush1.xpose.msra.mxu0 0.0
        %1249 = vmatprep.subr.mxu0 0.0
        %1250 = vmatpush1.xpose.msra.mxu0 0.0
        %1251 = vmatprep.subr.mxu0 0.0
        %1252 = vmatpush1.xpose.msra.mxu0 0.0
        %1253 = vmatprep.subr.mxu0 0.0
        %1254 = vmatpush1.xpose.msra.mxu0 0.0
        %1255 = vmatprep.subr.mxu0 0.0
        %1256 = vmatpush1.xpose.msra.mxu0 0.0
        %1257 = vmatprep.subr.mxu0 0.0
        %1258 = vmatpush1.xpose.msra.mxu0 0.0
        %1259 = vmatprep.subr.mxu0 0.0
        %1260 = vmatpush1.xpose.msra.mxu0 0.0
        %1261 = vmatprep.subr.mxu0 0.0
        %1262 = vmatpush1.xpose.msra.mxu0 0.0
        %1263 = vmatprep.subr.mxu0 0.0
        %1264 = vmatpush1.xpose.msra.mxu0 0.0
        %1265 = vmatprep.mubr.f32.mxu0 0.0
        %1266 = vmatmul.mubr.f32.gmra.mrb[0].mxu0 %v1196
        %v1267 = vpop.f32.mrb[0].mxu0
        %v1268 = vadd.f32 0.0, %v1267
        %v1269 = vpop.f32.mrb[0].mxu0
        %1270 = vdwg.mxu0
        %v1271 = vsel %vm941, %v1040, -inf
        %1272 = vmax.xlane.f32.xlu0 %v1271
        %v1273 = vpop.xlane.xlu0 %1272
        %v1274 = vsel %vm941, %v1116, -inf
        %1275 = vmax.xlane.f32.xlu0 %v1274
        %v1276 = vpop.xlane.xlu0 %1275
        %v1277 = vsel %vm941, %v1192, -inf
        %1278 = vmax.xlane.f32.xlu0 %v1277
        %v1279 = vpop.xlane.xlu0 %1278
        %v1280 = vsel %vm941, %v1268, -inf
        %1281 = vmax.xlane.f32.xlu0 %v1280
        %v1282 = vpop.xlane.xlu0 %1281
        %v1283 = vsub.f32 %v1040, %v1273
        %v1284 = vsub.f32 %v1116, %v1276
        %v1285 = vsub.f32 %v1192, %v1279
        %v1286 = vsub.f32 %v1268, %v1282
        %v1287 = vmul.f32 %v1283, 1.442695
        %v1288 = vpow.pop %v1287
        %v1289 = vmul.f32 %v1284, 1.442695
        %v1290 = vpow.pop %v1289
        %v1291 = vmul.f32 %v1285, 1.442695
        %v1292 = vpow.pop %v1291
        %v1293 = vmul.f32 %v1286, 1.442695
        %v1294 = vpow.pop %v1293
        %v1295 = vsel %vm941, %v1288, 0.0
        %1296 = vadd.xlane.f32.xlu0 %v1295
        %v1297 = vpop.xlane.xlu0 %1296
        %v1298 = vsel %vm941, %v1290, 0.0
        %1299 = vadd.xlane.f32.xlu0 %v1298
        %v1300 = vpop.xlane.xlu0 %1299
        %v1301 = vsel %vm941, %v1292, 0.0
        %1302 = vadd.xlane.f32.xlu0 %v1301
        %v1303 = vpop.xlane.xlu0 %1302
        %v1304 = vsel %vm941, %v1294, 0.0
        %1305 = vadd.xlane.f32.xlu0 %v1304
        %v1306 = vpop.xlane.xlu0 %1305
        %v1307 = vrcp.pop %v1297
        %v1308 = vmul.f32 1.0, %v1307
        %v1309 = vrcp.pop %v1300
        %v1310 = vmul.f32 1.0, %v1309
        %v1311 = vrcp.pop %v1303
        %v1312 = vmul.f32 1.0, %v1311
        %v1313 = vrcp.pop %v1306
        %v1314 = vmul.f32 1.0, %v1313
        %v1315 = vmul.f32 %v1288, %v1308
        %v1316 = vmul.f32 %v1290, %v1310
        %v1317 = vmul.f32 %v1292, %v1312
        %v1318 = vmul.f32 %v1294, %v1314
        %v1319 = vld [vmem:[#allocation3] sm:$0xff]
        %v1320 = vld [vmem:[#allocation3 + $0x8] sm:$0xff]
        %v1321 = vld [vmem:[#allocation3 + $0x10] sm:$0xff]
        %v1322 = vld [vmem:[#allocation3 + $0x18] sm:$0xff]
        %v1324 = vsel %vm941, %v1315, 0
        %1326 = vmatprep.subr.mxu0 0.0
        %1327 = vmatpush1.msra.mxu0 %v1319
        %1328 = vmatprep.subr.mxu0 0.0
        %1329 = vmatpush1.msra.mxu0 0.0
        %1330 = vmatprep.subr.mxu0 0.0
        %1331 = vmatpush1.msra.mxu0 0.0
        %1332 = vmatprep.subr.mxu0 0.0
        %1333 = vmatpush1.msra.mxu0 0.0
        %1334 = vmatprep.subr.mxu0 0.0
        %1335 = vmatpush1.msra.mxu0 0.0
        %1336 = vmatprep.subr.mxu0 0.0
        %1337 = vmatpush1.msra.mxu0 0.0
        %1338 = vmatprep.subr.mxu0 0.0
        %1339 = vmatpush1.msra.mxu0 0.0
        %1340 = vmatprep.subr.mxu0 0.0
        %1341 = vmatpush1.msra.mxu0 0.0
        %1342 = vmatprep.subr.mxu0 0.0
        %1343 = vmatpush1.msra.mxu0 0.0
        %1344 = vmatprep.subr.mxu0 0.0
        %1345 = vmatpush1.msra.mxu0 0.0
        %1346 = vmatprep.subr.mxu0 0.0
        %1347 = vmatpush1.msra.mxu0 0.0
        %1348 = vmatprep.subr.mxu0 0.0
        %1349 = vmatpush1.msra.mxu0 0.0
        %1350 = vmatprep.subr.mxu0 0.0
        %1351 = vmatpush1.msra.mxu0 0.0
        %1352 = vmatprep.subr.mxu0 0.0
        %1353 = vmatpush1.msra.mxu0 0.0
        %1354 = vmatprep.subr.mxu0 0.0
        %1355 = vmatpush1.msra.mxu0 0.0
        %1356 = vmatprep.subr.mxu0 0.0
        %1357 = vmatpush1.msra.mxu0 0.0
        %1358 = vmatprep.subr.mxu0 0.0
        %1359 = vmatpush1.msra.mxu0 0.0
        %1360 = vmatprep.subr.mxu0 0.0
        %1361 = vmatpush1.msra.mxu0 0.0
        %1362 = vmatprep.subr.mxu0 0.0
        %1363 = vmatpush1.msra.mxu0 0.0
        %1364 = vmatprep.subr.mxu0 0.0
        %1365 = vmatpush1.msra.mxu0 0.0
        %1366 = vmatprep.subr.mxu0 0.0
        %1367 = vmatpush1.msra.mxu0 0.0
        %1368 = vmatprep.subr.mxu0 0.0
        %1369 = vmatpush1.msra.mxu0 0.0
        %1370 = vmatprep.subr.mxu0 0.0
        %1371 = vmatpush1.msra.mxu0 0.0
        %1372 = vmatprep.subr.mxu0 0.0
        %1373 = vmatpush1.msra.mxu0 0.0
        %1374 = vmatprep.subr.mxu0 0.0
        %1375 = vmatpush1.msra.mxu0 0.0
        %1376 = vmatprep.subr.mxu0 0.0
        %1377 = vmatpush1.msra.mxu0 0.0
        %1378 = vmatprep.subr.mxu0 0.0
        %1379 = vmatpush1.msra.mxu0 0.0
        %1380 = vmatprep.subr.mxu0 0.0
        %1381 = vmatpush1.msra.mxu0 0.0
        %1382 = vmatprep.subr.mxu0 0.0
        %1383 = vmatpush1.msra.mxu0 0.0
        %1384 = vmatprep.subr.mxu0 0.0
        %1385 = vmatpush1.msra.mxu0 0.0
        %1386 = vmatprep.subr.mxu0 0.0
        %1387 = vmatpush1.msra.mxu0 0.0
        %1388 = vmatprep.subr.mxu0 0.0
        %1389 = vmatpush1.msra.mxu0 0.0
        %1390 = vmatprep.mubr.f32.mxu0 0.0
        %1391 = vmatmul.mubr.f32.gmra.mrb[0].mxu0 %v1324
        %v1392 = vpop.f32.mrb[0].mxu0
        %v1393 = vadd.f32 0.0, %v1392
        %v1394 = vpop.f32.mrb[0].mxu0
        %1395 = vdwg.mxu0
        %v1397 = vsel %vm941, %v1316, 0
        %1399 = vmatprep.subr.mxu0 0.0
        %1400 = vmatpush1.msra.mxu0 %v1320
        %1401 = vmatprep.subr.mxu0 0.0
        %1402 = vmatpush1.msra.mxu0 0.0
        %1403 = vmatprep.subr.mxu0 0.0
        %1404 = vmatpush1.msra.mxu0 0.0
        %1405 = vmatprep.subr.mxu0 0.0
        %1406 = vmatpush1.msra.mxu0 0.0
        %1407 = vmatprep.subr.mxu0 0.0
        %1408 = vmatpush1.msra.mxu0 0.0
        %1409 = vmatprep.subr.mxu0 0.0
        %1410 = vmatpush1.msra.mxu0 0.0
        %1411 = vmatprep.subr.mxu0 0.0
        %1412 = vmatpush1.msra.mxu0 0.0
        %1413 = vmatprep.subr.mxu0 0.0
        %1414 = vmatpush1.msra.mxu0 0.0
        %1415 = vmatprep.subr.mxu0 0.0
        %1416 = vmatpush1.msra.mxu0 0.0
        %1417 = vmatprep.subr.mxu0 0.0
        %1418 = vmatpush1.msra.mxu0 0.0
        %1419 = vmatprep.subr.mxu0 0.0
        %1420 = vmatpush1.msra.mxu0 0.0
        %1421 = vmatprep.subr.mxu0 0.0
        %1422 = vmatpush1.msra.mxu0 0.0
        %1423 = vmatprep.subr.mxu0 0.0
        %1424 = vmatpush1.msra.mxu0 0.0
        %1425 = vmatprep.subr.mxu0 0.0
        %1426 = vmatpush1.msra.mxu0 0.0
        %1427 = vmatprep.subr.mxu0 0.0
        %1428 = vmatpush1.msra.mxu0 0.0
        %1429 = vmatprep.subr.mxu0 0.0
        %1430 = vmatpush1.msra.mxu0 0.0
        %1431 = vmatprep.subr.mxu0 0.0
        %1432 = vmatpush1.msra.mxu0 0.0
        %1433 = vmatprep.subr.mxu0 0.0
        %1434 = vmatpush1.msra.mxu0 0.0
        %1435 = vmatprep.subr.mxu0 0.0
        %1436 = vmatpush1.msra.mxu0 0.0
        %1437 = vmatprep.subr.mxu0 0.0
        %1438 = vmatpush1.msra.mxu0 0.0
        %1439 = vmatprep.subr.mxu0 0.0
        %1440 = vmatpush1.msra.mxu0 0.0
        %1441 = vmatprep.subr.mxu0 0.0
        %1442 = vmatpush1.msra.mxu0 0.0
        %1443 = vmatprep.subr.mxu0 0.0
        %1444 = vmatpush1.msra.mxu0 0.0
        %1445 = vmatprep.subr.mxu0 0.0
        %1446 = vmatpush1.msra.mxu0 0.0
        %1447 = vmatprep.subr.mxu0 0.0
        %1448 = vmatpush1.msra.mxu0 0.0
        %1449 = vmatprep.subr.mxu0 0.0
        %1450 = vmatpush1.msra.mxu0 0.0
        %1451 = vmatprep.subr.mxu0 0.0
        %1452 = vmatpush1.msra.mxu0 0.0
        %1453 = vmatprep.subr.mxu0 0.0
        %1454 = vmatpush1.msra.mxu0 0.0
        %1455 = vmatprep.subr.mxu0 0.0
        %1456 = vmatpush1.msra.mxu0 0.0
        %1457 = vmatprep.subr.mxu0 0.0
        %1458 = vmatpush1.msra.mxu0 0.0
        %1459 = vmatprep.subr.mxu0 0.0
        %1460 = vmatpush1.msra.mxu0 0.0
        %1461 = vmatprep.subr.mxu0 0.0
        %1462 = vmatpush1.msra.mxu0 0.0
        %1463 = vmatprep.mubr.f32.mxu0 0.0
        %1464 = vmatmul.mubr.f32.gmra.mrb[0].mxu0 %v1397
        %v1465 = vpop.f32.mrb[0].mxu0
        %v1466 = vadd.f32 0.0, %v1465
        %v1467 = vpop.f32.mrb[0].mxu0
        %1468 = vdwg.mxu0
        %v1470 = vsel %vm941, %v1317, 0
        %1472 = vmatprep.subr.mxu0 0.0
        %1473 = vmatpush1.msra.mxu0 %v1321
        %1474 = vmatprep.subr.mxu0 0.0
        %1475 = vmatpush1.msra.mxu0 0.0
        %1476 = vmatprep.subr.mxu0 0.0
        %1477 = vmatpush1.msra.mxu0 0.0
        %1478 = vmatprep.subr.mxu0 0.0
        %1479 = vmatpush1.msra.mxu0 0.0
        %1480 = vmatprep.subr.mxu0 0.0
        %1481 = vmatpush1.msra.mxu0 0.0
        %1482 = vmatprep.subr.mxu0 0.0
        %1483 = vmatpush1.msra.mxu0 0.0
        %1484 = vmatprep.subr.mxu0 0.0
        %1485 = vmatpush1.msra.mxu0 0.0
        %1486 = vmatprep.subr.mxu0 0.0
        %1487 = vmatpush1.msra.mxu0 0.0
        %1488 = vmatprep.subr.mxu0 0.0
        %1489 = vmatpush1.msra.mxu0 0.0
        %1490 = vmatprep.subr.mxu0 0.0
        %1491 = vmatpush1.msra.mxu0 0.0
        %1492 = vmatprep.subr.mxu0 0.0
        %1493 = vmatpush1.msra.mxu0 0.0
        %1494 = vmatprep.subr.mxu0 0.0
        %1495 = vmatpush1.msra.mxu0 0.0
        %1496 = vmatprep.subr.mxu0 0.0
        %1497 = vmatpush1.msra.mxu0 0.0
        %1498 = vmatprep.subr.mxu0 0.0
        %1499 = vmatpush1.msra.mxu0 0.0
        %1500 = vmatprep.subr.mxu0 0.0
        %1501 = vmatpush1.msra.mxu0 0.0
        %1502 = vmatprep.subr.mxu0 0.0
        %1503 = vmatpush1.msra.mxu0 0.0
        %1504 = vmatprep.subr.mxu0 0.0
        %1505 = vmatpush1.msra.mxu0 0.0
        %1506 = vmatprep.subr.mxu0 0.0
        %1507 = vmatpush1.msra.mxu0 0.0
        %1508 = vmatprep.subr.mxu0 0.0
        %1509 = vmatpush1.msra.mxu0 0.0
        %1510 = vmatprep.subr.mxu0 0.0
        %1511 = vmatpush1.msra.mxu0 0.0
        %1512 = vmatprep.subr.mxu0 0.0
        %1513 = vmatpush1.msra.mxu0 0.0
        %1514 = vmatprep.subr.mxu0 0.0
        %1515 = vmatpush1.msra.mxu0 0.0
        %1516 = vmatprep.subr.mxu0 0.0
        %1517 = vmatpush1.msra.mxu0 0.0
        %1518 = vmatprep.subr.mxu0 0.0
        %1519 = vmatpush1.msra.mxu0 0.0
        %1520 = vmatprep.subr.mxu0 0.0
        %1521 = vmatpush1.msra.mxu0 0.0
        %1522 = vmatprep.subr.mxu0 0.0
        %1523 = vmatpush1.msra.mxu0 0.0
        %1524 = vmatprep.subr.mxu0 0.0
        %1525 = vmatpush1.msra.mxu0 0.0
        %1526 = vmatprep.subr.mxu0 0.0
        %1527 = vmatpush1.msra.mxu0 0.0
        %1528 = vmatprep.subr.mxu0 0.0
        %1529 = vmatpush1.msra.mxu0 0.0
        %1530 = vmatprep.subr.mxu0 0.0
        %1531 = vmatpush1.msra.mxu0 0.0
        %1532 = vmatprep.subr.mxu0 0.0
        %1533 = vmatpush1.msra.mxu0 0.0
        %1534 = vmatprep.subr.mxu0 0.0
        %1535 = vmatpush1.msra.mxu0 0.0
        %1536 = vmatprep.mubr.f32.mxu0 0.0
        %1537 = vmatmul.mubr.f32.gmra.mrb[0].mxu0 %v1470
        %v1538 = vpop.f32.mrb[0].mxu0
        %v1539 = vadd.f32 0.0, %v1538
        %v1540 = vpop.f32.mrb[0].mxu0
        %1541 = vdwg.mxu0
        %v1543 = vsel %vm941, %v1318, 0
        %1545 = vmatprep.subr.mxu0 0.0
        %1546 = vmatpush1.msra.mxu0 %v1322
        %1547 = vmatprep.subr.mxu0 0.0
        %1548 = vmatpush1.msra.mxu0 0.0
        %1549 = vmatprep.subr.mxu0 0.0
        %1550 = vmatpush1.msra.mxu0 0.0
        %1551 = vmatprep.subr.mxu0 0.0
        %1552 = vmatpush1.msra.mxu0 0.0
        %1553 = vmatprep.subr.mxu0 0.0
        %1554 = vmatpush1.msra.mxu0 0.0
        %1555 = vmatprep.subr.mxu0 0.0
        %1556 = vmatpush1.msra.mxu0 0.0
        %1557 = vmatprep.subr.mxu0 0.0
        %1558 = vmatpush1.msra.mxu0 0.0
        %1559 = vmatprep.subr.mxu0 0.0
        %1560 = vmatpush1.msra.mxu0 0.0
        %1561 = vmatprep.subr.mxu0 0.0
        %1562 = vmatpush1.msra.mxu0 0.0
        %1563 = vmatprep.subr.mxu0 0.0
        %1564 = vmatpush1.msra.mxu0 0.0
        %1565 = vmatprep.subr.mxu0 0.0
        %1566 = vmatpush1.msra.mxu0 0.0
        %1567 = vmatprep.subr.mxu0 0.0
        %1568 = vmatpush1.msra.mxu0 0.0
        %1569 = vmatprep.subr.mxu0 0.0
        %1570 = vmatpush1.msra.mxu0 0.0
        %1571 = vmatprep.subr.mxu0 0.0
        %1572 = vmatpush1.msra.mxu0 0.0
        %1573 = vmatprep.subr.mxu0 0.0
        %1574 = vmatpush1.msra.mxu0 0.0
        %1575 = vmatprep.subr.mxu0 0.0
        %1576 = vmatpush1.msra.mxu0 0.0
        %1577 = vmatprep.subr.mxu0 0.0
        %1578 = vmatpush1.msra.mxu0 0.0
        %1579 = vmatprep.subr.mxu0 0.0
        %1580 = vmatpush1.msra.mxu0 0.0
        %1581 = vmatprep.subr.mxu0 0.0
        %1582 = vmatpush1.msra.mxu0 0.0
        %1583 = vmatprep.subr.mxu0 0.0
        %1584 = vmatpush1.msra.mxu0 0.0
        %1585 = vmatprep.subr.mxu0 0.0
        %1586 = vmatpush1.msra.mxu0 0.0
        %1587 = vmatprep.subr.mxu0 0.0
        %1588 = vmatpush1.msra.mxu0 0.0
        %1589 = vmatprep.subr.mxu0 0.0
        %1590 = vmatpush1.msra.mxu0 0.0
        %1591 = vmatprep.subr.mxu0 0.0
        %1592 = vmatpush1.msra.mxu0 0.0
        %1593 = vmatprep.subr.mxu0 0.0
        %1594 = vmatpush1.msra.mxu0 0.0
        %1595 = vmatprep.subr.mxu0 0.0
        %1596 = vmatpush1.msra.mxu0 0.0
        %1597 = vmatprep.subr.mxu0 0.0
        %1598 = vmatpush1.msra.mxu0 0.0
        %1599 = vmatprep.subr.mxu0 0.0
        %1600 = vmatpush1.msra.mxu0 0.0
        %1601 = vmatprep.subr.mxu0 0.0
        %1602 = vmatpush1.msra.mxu0 0.0
        %1603 = vmatprep.subr.mxu0 0.0
        %1604 = vmatpush1.msra.mxu0 0.0
        %1605 = vmatprep.subr.mxu0 0.0
        %1606 = vmatpush1.msra.mxu0 0.0
        %1607 = vmatprep.subr.mxu0 0.0
        %1608 = vmatpush1.msra.mxu0 0.0
        %1609 = vmatprep.mubr.f32.mxu0 0.0
        %1610 = vmatmul.mubr.f32.gmra.mrb[0].mxu0 %v1543
        %v1611 = vpop.f32.mrb[0].mxu0
        %v1612 = vadd.f32 0.0, %v1611
        %v1613 = vpop.f32.mrb[0].mxu0
        %1614 = vdwg.mxu0
        %1615 = vst.msk [vmem:[#allocation5] sm:$0xff] %vm941, %v1393
        %1617 = vrot.lane.b32.xlu0 %v1466, 8
        %v1618 = vpop.permute.xlu0 %1617
        %vm1620 = vcmask 130112
        %1621 = vst.msk [vmem:[#allocation5] sm:$0xff] %vm1620, %v1618
        %1623 = vrot.lane.b32.xlu0 %v1539, 16
        %v1624 = vpop.permute.xlu0 %1623
        %vm1626 = vcmask 195712
        %1627 = vst.msk [vmem:[#allocation5] sm:$0xff] %vm1626, %v1624
        %1629 = vrot.lane.b32.xlu0 %v1612, 24
        %v1630 = vpop.permute.xlu0 %1629
        %vm1632 = vcmask 261312
        %1633 = vst.msk [vmem:[#allocation5] sm:$0xff] %vm1632, %v1630
        %v1634 = vld [vmem:[#allocation5] sm:$0xff]
        %v1635 = vld [vmem:[%s10] sm:$0xff]
        %v1636 = vld [vmem:[%s10 + $0x8] sm:$0xff]
        %v1637 = vld [vmem:[%s10 + $0x10] sm:$0xff]
        %v1638 = vld [vmem:[%s10 + $0x18] sm:$0xff]
        %v1639 = vld [vmem:[%s11] sm:$0x1]
        %v1641 = vlaneseq
        %v1642 = vshrl.u32 %v1641, 7
        %v1643 = vsub.s32 0, %v1642
        %v1644 = vrot.slane %v1639, %v1643
        %v1647 = vsel %vm800, %v1634, 0
        %1649 = vmatprep.subr.mxu0 0.0
        %1650 = vmatpush1.msra.mxu0 %v1635
        %1651 = vmatprep.subr.mxu0 0.0
        %1652 = vmatpush1.msra.mxu0 %v1636
        %1653 = vmatprep.subr.mxu0 0.0
        %1654 = vmatpush1.msra.mxu0 %v1637
        %1655 = vmatprep.subr.mxu0 0.0
        %1656 = vmatpush1.msra.mxu0 %v1638
        %1657 = vmatprep.subr.mxu0 0.0
        %1658 = vmatpush1.msra.mxu0 0.0
        %1659 = vmatprep.subr.mxu0 0.0
        %1660 = vmatpush1.msra.mxu0 0.0
        %1661 = vmatprep.subr.mxu0 0.0
        %1662 = vmatpush1.msra.mxu0 0.0
        %1663 = vmatprep.subr.mxu0 0.0
        %1664 = vmatpush1.msra.mxu0 0.0
        %1665 = vmatprep.subr.mxu0 0.0
        %1666 = vmatpush1.msra.mxu0 0.0
        %1667 = vmatprep.subr.mxu0 0.0
        %1668 = vmatpush1.msra.mxu0 0.0
        %1669 = vmatprep.subr.mxu0 0.0
        %1670 = vmatpush1.msra.mxu0 0.0
        %1671 = vmatprep.subr.mxu0 0.0
        %1672 = vmatpush1.msra.mxu0 0.0
        %1673 = vmatprep.subr.mxu0 0.0
        %1674 = vmatpush1.msra.mxu0 0.0
        %1675 = vmatprep.subr.mxu0 0.0
        %1676 = vmatpush1.msra.mxu0 0.0
        %1677 = vmatprep.subr.mxu0 0.0
        %1678 = vmatpush1.msra.mxu0 0.0
        %1679 = vmatprep.subr.mxu0 0.0
        %1680 = vmatpush1.msra.mxu0 0.0
        %1681 = vmatprep.subr.mxu0 0.0
        %1682 = vmatpush1.msra.mxu0 0.0
        %1683 = vmatprep.subr.mxu0 0.0
        %1684 = vmatpush1.msra.mxu0 0.0
        %1685 = vmatprep.subr.mxu0 0.0
        %1686 = vmatpush1.msra.mxu0 0.0
        %1687 = vmatprep.subr.mxu0 0.0
        %1688 = vmatpush1.msra.mxu0 0.0
        %1689 = vmatprep.subr.mxu0 0.0
        %1690 = vmatpush1.msra.mxu0 0.0
        %1691 = vmatprep.subr.mxu0 0.0
        %1692 = vmatpush1.msra.mxu0 0.0
        %1693 = vmatprep.subr.mxu0 0.0
        %1694 = vmatpush1.msra.mxu0 0.0
        %1695 = vmatprep.subr.mxu0 0.0
        %1696 = vmatpush1.msra.mxu0 0.0
        %1697 = vmatprep.subr.mxu0 0.0
        %1698 = vmatpush1.msra.mxu0 0.0
        %1699 = vmatprep.subr.mxu0 0.0
        %1700 = vmatpush1.msra.mxu0 0.0
        %1701 = vmatprep.subr.mxu0 0.0
        %1702 = vmatpush1.msra.mxu0 0.0
        %1703 = vmatprep.subr.mxu0 0.0
        %1704 = vmatpush1.msra.mxu0 0.0
        %1705 = vmatprep.subr.mxu0 0.0
        %1706 = vmatpush1.msra.mxu0 0.0
        %1707 = vmatprep.subr.mxu0 0.0
        %1708 = vmatpush1.msra.mxu0 0.0
        %1709 = vmatprep.subr.mxu0 0.0
        %1710 = vmatpush1.msra.mxu0 0.0
        %1711 = vmatprep.subr.mxu0 0.0
        %1712 = vmatpush1.msra.mxu0 0.0
        %1713 = vmatprep.mubr.f32.mxu0 0.0
        %1714 = vmatmul.mubr.f32.gmra.mrb[0].mxu0 %v1647
        %v1715 = vpop.f32.mrb[0].mxu0
        %v1716 = vadd.f32 %v1644, %v1715
        %v1717 = vpop.f32.mrb[0].mxu0
        %1718 = vdwg.mxu0
        %v1719 = vadd.f32 %v799, %v1716
        %v1720 = vld [vmem:[%s12] sm:$0x1]
        %v1721 = vld [vmem:[%s13] sm:$0x1]
        %v1722 = vsel %vm800, %v1719, 0.0
        %1723 = vadd.xlane.f32.xlu0 %v1722
        %v1724 = vpop.xlane.xlu0 %1723
        %v1725 = vmul.f32 %v1724, %v804
        %v1726 = vsub.f32 %v1719, %v1725
        %v1727 = vmul.f32 %v1726, %v1726
        %v1728 = vsel %vm800, %v1727, 0.0
        %1729 = vadd.xlane.f32.xlu0 %v1728
        %v1730 = vpop.xlane.xlu0 %1729
        %v1731 = vmul.f32 %v1730, %v804
        %v1732 = vadd.f32 %v1731, 1e-05
        %v1733 = vrsqrt.pop %v1732
        %v1734 = vmul.f32 %v1726, %v1733
        %v1736 = vlaneseq
        %v1737 = vshrl.u32 %v1736, 7
        %v1738 = vsub.s32 0, %v1737
        %v1739 = vrot.slane %v1720, %v1738
        %v1741 = vmul.f32 %v1734, %v1739
        %v1743 = vlaneseq
        %v1744 = vshrl.u32 %v1743, 7
        %v1745 = vsub.s32 0, %v1744
        %v1746 = vrot.slane %v1721, %v1745
        %v1748 = vadd.f32 %v1741, %v1746
        %v1749 = vld [vmem:[%s14] sm:$0xff]
        %v1750 = vld [vmem:[%s14 + $0x8] sm:$0xff]
        %v1751 = vld [vmem:[%s14 + $0x10] sm:$0xff]
        %v1752 = vld [vmem:[%s14 + $0x18] sm:$0xff]
        %v1753 = vld [vmem:[%s15] sm:$0x1]
        %v1755 = vlaneseq
        %v1756 = vshrl.u32 %v1755, 7
        %v1757 = vsub.s32 0, %v1756
        %v1758 = vrot.slane %v1753, %v1757
        %v1761 = vsel %vm800, %v1748, 0
        %1763 = vmatprep.subr.mxu0 0.0
        %1764 = vmatpush1.msra.mxu0 %v1749
        %1765 = vmatprep.subr.mxu0 0.0
        %1766 = vmatpush1.msra.mxu0 %v1750
        %1767 = vmatprep.subr.mxu0 0.0
        %1768 = vmatpush1.msra.mxu0 %v1751
        %1769 = vmatprep.subr.mxu0 0.0
        %1770 = vmatpush1.msra.mxu0 %v1752
        %1771 = vmatprep.subr.mxu0 0.0
        %1772 = vmatpush1.msra.mxu0 0.0
        %1773 = vmatprep.subr.mxu0 0.0
        %1774 = vmatpush1.msra.mxu0 0.0
        %1775 = vmatprep.subr.mxu0 0.0
        %1776 = vmatpush1.msra.mxu0 0.0
        %1777 = vmatprep.subr.mxu0 0.0
        %1778 = vmatpush1.msra.mxu0 0.0
        %1779 = vmatprep.subr.mxu0 0.0
        %1780 = vmatpush1.msra.mxu0 0.0
        %1781 = vmatprep.subr.mxu0 0.0
        %1782 = vmatpush1.msra.mxu0 0.0
        %1783 = vmatprep.subr.mxu0 0.0
        %1784 = vmatpush1.msra.mxu0 0.0
        %1785 = vmatprep.subr.mxu0 0.0
        %1786 = vmatpush1.msra.mxu0 0.0
        %1787 = vmatprep.subr.mxu0 0.0
        %1788 = vmatpush1.msra.mxu0 0.0
        %1789 = vmatprep.subr.mxu0 0.0
        %1790 = vmatpush1.msra.mxu0 0.0
        %1791 = vmatprep.subr.mxu0 0.0
        %1792 = vmatpush1.msra.mxu0 0.0
        %1793 = vmatprep.subr.mxu0 0.0
        %1794 = vmatpush1.msra.mxu0 0.0
        %1795 = vmatprep.subr.mxu0 0.0
        %1796 = vmatpush1.msra.mxu0 0.0
        %1797 = vmatprep.subr.mxu0 0.0
        %1798 = vmatpush1.msra.mxu0 0.0
        %1799 = vmatprep.subr.mxu0 0.0
        %1800 = vmatpush1.msra.mxu0 0.0
        %1801 = vmatprep.subr.mxu0 0.0
        %1802 = vmatpush1.msra.mxu0 0.0
        %1803 = vmatprep.subr.mxu0 0.0
        %1804 = vmatpush1.msra.mxu0 0.0
        %1805 = vmatprep.subr.mxu0 0.0
        %1806 = vmatpush1.msra.mxu0 0.0
        %1807 = vmatprep.subr.mxu0 0.0
        %1808 = vmatpush1.msra.mxu0 0.0
        %1809 = vmatprep.subr.mxu0 0.0
        %1810 = vmatpush1.msra.mxu0 0.0
        %1811 = vmatprep.subr.mxu0 0.0
        %1812 = vmatpush1.msra.mxu0 0.0
        %1813 = vmatprep.subr.mxu0 0.0
        %1814 = vmatpush1.msra.mxu0 0.0
        %1815 = vmatprep.subr.mxu0 0.0
        %1816 = vmatpush1.msra.mxu0 0.0
        %1817 = vmatprep.subr.mxu0 0.0
        %1818 = vmatpush1.msra.mxu0 0.0
        %1819 = vmatprep.subr.mxu0 0.0
        %1820 = vmatpush1.msra.mxu0 0.0
        %1821 = vmatprep.subr.mxu0 0.0
        %1822 = vmatpush1.msra.mxu0 0.0
        %1823 = vmatprep.subr.mxu0 0.0
        %1824 = vmatpush1.msra.mxu0 0.0
        %1825 = vmatprep.subr.mxu0 0.0
        %1826 = vmatpush1.msra.mxu0 0.0
        %1827 = vmatprep.mubr.f32.mxu0 0.0
        %1828 = vmatmul.mubr.f32.gmra.mrb[0].mxu0 %v1761
        %v1829 = vpop.f32.mrb[0].mxu0
        %v1830 = vadd.f32 %v1758, %v1829
        %v1831 = vpop.f32.mrb[0].mxu0
        %1832 = vdwg.mxu0
        %v1833 = vmax.f32 %v1830, 0.0
        %v1834 = vld [vmem:[%s16] sm:$0xff]
        %v1835 = vld [vmem:[%s16 + $0x8] sm:$0xff]
        %v1836 = vld [vmem:[%s16 + $0x10] sm:$0xff]
        %v1837 = vld [vmem:[%s16 + $0x18] sm:$0xff]
        %v1838 = vld [vmem:[%s16 + $0x20] sm:$0xff]
        %v1839 = vld [vmem:[%s16 + $0x28] sm:$0xff]
        %v1840 = vld [vmem:[%s16 + $0x30] sm:$0xff]
        %v1841 = vld [vmem:[%s16 + $0x38] sm:$0xff]
        %v1842 = vld [vmem:[%s16 + $0x40] sm:$0xff]
        %v1843 = vld [vmem:[%s16 + $0x48] sm:$0xff]
        %v1844 = vld [vmem:[%s16 + $0x50] sm:$0xff]
        %v1845 = vld [vmem:[%s16 + $0x58] sm:$0xff]
        %v1846 = vld [vmem:[%s16 + $0x60] sm:$0xff]
        %v1847 = vld [vmem:[%s16 + $0x68] sm:$0xff]
        %v1848 = vld [vmem:[%s16 + $0x70] sm:$0xff]
        %v1849 = vld [vmem:[%s16 + $0x78] sm:$0xff]
        %v1850 = vld [vmem:[%s17] sm:$0x1]
        %v1852 = vlaneseq
        %v1853 = vshrl.u32 %v1852, 7
        %v1854 = vsub.s32 0, %v1853
        %v1855 = vrot.slane %v1850, %v1854
        %1857 = vmatprep.subr.mxu0 0.0
        %1858 = vmatpush1.msra.mxu0 %v1834
        %1859 = vmatprep.subr.mxu0 0.0
        %1860 = vmatpush1.msra.mxu0 %v1835
        %1861 = vmatprep.subr.mxu0 0.0
        %1862 = vmatpush1.msra.mxu0 %v1836
        %1863 = vmatprep.subr.mxu0 0.0
        %1864 = vmatpush1.msra.mxu0 %v1837
        %1865 = vmatprep.subr.mxu0 0.0
        %1866 = vmatpush1.msra.mxu0 %v1838
        %1867 = vmatprep.subr.mxu0 0.0
        %1868 = vmatpush1.msra.mxu0 %v1839
        %1869 = vmatprep.subr.mxu0 0.0
        %1870 = vmatpush1.msra.mxu0 %v1840
        %1871 = vmatprep.subr.mxu0 0.0
        %1872 = vmatpush1.msra.mxu0 %v1841
        %1873 = vmatprep.subr.mxu0 0.0
        %1874 = vmatpush1.msra.mxu0 %v1842
        %1875 = vmatprep.subr.mxu0 0.0
        %1876 = vmatpush1.msra.mxu0 %v1843
        %1877 = vmatprep.subr.mxu0 0.0
        %1878 = vmatpush1.msra.mxu0 %v1844
        %1879 = vmatprep.subr.mxu0 0.0
        %1880 = vmatpush1.msra.mxu0 %v1845
        %1881 = vmatprep.subr.mxu0 0.0
        %1882 = vmatpush1.msra.mxu0 %v1846
        %1883 = vmatprep.subr.mxu0 0.0
        %1884 = vmatpush1.msra.mxu0 %v1847
        %1885 = vmatprep.subr.mxu0 0.0
        %1886 = vmatpush1.msra.mxu0 %v1848
        %1887 = vmatprep.subr.mxu0 0.0
        %1888 = vmatpush1.msra.mxu0 %v1849
        %1889 = vmatprep.subr.mxu0 0.0
        %1890 = vmatpush1.msra.mxu0 0.0
        %1891 = vmatprep.subr.mxu0 0.0
        %1892 = vmatpush1.msra.mxu0 0.0
        %1893 = vmatprep.subr.mxu0 0.0
        %1894 = vmatpush1.msra.mxu0 0.0
        %1895 = vmatprep.subr.mxu0 0.0
        %1896 = vmatpush1.msra.mxu0 0.0
        %1897 = vmatprep.subr.mxu0 0.0
        %1898 = vmatpush1.msra.mxu0 0.0
        %1899 = vmatprep.subr.mxu0 0.0
        %1900 = vmatpush1.msra.mxu0 0.0
        %1901 = vmatprep.subr.mxu0 0.0
        %1902 = vmatpush1.msra.mxu0 0.0
        %1903 = vmatprep.subr.mxu0 0.0
        %1904 = vmatpush1.msra.mxu0 0.0
        %1905 = vmatprep.subr.mxu0 0.0
        %1906 = vmatpush1.msra.mxu0 0.0
        %1907 = vmatprep.subr.mxu0 0.0
        %1908 = vmatpush1.msra.mxu0 0.0
        %1909 = vmatprep.subr.mxu0 0.0
        %1910 = vmatpush1.msra.mxu0 0.0
        %1911 = vmatprep.subr.mxu0 0.0
        %1912 = vmatpush1.msra.mxu0 0.0
        %1913 = vmatprep.subr.mxu0 0.0
        %1914 = vmatpush1.msra.mxu0 0.0
        %1915 = vmatprep.subr.mxu0 0.0
        %1916 = vmatpush1.msra.mxu0 0.0
        %1917 = vmatprep.subr.mxu0 0.0
        %1918 = vmatpush1.msra.mxu0 0.0
        %1919 = vmatprep.subr.mxu0 0.0
        %1920 = vmatpush1.msra.mxu0 0.0
        %1921 = vmatprep.mubr.f32.mxu0 0.0
        %1922 = vmatmul.mubr.f32.gmra.mrb[0].mxu0 %v1833
        %v1923 = vpop.f32.mrb[0].mxu0
        %v1924 = vadd.f32 %v1855, %v1923
        %v1925 = vpop.f32.mrb[0].mxu0
        %1926 = vdwg.mxu0
        %v1927 = vadd.f32 %v1719, %v1924
        %1928 = vst.msk [vmem:[%s601] sm:$0xff] %vm800, %v1927
        %s1929 = sand.u32 %s444, 1
        %s1930 = scalar_lea.sflag [#allocation7], %s1929
        %s1931 = sand.u32 %s444, 1
        %s1932 = smul.addr %s1931, 8
        %s1933 = scalar_lea.vmem [#allocation6], %s1932
        // Predicated region
        $region97: #{tpu_custom_call.1} parent=91 // pred_check
          %p1934 = pneg %p454
        $region98: #{tpu_custom_call.1} parent=91 // pred_check_branch
          %1936 = sbr.rel (%p1934) target = $region100
        $region99: #{tpu_custom_call.1} parent=91 // pred_region
          %s1938 = ssub.s32 128, 128
          %1939 = vsyncadd %s1930, %s1938
          %s1940 = sadd.s32 %s37, %s36
          %s1941 = smul.addr %s1940, 128
          %s1942 = scalar_lea.hbm %s18, %s1941
          %s1944 = sshll.u32 %s1933, 4
          %s1945 = int_to_ptr.vmem [resolvable:$true] %s1944
          %1947 = dma.vmem_to_hbm [thread:$0]  %s1945, 128, %s1942, %s1930
        $region100: #{tpu_custom_call.1} parent=91 // pred_fallthru
          _
      $region92: #{tpu_custom_call.1} parent=5 // pred_fallthru
        _
      %p1948 = scmp.le.s32.totalorder 2, %s27
      // Predicated region
      $region101: #{tpu_custom_call.1} parent=5 // pred_check
        %p1949 = pneg %p1948
      $region102: #{tpu_custom_call.1} parent=5 // pred_check_branch
        %1951 = sbr.rel (%p1949) target = $region104
      $region103: #{tpu_custom_call.1} parent=5 // pred_region
        %s1952 = ssub.s32 %s27, 2
        // Predicated region
        $region105: #{tpu_custom_call.1} parent=103 // pred_check
          %p1953 = pneg %p460
        $region106: #{tpu_custom_call.1} parent=103 // pred_check_branch
          %1955 = sbr.rel (%p1953) target = $region108
        $region107: #{tpu_custom_call.1} parent=103 // pred_region
          %s1956 = sand.u32 %s445, 1
          %s1957 = scalar_lea.sflag [#allocation7], %s1956
          %s1958 = sand.u32 %s445, 1
          %s1959 = smul.addr %s1958, 8
          %s1960 = scalar_lea.vmem [#allocation6], %s1959
          %1961 = dma.done %s1957, 128
        $region108: #{tpu_custom_call.1} parent=103 // pred_fallthru
          _
      $region104: #{tpu_custom_call.1} parent=5 // pred_fallthru
        _
    $region6: #{tpu_custom_call.1} parent=1 // loop_footer
      %s31 = sadd.s32 1, %s27
    $region7: #{tpu_custom_call.1} parent=1 // loop_footer_branch
      %26 = sbr.rel target = $region3
    $region8: #{tpu_custom_call.1} parent=1 // loop_exit
      _
    %1962 = vsyncpa [#allocation7], 1
    %s1963 = scalar_lea.sflag [#allocation7], 1
    %1964 = vsyncpa %s1963, 1

// kernel: tpu_custom_call.1
$region0: #{tpu_custom_call.1}
  #allocation0 [shape = 'u32[]', space=smem, size = 0x4, offset = 0x4, fixed_abs, tag = 'smem constant byte address 0x4 - core index']
  #allocation1 [shape = 'u32[144,128]{1,0:T(1,128)}', space=vmem, size = 0x12000, scoped, tag = 'internal scratch']
  #allocation2 [shape = 'f32[4,8,8]{2,1,0:T(8,128)}', space=vmem, size = 0x4000, scoped, tag = 'scratch operand']
  #allocation3 [shape = 'f32[4,8,8]{2,1,0:T(8,128)}', space=vmem, size = 0x4000, scoped, tag = 'scratch operand']
  #allocation4 [shape = 'f32[4,8,8]{2,1,0:T(8,128)}', space=vmem, size = 0x4000, scoped, tag = 'scratch operand']
  #allocation5 [shape = 'f32[8,32]{1,0:T(8,128)}', space=vmem, size = 0x1000, scoped, tag = 'scratch operand']
  %s0 = inlined_call_operand.vmem [shape: f32[2,8,32], index: 0, kind: input, shape index: {}]
  %s1 = inlined_call_operand.vmem [shape: f32[2,8,32], index: 1, kind: input, shape index: {}]
  %s2 = inlined_call_operand.vmem [shape: f32[1,32], index: 2, kind: input, shape index: {}]
  %s3 = inlined_call_operand.vmem [shape: f32[1,32], index: 3, kind: input, shape index: {}]
  %s4 = inlined_call_operand.vmem [shape: f32[1,32], index: 4, kind: input, shape index: {}]
  %s5 = inlined_call_operand.vmem [shape: f32[1,32], index: 5, kind: input, shape index: {}]
  %s6 = inlined_call_operand.vmem [shape: f32[32,32], index: 6, kind: input, shape index: {}]
  %s7 = inlined_call_operand.vmem [shape: f32[1,32], index: 7, kind: input, shape index: {}]
  %s8 = inlined_call_operand.vmem [shape: f32[32,64], index: 8, kind: input, shape index: {}]
  %s9 = inlined_call_operand.vmem [shape: f32[1,64], index: 9, kind: input, shape index: {}]
  %s10 = inlined_call_operand.vmem [shape: f32[32,32], index: 10, kind: input, shape index: {}]
  %s11 = inlined_call_operand.vmem [shape: f32[1,32], index: 11, kind: input, shape index: {}]
  %s12 = inlined_call_operand.vmem [shape: f32[1,32], index: 12, kind: input, shape index: {}]
  %s13 = inlined_call_operand.vmem [shape: f32[1,32], index: 13, kind: input, shape index: {}]
  %s14 = inlined_call_operand.vmem [shape: f32[32,128], index: 14, kind: input, shape index: {}]
  %s15 = inlined_call_operand.vmem [shape: f32[1,128], index: 15, kind: input, shape index: {}]
  %s16 = inlined_call_operand.vmem [shape: f32[128,32], index: 16, kind: input, shape index: {}]
  %s17 = inlined_call_operand.vmem [shape: f32[1,32], index: 17, kind: input, shape index: {}]
  %s18 = inlined_call_operand.hbm [shape: f32[2,8,32], index: 18, kind: output, shape index: {}]
  %s19 = sld [smem:[#allocation0]]
  $region109: #{tpu_custom_call.1} parent=0
    _
  %s21 = ssub.s32 1, %s19
  %s22 = scalar_select 0, %s21, %s19
  $region1: #{tpu_custom_call.1} parent=0
    #allocation6 [shape = 'u8[8192]{0}', space=vmem, size = 0x2000, scoped, tag = 'output window, operand 0']
    #allocation7 [shape = 's32[2]{0}', space=sflag, size = 0x8, scoped, tag = 'scoped memory for tpu_custom_call.1']
    %23 = vsyncpa [#allocation7], 0
    %s24 = scalar_lea.sflag [#allocation7], 1
    %25 = vsyncpa %s24, 0
    loop: start=0, step=1, limit=4
    $region2: #{tpu_custom_call.1} parent=1 // loop_pre_header
      _
    $region3: #{tpu_custom_call.1} parent=1 // loop_header
      %s27 = sphi 0, %s31
      %p28 = scmp.ge.s32.totalorder %s27, 4
      %s34 = sphi 0, %s46
      %s35 = sphi 0, %s42
      %s36 = sphi 0, %s34
      %s37 = sphi 0, %s35
      %s38 = sphi 0, %s36
      %s39 = sphi 0, %s37
      %s51 = sphi 0, %s53
      %s54 = sphi 0, %s51
      %s55 = sphi 0, %s54
      %s71 = sphi 0, %s55
      %s77 = sphi 0, %s79
      %s80 = sphi 0, %s77
      %s81 = sphi 0, %s80
      %s97 = sphi 0, %s81
      %s101 = sphi 0, %s101
      %s103 = sphi 0, %s101
      %s104 = sphi 0, %s103
      %s118 = sphi 0, %s104
      %s122 = sphi 0, %s122
      %s124 = sphi 0, %s122
      %s125 = sphi 0, %s124
      %s139 = sphi 0, %s125
      %s143 = sphi 0, %s143
      %s145 = sphi 0, %s143
      %s146 = sphi 0, %s145
      %s160 = sphi 0, %s146
      %s164 = sphi 0, %s164
      %s166 = sphi 0, %s164
      %s167 = sphi 0, %s166
      %s181 = sphi 0, %s167
      %s185 = sphi 0, %s185
      %s187 = sphi 0, %s185
      %s188 = sphi 0, %s187
      %s202 = sphi 0, %s188
      %s206 = sphi 0, %s206
      %s208 = sphi 0, %s206
      %s209 = sphi 0, %s208
      %s223 = sphi 0, %s209
      %s227 = sphi 0, %s227
      %s229 = sphi 0, %s227
      %s230 = sphi 0, %s229
      %s244 = sphi 0, %s230
      %s248 = sphi 0, %s248
      %s250 = sphi 0, %s248
      %s251 = sphi 0, %s250
      %s265 = sphi 0, %s251
      %s269 = sphi 0, %s269
      %s271 = sphi 0, %s269
      %s272 = sphi 0, %s271
      %s286 = sphi 0, %s272
      %s290 = sphi 0, %s290
      %s292 = sphi 0, %s290
      %s293 = sphi 0, %s292
      %s307 = sphi 0, %s293
      %s311 = sphi 0, %s311
      %s313 = sphi 0, %s311
      %s314 = sphi 0, %s313
      %s328 = sphi 0, %s314
      %s332 = sphi 0, %s332
      %s334 = sphi 0, %s332
      %s335 = sphi 0, %s334
      %s349 = sphi 0, %s335
      %s353 = sphi 0, %s353
      %s355 = sphi 0, %s353
      %s356 = sphi 0, %s355
      %s370 = sphi 0, %s356
      %s374 = sphi 0, %s374
      %s376 = sphi 0, %s374
      %s377 = sphi 0, %s376
      %s391 = sphi 0, %s377
      %s395 = sphi 0, %s395
      %s397 = sphi 0, %s395
      %s398 = sphi 0, %s397
      %s412 = sphi 0, %s398
      %s416 = sphi 0, %s416
      %s418 = sphi 0, %s416
      %s419 = sphi 0, %s418
      %s433 = sphi 0, %s419
      %s441 = sphi 0, %s443
      %s444 = sphi 0, %s441
      %s445 = sphi 0, %s444
      %s461 = sphi 0, %s445
    $region4: #{tpu_custom_call.1} parent=1 // loop_header_branch
      %30 = sbr.rel (%p28) target = $region8
    $region5: #{tpu_custom_call.1} parent=1 // loop_body
      %s32 = ssub.s32 %s27, 1
      %s33 = ssub.s32 %s27, 2
      %s40 = sadd.s32 1, %s35
      %p41 = scmp.ge.s32.totalorder %s40, 1
      %s42 = scalar_select %p41, 0, %s40
      %s43 = sadd.s32 1, %s34
      %s44 = scalar_select %p41, %s43, %s34
      %p45 = scmp.ge.s32.totalorder %s44, 2
      %s46 = scalar_select %p45, 0, %s44
      %s47 = ssub.s32 %s34, %s46
      %s48 = ssub.s32 %s35, %s42
      %s49 = sor.u32 %s47, %s48
      %p50 = scmp.eq.s32.totalorder %s49, 0
      %s52 = sadd.s32 %s51, 1
      %s53 = scalar_select %p50, %s51, %s52
      %p56 = pneg %p50
      %p57 = scmp.eq.s32.totalorder %s27, 1
      %p58 = por %p56, %p57
      %p59 = scmp.ne.s32.totalorder %s51, %s54
      %p60 = scmp.eq.s32.totalorder %s27, 0
      %p61 = por %p59, %p60
      %p62 = scmp.ne.s32.totalorder %s51, %s54
      %p63 = scmp.eq.s32.totalorder %s32, 1
      %p64 = por %p62, %p63
      %p65 = scmp.ne.s32.totalorder %s54, %s55
      %p66 = scmp.eq.s32.totalorder %s32, 0
      %p67 = por %p65, %p66
      %p68 = scmp.ne.s32.totalorder %s54, %s55
      %p69 = scmp.eq.s32.totalorder %s33, 1
      %p70 = por %p68, %p69
      %p72 = scmp.ne.s32.totalorder %s55, %s71
      %p73 = scmp.eq.s32.totalorder %s33, 0
      %p74 = por %p72, %p73
      %s75 = ssub.s32 %s34, %s46
      %p76 = scmp.eq.s32.totalorder %s75, 0
      %s78 = sadd.s32 %s77, 1
      %s79 = scalar_select %p76, %s77, %s78
      %p82 = pneg %p76
      %p83 = scmp.eq.s32.totalorder %s27, 1
      %p84 = por %p82, %p83
      %p85 = scmp.ne.s32.totalorder %s77, %s80
      %p86 = scmp.eq.s32.totalorder %s27, 0
      %p87 = por %p85, %p86
      %p88 = scmp.ne.s32.totalorder %s77, %s80
      %p89 = scmp.eq.s32.totalorder %s32, 1
      %p90 = por %p88, %p89
      %p91 = scmp.ne.s32.totalorder %s80, %s81
      %p92 = scmp.eq.s32.totalorder %s32, 0
      %p93 = por %p91, %p92
      %p94 = scmp.ne.s32.totalorder %s80, %s81
      %p95 = scmp.eq.s32.totalorder %s33, 1
      %p96 = por %p94, %p95
      %p98 = scmp.ne.s32.totalorder %s81, %s97
      %p99 = scmp.eq.s32.totalorder %s33, 0
      %p100 = por %p98, %p99
      %s102 = sadd.s32 %s101, 1
      %p105 = scmp.eq.s32.totalorder %s27, 1
      %p106 = scmp.ne.s32.totalorder %s101, %s103
      %p107 = scmp.eq.s32.totalorder %s27, 0
      %p108 = por %p106, %p107
      %p109 = scmp.ne.s32.totalorder %s101, %s103
      %p110 = scmp.eq.s32.totalorder %s32, 1
      %p111 = por %p109, %p110
      %p112 = scmp.ne.s32.totalorder %s103, %s104
      %p113 = scmp.eq.s32.totalorder %s32, 0
      %p114 = por %p112, %p113
      %p115 = scmp.ne.s32.totalorder %s103, %s104
      %p116 = scmp.eq.s32.totalorder %s33, 1
      %p117 = por %p115, %p116
      %p119 = scmp.ne.s32.totalorder %s104, %s118
      %p120 = scmp.eq.s32.totalorder %s33, 0
      %p121 = por %p119, %p120
      %s123 = sadd.s32 %s122, 1
      %p126 = scmp.eq.s32.totalorder %s27, 1
      %p127 = scmp.ne.s32.totalorder %s122, %s124
      %p128 = scmp.eq.s32.totalorder %s27, 0
      %p129 = por %p127, %p128
      %p130 = scmp.ne.s32.totalorder %s122, %s124
      %p131 = scmp.eq.s32.totalorder %s32, 1
      %p132 = por %p130, %p131
      %p133 = scmp.ne.s32.totalorder %s124, %s125
      %p134 = scmp.eq.s32.totalorder %s32, 0
      %p135 = por %p133, %p134
      %p136 = scmp.ne.s32.totalorder %s124, %s125
      %p137 = scmp.eq.s32.totalorder %s33, 1
      %p138 = por %p136, %p137
      %p140 = scmp.ne.s32.totalorder %s125, %s139
      %p141 = scmp.eq.s32.totalorder %s33, 0
      %p142 = por %p140, %p141
      %s144 = sadd.s32 %s143, 1
      %p147 = scmp.eq.s32.totalorder %s27, 1
      %p148 = scmp.ne.s32.totalorder %s143, %s145
      %p149 = scmp.eq.s32.totalorder %s27, 0
      %p150 = por %p148, %p149
      %p151 = scmp.ne.s32.totalorder %s143, %s145
      %p152 = scmp.eq.s32.totalorder %s32, 1
      %p153 = por %p151, %p152
      %p154 = scmp.ne.s32.totalorder %s145, %s146
      %p155 = scmp.eq.s32.totalorder %s32, 0
      %p156 = por %p154, %p155
      %p157 = scmp.ne.s32.totalorder %s145, %s146
      %p158 = scmp.eq.s32.totalorder %s33, 1
      %p159 = por %p157, %p158
      %p161 = scmp.ne.s32.totalorder %s146, %s160
      %p162 = scmp.eq.s32.totalorder %s33, 0
      %p163 = por %p161, %p162
      %s165 = sadd.s32 %s164, 1
      %p168 = scmp.eq.s32.totalorder %s27, 1
      %p169 = scmp.ne.s32.totalorder %s164, %s166
      %p170 = scmp.eq.s32.totalorder %s27, 0
      %p171 = por %p169, %p170
      %p172 = scmp.ne.s32.totalorder %s164, %s166
      %p173 = scmp.eq.s32.totalorder %s32, 1
      %p174 = por %p172, %p173
      %p175 = scmp.ne.s32.totalorder %s166, %s167
      %p176 = scmp.eq.s32.totalorder %s32, 0
      %p177 = por %p175, %p176
      %p178 = scmp.ne.s32.totalorder %s166, %s167
      %p179 = scmp.eq.s32.totalorder %s33, 1
      %p180 = por %p178, %p179
      %p182 = scmp.ne.s32.totalorder %s167, %s181
      %p183 = scmp.eq.s32.totalorder %s33, 0
      %p184 = por %p182, %p183
      %s186 = sadd.s32 %s185, 1
      %p189 = scmp.eq.s32.totalorder %s27, 1
      %p190 = scmp.ne.s32.totalorder %s185, %s187
      %p191 = scmp.eq.s32.totalorder %s27, 0
      %p192 = por %p190, %p191
      %p193 = scmp.ne.s32.totalorder %s185, %s187
      %p194 = scmp.eq.s32.totalorder %s32, 1
      %p195 = por %p193, %p194
      %p196 = scmp.ne.s32.totalorder %s187, %s188
      %p197 = scmp.eq.s32.totalorder %s32, 0
      %p198 = por %p196, %p197
      %p199 = scmp.ne.s32.totalorder %s187, %s188
      %p200 = scmp.eq.s32.totalorder %s33, 1
      %p201 = por %p199, %p200
      %p203 = scmp.ne.s32.totalorder %s188, %s202
      %p204 = scmp.eq.s32.totalorder %s33, 0
      %p205 = por %p203, %p204
      %s207 = sadd.s32 %s206, 1
      %p210 = scmp.eq.s32.totalorder %s27, 1
      %p211 = scmp.ne.s32.totalorder %s206, %s208
      %p212 = scmp.eq.s32.totalorder %s27, 0
      %p213 = por %p211, %p212
      %p214 = scmp.ne.s32.totalorder %s206, %s208
      %p215 = scmp.eq.s32.totalorder %s32, 1
      %p216 = por %p214, %p215
      %p217 = scmp.ne.s32.totalorder %s208, %s209
      %p218 = scmp.eq.s32.totalorder %s32, 0
      %p219 = por %p217, %p218
      %p220 = scmp.ne.s32.totalorder %s208, %s209
      %p221 = scmp.eq.s32.totalorder %s33, 1
      %p222 = por %p220, %p221
      %p224 = scmp.ne.s32.totalorder %s209, %s223
      %p225 = scmp.eq.s32.totalorder %s33, 0
      %p226 = por %p224, %p225
      %s228 = sadd.s32 %s227, 1
      %p231 = scmp.eq.s32.totalorder %s27, 1
      %p232 = scmp.ne.s32.totalorder %s227, %s229
      %p233 = scmp.eq.s32.totalorder %s27, 0
      %p234 = por %p232, %p233
      %p235 = scmp.ne.s32.totalorder %s227, %s229
      %p236 = scmp.eq.s32.totalorder %s32, 1
      %p237 = por %p235, %p236
      %p238 = scmp.ne.s32.totalorder %s229, %s230
      %p239 = scmp.eq.s32.totalorder %s32, 0
      %p240 = por %p238, %p239
      %p241 = scmp.ne.s32.totalorder %s229, %s230
      %p242 = scmp.eq.s32.totalorder %s33, 1
      %p243 = por %p241, %p242
      %p245 = scmp.ne.s32.totalorder %s230, %s244
      %p246 = scmp.eq.s32.totalorder %s33, 0
      %p247 = por %p245, %p246
      %s249 = sadd.s32 %s248, 1
      %p252 = scmp.eq.s32.totalorder %s27, 1
      %p253 = scmp.ne.s32.totalorder %s248, %s250
      %p254 = scmp.eq.s32.totalorder %s27, 0
      %p255 = por %p253, %p254
      %p256 = scmp.ne.s32.totalorder %s248, %s250
      %p257 = scmp.eq.s32.totalorder %s32, 1
      %p258 = por %p256, %p257
      %p259 = scmp.ne.s32.totalorder %s250, %s251
      %p260 = scmp.eq.s32.totalorder %s32, 0
      %p261 = por %p259, %p260
      %p262 = scmp.ne.s32.totalorder %s250, %s251
      %p263 = scmp.eq.s32.totalorder %s33, 1
      %p264 = por %p262, %p263
      %p266 = scmp.ne.s32.totalorder %s251, %s265
      %p267 = scmp.eq.s32.totalorder %s33, 0
      %p268 = por %p266, %p267
      %s270 = sadd.s32 %s269, 1
      %p273 = scmp.eq.s32.totalorder %s27, 1
      %p274 = scmp.ne.s32.totalorder %s269, %s271
      %p275 = scmp.eq.s32.totalorder %s27, 0
      %p276 = por %p274, %p275
      %p277 = scmp.ne.s32.totalorder %s269, %s271
      %p278 = scmp.eq.s32.totalorder %s32, 1
      %p279 = por %p277, %p278
      %p280 = scmp.ne.s32.totalorder %s271, %s272
      %p281 = scmp.eq.s32.totalorder %s32, 0
      %p282 = por %p280, %p281
      %p283 = scmp.ne.s32.totalorder %s271, %s272
      %p284 = scmp.eq.s32.totalorder %s33, 1
      %p285 = por %p283, %p284
      %p287 = scmp.ne.s32.totalorder %s272, %s286
      %p288 = scmp.eq.s32.totalorder %s33, 0
      %p289 = por %p287, %p288
      %s291 = sadd.s32 %s290, 1
      %p294 = scmp.eq.s32.totalorder %s27, 1
      %p295 = scmp.ne.s32.totalorder %s290, %s292
      %p296 = scmp.eq.s32.totalorder %s27, 0
      %p297 = por %p295, %p296
      %p298 = scmp.ne.s32.totalorder %s290, %s292
      %p299 = scmp.eq.s32.totalorder %s32, 1
      %p300 = por %p298, %p299
      %p301 = scmp.ne.s32.totalorder %s292, %s293
      %p302 = scmp.eq.s32.totalorder %s32, 0
      %p303 = por %p301, %p302
      %p304 = scmp.ne.s32.totalorder %s292, %s293
      %p305 = scmp.eq.s32.totalorder %s33, 1
      %p306 = por %p304, %p305
      %p308 = scmp.ne.s32.totalorder %s293, %s307
      %p309 = scmp.eq.s32.totalorder %s33, 0
      %p310 = por %p308, %p309
      %s312 = sadd.s32 %s311, 1
      %p315 = scmp.eq.s32.totalorder %s27, 1
      %p316 = scmp.ne.s32.totalorder %s311, %s313
      %p317 = scmp.eq.s32.totalorder %s27, 0
      %p318 = por %p316, %p317
      %p319 = scmp.ne.s32.totalorder %s311, %s313
      %p320 = scmp.eq.s32.totalorder %s32, 1
      %p321 = por %p319, %p320
      %p322 = scmp.ne.s32.totalorder %s313, %s314
      %p323 = scmp.eq.s32.totalorder %s32, 0
      %p324 = por %p322, %p323
      %p325 = scmp.ne.s32.totalorder %s313, %s314
      %p326 = scmp.eq.s32.totalorder %s33, 1
      %p327 = por %p325, %p326
      %p329 = scmp.ne.s32.totalorder %s314, %s328
      %p330 = scmp.eq.s32.totalorder %s33, 0
      %p331 = por %p329, %p330
      %s333 = sadd.s32 %s332, 1
      %p336 = scmp.eq.s32.totalorder %s27, 1
      %p337 = scmp.ne.s32.totalorder %s332, %s334
      %p338 = scmp.eq.s32.totalorder %s27, 0
      %p339 = por %p337, %p338
      %p340 = scmp.ne.s32.totalorder %s332, %s334
      %p341 = scmp.eq.s32.totalorder %s32, 1
      %p342 = por %p340, %p341
      %p343 = scmp.ne.s32.totalorder %s334, %s335
      %p344 = scmp.eq.s32.totalorder %s32, 0
      %p345 = por %p343, %p344
      %p346 = scmp.ne.s32.totalorder %s334, %s335
      %p347 = scmp.eq.s32.totalorder %s33, 1
      %p348 = por %p346, %p347
      %p350 = scmp.ne.s32.totalorder %s335, %s349
      %p351 = scmp.eq.s32.totalorder %s33, 0
      %p352 = por %p350, %p351
      %s354 = sadd.s32 %s353, 1
      %p357 = scmp.eq.s32.totalorder %s27, 1
      %p358 = scmp.ne.s32.totalorder %s353, %s355
      %p359 = scmp.eq.s32.totalorder %s27, 0
      %p360 = por %p358, %p359
      %p361 = scmp.ne.s32.totalorder %s353, %s355
      %p362 = scmp.eq.s32.totalorder %s32, 1
      %p363 = por %p361, %p362
      %p364 = scmp.ne.s32.totalorder %s355, %s356
      %p365 = scmp.eq.s32.totalorder %s32, 0
      %p366 = por %p364, %p365
      %p367 = scmp.ne.s32.totalorder %s355, %s356
      %p368 = scmp.eq.s32.totalorder %s33, 1
      %p369 = por %p367, %p368
      %p371 = scmp.ne.s32.totalorder %s356, %s370
      %p372 = scmp.eq.s32.totalorder %s33, 0
      %p373 = por %p371, %p372
      %s375 = sadd.s32 %s374, 1
      %p378 = scmp.eq.s32.totalorder %s27, 1
      %p379 = scmp.ne.s32.totalorder %s374, %s376
      %p380 = scmp.eq.s32.totalorder %s27, 0
      %p381 = por %p379, %p380
      %p382 = scmp.ne.s32.totalorder %s374, %s376
      %p383 = scmp.eq.s32.totalorder %s32, 1
      %p384 = por %p382, %p383
      %p385 = scmp.ne.s32.totalorder %s376, %s377
      %p386 = scmp.eq.s32.totalorder %s32, 0
      %p387 = por %p385, %p386
      %p388 = scmp.ne.s32.totalorder %s376, %s377
      %p389 = scmp.eq.s32.totalorder %s33, 1
      %p390 = por %p388, %p389
      %p392 = scmp.ne.s32.totalorder %s377, %s391
      %p393 = scmp.eq.s32.totalorder %s33, 0
      %p394 = por %p392, %p393
      %s396 = sadd.s32 %s395, 1
      %p399 = scmp.eq.s32.totalorder %s27, 1
      %p400 = scmp.ne.s32.totalorder %s395, %s397
      %p401 = scmp.eq.s32.totalorder %s27, 0
      %p402 = por %p400, %p401
      %p403 = scmp.ne.s32.totalorder %s395, %s397
      %p404 = scmp.eq.s32.totalorder %s32, 1
      %p405 = por %p403, %p404
      %p406 = scmp.ne.s32.totalorder %s397, %s398
      %p407 = scmp.eq.s32.totalorder %s32, 0
      %p408 = por %p406, %p407
      %p409 = scmp.ne.s32.totalorder %s397, %s398
      %p410 = scmp.eq.s32.totalorder %s33, 1
      %p411 = por %p409, %p410
      %p413 = scmp.ne.s32.totalorder %s398, %s412
      %p414 = scmp.eq.s32.totalorder %s33, 0
      %p415 = por %p413, %p414
      %s417 = sadd.s32 %s416, 1
      %p420 = scmp.eq.s32.totalorder %s27, 1
      %p421 = scmp.ne.s32.totalorder %s416, %s418
      %p422 = scmp.eq.s32.totalorder %s27, 0
      %p423 = por %p421, %p422
      %p424 = scmp.ne.s32.totalorder %s416, %s418
      %p425 = scmp.eq.s32.totalorder %s32, 1
      %p426 = por %p424, %p425
      %p427 = scmp.ne.s32.totalorder %s418, %s419
      %p428 = scmp.eq.s32.totalorder %s32, 0
      %p429 = por %p427, %p428
      %p430 = scmp.ne.s32.totalorder %s418, %s419
      %p431 = scmp.eq.s32.totalorder %s33, 1
      %p432 = por %p430, %p431
      %p434 = scmp.ne.s32.totalorder %s419, %s433
      %p435 = scmp.eq.s32.totalorder %s33, 0
      %p436 = por %p434, %p435
      %s437 = ssub.s32 %s34, %s46
      %s438 = ssub.s32 %s35, %s42
      %s439 = sor.u32 %s437, %s438
      %p440 = scmp.eq.s32.totalorder %s439, 0
      %s442 = sadd.s32 %s441, 1
      %s443 = scalar_select %p440, %s441, %s442
      %p446 = pneg %p440
      %p447 = scmp.eq.s32.totalorder %s27, 1
      %p448 = por %p446, %p447
      %p449 = scmp.ne.s32.totalorder %s441, %s444
      %p450 = scmp.eq.s32.totalorder %s27, 0
      %p451 = por %p449, %p450
      %p452 = scmp.ne.s32.totalorder %s441, %s444
      %p453 = scmp.eq.s32.totalorder %s32, 1
      %p454 = por %p452, %p453
      %p455 = scmp.ne.s32.totalorder %s444, %s445
      %p456 = scmp.eq.s32.totalorder %s32, 0
      %p457 = por %p455, %p456
      %p458 = scmp.ne.s32.totalorder %s444, %s445
      %p459 = scmp.eq.s32.totalorder %s33, 1
      %p460 = por %p458, %p459
      %p462 = scmp.ne.s32.totalorder %s445, %s461
      %p463 = scmp.eq.s32.totalorder %s33, 0
      %p464 = por %p462, %p463
      %p465 = scmp.le.s32.totalorder 1, %s27
      %p466 = scmp.lt.s32.totalorder %s27, 3
      %p467 = pnand %p465, %p466
      %p468 = pneg %p467
      // Predicated region
      $region9: #{tpu_custom_call.1} parent=5 // pred_check
        _
      $region10: #{tpu_custom_call.1} parent=5 // pred_check_branch
        %470 = sbr.rel (%p467) target = $region12
      $region11: #{tpu_custom_call.1} parent=5 // pred_region
        %s471 = ssub.s32 %s27, 1
        // Predicated region
        $region13: #{tpu_custom_call.1} parent=11 // pred_check
          %p472 = pneg %p114
        $region14: #{tpu_custom_call.1} parent=11 // pred_check_branch
          %474 = sbr.rel (%p472) target = $region16
        $region15: #{tpu_custom_call.1} parent=11 // pred_region
          _
        $region16: #{tpu_custom_call.1} parent=11 // pred_fallthru
          _
        // Predicated region
        $region17: #{tpu_custom_call.1} parent=11 // pred_check
          %p475 = pneg %p135
        $region18: #{tpu_custom_call.1} parent=11 // pred_check_branch
          %477 = sbr.rel (%p475) target = $region20
        $region19: #{tpu_custom_call.1} parent=11 // pred_region
          _
        $region20: #{tpu_custom_call.1} parent=11 // pred_fallthru
          _
        // Predicated region
        $region21: #{tpu_custom_call.1} parent=11 // pred_check
          %p478 = pneg %p156
        $region22: #{tpu_custom_call.1} parent=11 // pred_check_branch
          %480 = sbr.rel (%p478) target = $region24
        $region23: #{tpu_custom_call.1} parent=11 // pred_region
          _
        $region24: #{tpu_custom_call.1} parent=11 // pred_fallthru
          _
        // Predicated region
        $region25: #{tpu_custom_call.1} parent=11 // pred_check
          %p481 = pneg %p177
        $region26: #{tpu_custom_call.1} parent=11 // pred_check_branch
          %483 = sbr.rel (%p481) target = $region28
        $region27: #{tpu_custom_call.1} parent=11 // pred_region
          _
        $region28: #{tpu_custom_call.1} parent=11 // pred_fallthru
          _
        // Predicated region
        $region29: #{tpu_custom_call.1} parent=11 // pred_check
          %p484 = pneg %p198
        $region30: #{tpu_custom_call.1} parent=11 // pred_check_branch
          %486 = sbr.rel (%p484) target = $region32
        $region31: #{tpu_custom_call.1} parent=11 // pred_region
          _
        $region32: #{tpu_custom_call.1} parent=11 // pred_fallthru
          _
        // Predicated region
        $region33: #{tpu_custom_call.1} parent=11 // pred_check
          %p487 = pneg %p219
        $region34: #{tpu_custom_call.1} parent=11 // pred_check_branch
          %489 = sbr.rel (%p487) target = $region36
        $region35: #{tpu_custom_call.1} parent=11 // pred_region
          _
        $region36: #{tpu_custom_call.1} parent=11 // pred_fallthru
          _
        // Predicated region
        $region37: #{tpu_custom_call.1} parent=11 // pred_check
          %p490 = pneg %p240
        $region38: #{tpu_custom_call.1} parent=11 // pred_check_branch
          %492 = sbr.rel (%p490) target = $region40
        $region39: #{tpu_custom_call.1} parent=11 // pred_region
          _
        $region40: #{tpu_custom_call.1} parent=11 // pred_fallthru
          _
        // Predicated region
        $region41: #{tpu_custom_call.1} parent=11 // pred_check
          %p493 = pneg %p261
        $region42: #{tpu_custom_call.1} parent=11 // pred_check_branch
          %495 = sbr.rel (%p493) target = $region44
        $region43: #{tpu_custom_call.1} parent=11 // pred_region
          _
        $region44: #{tpu_custom_call.1} parent=11 // pred_fallthru
          _
        // Predicated region
        $region45: #{tpu_custom_call.1} parent=11 // pred_check
          %p496 = pneg %p282
        $region46: #{tpu_custom_call.1} parent=11 // pred_check_branch
          %498 = sbr.rel (%p496) target = $region48
        $region47: #{tpu_custom_call.1} parent=11 // pred_region
          _
        $region48: #{tpu_custom_call.1} parent=11 // pred_fallthru
          _
        // Predicated region
        $region49: #{tpu_custom_call.1} parent=11 // pred_check
          %p499 = pneg %p303
        $region50: #{tpu_custom_call.1} parent=11 // pred_check_branch
          %501 = sbr.rel (%p499) target = $region52
        $region51: #{tpu_custom_call.1} parent=11 // pred_region
          _
        $region52: #{tpu_custom_call.1} parent=11 // pred_fallthru
          _
        // Predicated region
        $region53: #{tpu_custom_call.1} parent=11 // pred_check
          %p502 = pneg %p324
        $region54: #{tpu_custom_call.1} parent=11 // pred_check_branch
          %504 = sbr.rel (%p502) target = $region56
        $region55: #{tpu_custom_call.1} parent=11 // pred_region
          _
        $region56: #{tpu_custom_call.1} parent=11 // pred_fallthru
          _
        // Predicated region
        $region57: #{tpu_custom_call.1} parent=11 // pred_check
          %p505 = pneg %p345
        $region58: #{tpu_custom_call.1} parent=11 // pred_check_branch
          %507 = sbr.rel (%p505) target = $region60
        $region59: #{tpu_custom_call.1} parent=11 // pred_region
          _
        $region60: #{tpu_custom_call.1} parent=11 // pred_fallthru
          _
        // Predicated region
        $region61: #{tpu_custom_call.1} parent=11 // pred_check
          %p508 = pneg %p366
        $region62: #{tpu_custom_call.1} parent=11 // pred_check_branch
          %510 = sbr.rel (%p508) target = $region64
        $region63: #{tpu_custom_call.1} parent=11 // pred_region
          _
        $region64: #{tpu_custom_call.1} parent=11 // pred_fallthru
          _
        // Predicated region
        $region65: #{tpu_custom_call.1} parent=11 // pred_check
          %p511 = pneg %p387
        $region66: #{tpu_custom_call.1} parent=11 // pred_check_branch
          %513 = sbr.rel (%p511) target = $region68
        $region67: #{tpu_custom_call.1} parent=11 // pred_region
          _
        $region68: #{tpu_custom_call.1} parent=11 // pred_fallthru
          _
        // Predicated region
        $region69: #{tpu_custom_call.1} parent=11 // pred_check
          %p514 = pneg %p408
        $region70: #{tpu_custom_call.1} parent=11 // pred_check_branch
          %516 = sbr.rel (%p514) target = $region72
        $region71: #{tpu_custom_call.1} parent=11 // pred_region
          _
        $region72: #{tpu_custom_call.1} parent=11 // pred_fallthru
          _
        // Predicated region
        $region73: #{tpu_custom_call.1} parent=11 // pred_check
          %p517 = pneg %p429
        $region74: #{tpu_custom_call.1} parent=11 // pred_check_branch
          %519 = sbr.rel (%p517) target = $region76
        $region75: #{tpu_custom_call.1} parent=11 // pred_region
          _
        $region76: #{tpu_custom_call.1} parent=11 // pred_fallthru
          _
      $region12: #{tpu_custom_call.1} parent=5 // pred_fallthru
        _
      %p520 = scmp.lt.s32.totalorder %s27, 2
      // Predicated region
      $region77: #{tpu_custom_call.1} parent=5 // pred_check
        %p521 = pneg %p520
      $region78: #{tpu_custom_call.1} parent=5 // pred_check_branch
        %523 = sbr.rel (%p521) target = $region80
      $region79: #{tpu_custom_call.1} parent=5 // pred_region
        // Predicated region
        $region81: #{tpu_custom_call.1} parent=79 // pred_check
          %p524 = pneg %p61
        $region82: #{tpu_custom_call.1} parent=79 // pred_check_branch
          %526 = sbr.rel (%p524) target = $region84
        $region83: #{tpu_custom_call.1} parent=79 // pred_region
          %p527 = scmp.lt.s32.totalorder %s34, 1
          %s528 = scalar_select %p527, %s34, 1
          %p529 = scmp.lt.s32.totalorder %s35, 0
          %s530 = scalar_select %p529, %s35, 0
          %s531 = sadd.s32 %s530, %s528
          %s532 = smul.addr %s531, 8
          %s533 = scalar_lea.vmem %s0, %s532
        $region84: #{tpu_custom_call.1} parent=79 // pred_fallthru
          _
        // Predicated region
        $region85: #{tpu_custom_call.1} parent=79 // pred_check
          %p534 = pneg %p87
        $region86: #{tpu_custom_call.1} parent=79 // pred_check_branch
          %536 = sbr.rel (%p534) target = $region88
        $region87: #{tpu_custom_call.1} parent=79 // pred_region
          %p537 = scmp.lt.s32.totalorder %s34, 1
          %s538 = scalar_select %p537, %s34, 1
          %s539 = smul.addr %s538, 8
          %s540 = scalar_lea.vmem %s1, %s539
        $region88: #{tpu_custom_call.1} parent=79 // pred_fallthru
          _
      $region80: #{tpu_custom_call.1} parent=5 // pred_fallthru
        _
      %p541 = scmp.le.s32.totalorder 1, %s27
      %p542 = scmp.lt.s32.totalorder %s27, 3
      %p543 = pnand %p541, %p542
      %p544 = pneg %p543
      // Predicated region
      $region89: #{tpu_custom_call.1} parent=5 // pred_check
        _
      $region90: #{tpu_custom_call.1} parent=5 // pred_check_branch
        %546 = sbr.rel (%p543) target = $region92
      $region91: #{tpu_custom_call.1} parent=5 // pred_region
        %s547 = ssub.s32 %s27, 1
        %p548 = scmp.lt.s32.totalorder %s36, 1
        %s549 = scalar_select %p548, %s36, 1
        %p550 = scmp.lt.s32.totalorder %s37, 0
        %s551 = scalar_select %p550, %s37, 0
        %s552 = sadd.s32 %s551, %s549
        %s553 = smul.addr %s552, 8
        %s554 = scalar_lea.vmem %s0, %s553
        %p555 = pneg %p67
        %p556 = pneg %p64
        %p557 = scmp.lt.s32.totalorder %s36, 1
        %s558 = scalar_select %p557, %s36, 1
        %s559 = smul.addr %s558, 8
        %s560 = scalar_lea.vmem %s1, %s559
        %p561 = pneg %p93
        %p562 = pneg %p90
        %p563 = pneg %p114
        %p564 = pneg %p111
        %p565 = pneg %p135
        %p566 = pneg %p132
        %p567 = pneg %p156
        %p568 = pneg %p153
        %p569 = pneg %p177
        %p570 = pneg %p174
        %p571 = pneg %p198
        %p572 = pneg %p195
        %p573 = pneg %p219
        %p574 = pneg %p216
        %p575 = pneg %p240
        %p576 = pneg %p237
        %p577 = pneg %p261
        %p578 = pneg %p258
        %p579 = pneg %p282
        %p580 = pneg %p279
        %p581 = pneg %p303
        %p582 = pneg %p300
        %p583 = pneg %p324
        %p584 = pneg %p321
        %p585 = pneg %p345
        %p586 = pneg %p342
        %p587 = pneg %p366
        %p588 = pneg %p363
        %p589 = pneg %p387
        %p590 = pneg %p384
        %p591 = pneg %p408
        %p592 = pneg %p405
        %p593 = pneg %p429
        %p594 = pneg %p426
        %p595 = pneg %p457
        %p596 = pneg %p454
        %s597 = sand.u32 %s444, 1
        %s598 = scalar_lea.sflag [#allocation7], %s597
        %s599 = sand.u32 %s444, 1
        %s600 = smul.addr %s599, 8
        %s601 = scalar_lea.vmem [#allocation6], %s600
        %p602 = scmp.lt.s32.totalorder %s36, 1
        %s603 = scalar_select %p602, %s36, 1
        %p604 = scmp.lt.s32.totalorder %s37, 0
        %s605 = scalar_select %p604, %s37, 0
        %s606 = sadd.s32 %s605, %s603
        %s607 = smul.addr %s606, 8
        %s608 = scalar_lea.vmem %s0, %s607
        %p609 = scmp.lt.s32.totalorder %s36, 1
        %s610 = scalar_select %p609, %s36, 1
        %s611 = smul.addr %s610, 8
        %s612 = scalar_lea.vmem %s1, %s611
        %v613 = vld [vmem:[%s2] sm:$0x1]
        %v614 = vld [vmem:[%s3] sm:$0x1]
        %v615 = vld [vmem:[%s4] sm:$0x1]
        %v616 = vld [vmem:[%s5] sm:$0x1]
        %p617 = scmp.eq.s32.totalorder %s37, 0
        // Predicated region
        $region93: #{tpu_custom_call.1} parent=91 // pred_check
          %p618 = pneg %p617
        $region94: #{tpu_custom_call.1} parent=91 // pred_check_branch
          %620 = sbr.rel (%p618) target = $region96
        $region95: #{tpu_custom_call.1} parent=91 // pred_region
          %v621 = vld [vmem:[%s612] sm:$0xff]
          %vm622 = vcmask 261120
          %v623 = vsel %vm622, %v621, 0.0
          %624 = vadd.xlane.f32.xlu0 %v623
          %v625 = vpop.xlane.xlu0 %624
          %v626 = vrcp.pop 32.0
          %v627 = vmul.f32 %v625, %v626
          %v628 = vsub.f32 %v621, %v627
          %v629 = vmul.f32 %v628, %v628
          %v630 = vsel %vm622, %v629, 0.0
          %631 = vadd.xlane.f32.xlu0 %v630
          %v632 = vpop.xlane.xlu0 %631
          %v633 = vmul.f32 %v632, %v626
          %v634 = vadd.f32 %v633, 1e-05
          %v635 = vrsqrt.pop %v634
          %v636 = vmul.f32 %v628, %v635
          %v638 = vlaneseq
          %v639 = vshrl.u32 %v638, 7
          %v640 = vsub.s32 0, %v639
          %v641 = vrot.slane %v613, %v640
          %v643 = vmul.f32 %v636, %v641
          %v645 = vlaneseq
          %v646 = vshrl.u32 %v645, 7
          %v647 = vsub.s32 0, %v646
          %v648 = vrot.slane %v614, %v647
          %v650 = vadd.f32 %v643, %v648
          %v651 = vsel %vm622, %v650, 0.0
          %652 = vadd.xlane.f32.xlu0 %v651
          %v653 = vpop.xlane.xlu0 %652
          %v654 = vmul.f32 %v653, %v626
          %v655 = vsub.f32 %v650, %v654
          %v656 = vmul.f32 %v655, %v655
          %v657 = vsel %vm622, %v656, 0.0
          %658 = vadd.xlane.f32.xlu0 %v657
          %v659 = vpop.xlane.xlu0 %658
          %v660 = vmul.f32 %v659, %v626
          %v661 = vadd.f32 %v660, 1e-05
          %v662 = vrsqrt.pop %v661
          %v663 = vmul.f32 %v655, %v662
          %v665 = vlaneseq
          %v666 = vshrl.u32 %v665, 7
          %v667 = vsub.s32 0, %v666
          %v668 = vrot.slane %v615, %v667
          %v670 = vmul.f32 %v663, %v668
          %v672 = vlaneseq
          %v673 = vshrl.u32 %v672, 7
          %v674 = vsub.s32 0, %v673
          %v675 = vrot.slane %v616, %v674
          %v677 = vadd.f32 %v670, %v675
          %v678 = vld [vmem:[%s8] sm:$0xff]
          %v679 = vld [vmem:[%s8 + $0x8] sm:$0xff]
          %v680 = vld [vmem:[%s8 + $0x10] sm:$0xff]
          %v681 = vld [vmem:[%s8 + $0x18] sm:$0xff]
          %v682 = vld [vmem:[%s9] sm:$0x1]
          %v684 = vlaneseq
          %v685 = vshrl.u32 %v684, 7
          %v686 = vsub.s32 0, %v685
          %v687 = vrot.slane %v682, %v686
          %v690 = vsel %vm622, %v677, 0
          %692 = vmatprep.subr.mxu0 0.0
          %693 = vmatpush1.msra.mxu0 %v678
          %694 = vmatprep.subr.mxu0 0.0
          %695 = vmatpush1.msra.mxu0 %v679
          %696 = vmatprep.subr.mxu0 0.0
          %697 = vmatpush1.msra.mxu0 %v680
          %698 = vmatprep.subr.mxu0 0.0
          %699 = vmatpush1.msra.mxu0 %v681
          %700 = vmatprep.subr.mxu0 0.0
          %701 = vmatpush1.msra.mxu0 0.0
          %702 = vmatprep.subr.mxu0 0.0
          %703 = vmatpush1.msra.mxu0 0.0
          %704 = vmatprep.subr.mxu0 0.0
          %705 = vmatpush1.msra.mxu0 0.0
          %706 = vmatprep.subr.mxu0 0.0
          %707 = vmatpush1.msra.mxu0 0.0
          %708 = vmatprep.subr.mxu0 0.0
          %709 = vmatpush1.msra.mxu0 0.0
          %710 = vmatprep.subr.mxu0 0.0
          %711 = vmatpush1.msra.mxu0 0.0
          %712 = vmatprep.subr.mxu0 0.0
          %713 = vmatpush1.msra.mxu0 0.0
          %714 = vmatprep.subr.mxu0 0.0
          %715 = vmatpush1.msra.mxu0 0.0
          %716 = vmatprep.subr.mxu0 0.0
          %717 = vmatpush1.msra.mxu0 0.0
          %718 = vmatprep.subr.mxu0 0.0
          %719 = vmatpush1.msra.mxu0 0.0
          %720 = vmatprep.subr.mxu0 0.0
          %721 = vmatpush1.msra.mxu0 0.0
          %722 = vmatprep.subr.mxu0 0.0
          %723 = vmatpush1.msra.mxu0 0.0
          %724 = vmatprep.subr.mxu0 0.0
          %725 = vmatpush1.msra.mxu0 0.0
          %726 = vmatprep.subr.mxu0 0.0
          %727 = vmatpush1.msra.mxu0 0.0
          %728 = vmatprep.subr.mxu0 0.0
          %729 = vmatpush1.msra.mxu0 0.0
          %730 = vmatprep.subr.mxu0 0.0
          %731 = vmatpush1.msra.mxu0 0.0
          %732 = vmatprep.subr.mxu0 0.0
          %733 = vmatpush1.msra.mxu0 0.0
          %734 = vmatprep.subr.mxu0 0.0
          %735 = vmatpush1.msra.mxu0 0.0
          %736 = vmatprep.subr.mxu0 0.0
          %737 = vmatpush1.msra.mxu0 0.0
          %738 = vmatprep.subr.mxu0 0.0
          %739 = vmatpush1.msra.mxu0 0.0
          %740 = vmatprep.subr.mxu0 0.0
          %741 = vmatpush1.msra.mxu0 0.0
          %742 = vmatprep.subr.mxu0 0.0
          %743 = vmatpush1.msra.mxu0 0.0
          %744 = vmatprep.subr.mxu0 0.0
          %745 = vmatpush1.msra.mxu0 0.0
          %746 = vmatprep.subr.mxu0 0.0
          %747 = vmatpush1.msra.mxu0 0.0
          %748 = vmatprep.subr.mxu0 0.0
          %749 = vmatpush1.msra.mxu0 0.0
          %750 = vmatprep.subr.mxu0 0.0
          %751 = vmatpush1.msra.mxu0 0.0
          %752 = vmatprep.subr.mxu0 0.0
          %753 = vmatpush1.msra.mxu0 0.0
          %754 = vmatprep.subr.mxu0 0.0
          %755 = vmatpush1.msra.mxu0 0.0
          %756 = vmatprep.mubr.f32.mxu0 0.0
          %757 = vmatmul.mubr.f32.gmra.mrb[0].mxu0 %v690
          %v758 = vpop.f32.mrb[0].mxu0
          %v759 = vadd.f32 %v687, %v758
          %v760 = vpop.f32.mrb[0].mxu0
          %761 = vdwg.mxu0
          %vm762 = vcmask 64512
          %763 = vst.msk [vmem:[#allocation2] sm:$0xff] %vm762, %v759
          %765 = vrot.lane.b32.xlu0 %v759, 96
          %v766 = vpop.permute.xlu0 %765
          %768 = vst.msk [vmem:[#allocation3] sm:$0xff] %vm762, %v766
          %769 = vrot.lane.b32.xlu0 %v759, 120
          %v770 = vpop.permute.xlu0 %769
          %s772 = scalar_lea.vmem [#allocation2], 8
          %773 = vst.msk [vmem:[%s772] sm:$0xff] %vm762, %v770
          %774 = vrot.lane.b32.xlu0 %v759, 88
          %v775 = vpop.permute.xlu0 %774
          %s777 = scalar_lea.vmem [#allocation3], 8
          %778 = vst.msk [vmem:[%s777] sm:$0xff] %vm762, %v775
          %779 = vrot.lane.b32.xlu0 %v759, 112
          %v780 = vpop.permute.xlu0 %779
          %s782 = scalar_lea.vmem [#allocation2], 16
          %783 = vst.msk [vmem:[%s782] sm:$0xff] %vm762, %v780
          %784 = vrot.lane.b32.xlu0 %v759, 80
          %v785 = vpop.permute.xlu0 %784
          %s787 = scalar_lea.vmem [#allocation3], 16
          %788 = vst.msk [vmem:[%s787] sm:$0xff] %vm762, %v785
          %789 = vrot.lane.b32.xlu0 %v759, 104
          %v790 = vpop.permute.xlu0 %789
          %s792 = scalar_lea.vmem [#allocation2], 24
          %793 = vst.msk [vmem:[%s792] sm:$0xff] %vm762, %v790
          %794 = vrot.lane.b32.xlu0 %v759, 72
          %v795 = vpop.permute.xlu0 %794
          %s797 = scalar_lea.vmem [#allocation3], 24
          %798 = vst.msk [vmem:[%s797] sm:$0xff] %vm762, %v795
        $region96: #{tpu_custom_call.1} parent=91 // pred_fallthru
          _
        %v799 = vld [vmem:[%s608] sm:$0xff]
        %vm800 = vcmask 261120
        %v801 = vsel %vm800, %v799, 0.0
        %802 = vadd.xlane.f32.xlu0 %v801
        %v803 = vpop.xlane.xlu0 %802
        %v804 = vrcp.pop 32.0
        %v805 = vmul.f32 %v803, %v804
        %v806 = vsub.f32 %v799, %v805
        %v807 = vmul.f32 %v806, %v806
        %v808 = vsel %vm800, %v807, 0.0
        %809 = vadd.xlane.f32.xlu0 %v808
        %v810 = vpop.xlane.xlu0 %809
        %v811 = vmul.f32 %v810, %v804
        %v812 = vadd.f32 %v811, 1e-05
        %v813 = vrsqrt.pop %v812
        %v814 = vmul.f32 %v806, %v813
        %v816 = vlaneseq
        %v817 = vshrl.u32 %v816, 7
        %v818 = vsub.s32 0, %v817
        %v819 = vrot.slane %v613, %v818
        %v821 = vmul.f32 %v814, %v819
        %v823 = vlaneseq
        %v824 = vshrl.u32 %v823, 7
        %v825 = vsub.s32 0, %v824
        %v826 = vrot.slane %v614, %v825
        %v828 = vadd.f32 %v821, %v826
        %v829 = vsel %vm800, %v828, 0.0
        %830 = vadd.xlane.f32.xlu0 %v829
        %v831 = vpop.xlane.xlu0 %830
        %v832 = vmul.f32 %v831, %v804
        %v833 = vsub.f32 %v828, %v832
        %v834 = vmul.f32 %v833, %v833
        %v835 = vsel %vm800, %v834, 0.0
        %836 = vadd.xlane.f32.xlu0 %v835
        %v837 = vpop.xlane.xlu0 %836
        %v838 = vmul.f32 %v837, %v804
        %v839 = vadd.f32 %v838, 1e-05
        %v840 = vrsqrt.pop %v839
        %v841 = vmul.f32 %v833, %v840
        %v843 = vlaneseq
        %v844 = vshrl.u32 %v843, 7
        %v845 = vsub.s32 0, %v844
        %v846 = vrot.slane %v615, %v845
        %v848 = vmul.f32 %v841, %v846
        %v850 = vlaneseq
        %v851 = vshrl.u32 %v850, 7
        %v852 = vsub.s32 0, %v851
        %v853 = vrot.slane %v616, %v852
        %v855 = vadd.f32 %v848, %v853
        %v856 = vld [vmem:[%s6] sm:$0xff]
        %v857 = vld [vmem:[%s6 + $0x8] sm:$0xff]
        %v858 = vld [vmem:[%s6 + $0x10] sm:$0xff]
        %v859 = vld [vmem:[%s6 + $0x18] sm:$0xff]
        %v860 = vld [vmem:[%s7] sm:$0x1]
        %v862 = vlaneseq
        %v863 = vshrl.u32 %v862, 7
        %v864 = vsub.s32 0, %v863
        %v865 = vrot.slane %v860, %v864
        %v868 = vsel %vm800, %v855, 0
        %870 = vmatprep.subr.mxu0 0.0
        %871 = vmatpush1.msra.mxu0 %v856
        %872 = vmatprep.subr.mxu0 0.0
        %873 = vmatpush1.msra.mxu0 %v857
        %874 = vmatprep.subr.mxu0 0.0
        %875 = vmatpush1.msra.mxu0 %v858
        %876 = vmatprep.subr.mxu0 0.0
        %877 = vmatpush1.msra.mxu0 %v859
        %878 = vmatprep.subr.mxu0 0.0
        %879 = vmatpush1.msra.mxu0 0.0
        %880 = vmatprep.subr.mxu0 0.0
        %881 = vmatpush1.msra.mxu0 0.0
        %882 = vmatprep.subr.mxu0 0.0
        %883 = vmatpush1.msra.mxu0 0.0
        %884 = vmatprep.subr.mxu0 0.0
        %885 = vmatpush1.msra.mxu0 0.0
        %886 = vmatprep.subr.mxu0 0.0
        %887 = vmatpush1.msra.mxu0 0.0
        %888 = vmatprep.subr.mxu0 0.0
        %889 = vmatpush1.msra.mxu0 0.0
        %890 = vmatprep.subr.mxu0 0.0
        %891 = vmatpush1.msra.mxu0 0.0
        %892 = vmatprep.subr.mxu0 0.0
        %893 = vmatpush1.msra.mxu0 0.0
        %894 = vmatprep.subr.mxu0 0.0
        %895 = vmatpush1.msra.mxu0 0.0
        %896 = vmatprep.subr.mxu0 0.0
        %897 = vmatpush1.msra.mxu0 0.0
        %898 = vmatprep.subr.mxu0 0.0
        %899 = vmatpush1.msra.mxu0 0.0
        %900 = vmatprep.subr.mxu0 0.0
        %901 = vmatpush1.msra.mxu0 0.0
        %902 = vmatprep.subr.mxu0 0.0
        %903 = vmatpush1.msra.mxu0 0.0
        %904 = vmatprep.subr.mxu0 0.0
        %905 = vmatpush1.msra.mxu0 0.0
        %906 = vmatprep.subr.mxu0 0.0
        %907 = vmatpush1.msra.mxu0 0.0
        %908 = vmatprep.subr.mxu0 0.0
        %909 = vmatpush1.msra.mxu0 0.0
        %910 = vmatprep.subr.mxu0 0.0
        %911 = vmatpush1.msra.mxu0 0.0
        %912 = vmatprep.subr.mxu0 0.0
        %913 = vmatpush1.msra.mxu0 0.0
        %914 = vmatprep.subr.mxu0 0.0
        %915 = vmatpush1.msra.mxu0 0.0
        %916 = vmatprep.subr.mxu0 0.0
        %917 = vmatpush1.msra.mxu0 0.0
        %918 = vmatprep.subr.mxu0 0.0
        %919 = vmatpush1.msra.mxu0 0.0
        %920 = vmatprep.subr.mxu0 0.0
        %921 = vmatpush1.msra.mxu0 0.0
        %922 = vmatprep.subr.mxu0 0.0
        %923 = vmatpush1.msra.mxu0 0.0
        %924 = vmatprep.subr.mxu0 0.0
        %925 = vmatpush1.msra.mxu0 0.0
        %926 = vmatprep.subr.mxu0 0.0
        %927 = vmatpush1.msra.mxu0 0.0
        %928 = vmatprep.subr.mxu0 0.0
        %929 = vmatpush1.msra.mxu0 0.0
        %930 = vmatprep.subr.mxu0 0.0
        %931 = vmatpush1.msra.mxu0 0.0
        %932 = vmatprep.subr.mxu0 0.0
        %933 = vmatpush1.msra.mxu0 0.0
        %934 = vmatprep.mubr.f32.mxu0 0.0
        %935 = vmatmul.mubr.f32.gmra.mrb[0].mxu0 %v868
        %v936 = vpop.f32.mrb[0].mxu0
        %v937 = vadd.f32 %v865, %v936
        %v938 = vpop.f32.mrb[0].mxu0
        %939 = vdwg.mxu0
        %v940 = vmul.f32 %v937, 0.35355338
        %vm941 = vcmask 64512
        %942 = vst.msk [vmem:[#allocation4] sm:$0xff] %vm941, %v940
        %944 = vrot.lane.b32.xlu0 %v940, 120
        %v945 = vpop.permute.xlu0 %944
        %s947 = scalar_lea.vmem [#allocation4], 8
        %948 = vst.msk [vmem:[%s947] sm:$0xff] %vm941, %v945
        %949 = vrot.lane.b32.xlu0 %v940, 112
        %v950 = vpop.permute.xlu0 %949
        %s952 = scalar_lea.vmem [#allocation4], 16
        %953 = vst.msk [vmem:[%s952] sm:$0xff] %vm941, %v950
        %954 = vrot.lane.b32.xlu0 %v940, 104
        %v955 = vpop.permute.xlu0 %954
        %s957 = scalar_lea.vmem [#allocation4], 24
        %958 = vst.msk [vmem:[%s957] sm:$0xff] %vm941, %v955
        %v959 = vld [vmem:[#allocation4] sm:$0xff]
        %v960 = vld [vmem:[#allocation4 + $0x8] sm:$0xff]
        %v961 = vld [vmem:[#allocation4 + $0x10] sm:$0xff]
        %v962 = vld [vmem:[#allocation4 + $0x18] sm:$0xff]
        %v963 = vld [vmem:[#allocation2] sm:$0xff]
        %v964 = vld [vmem:[#allocation2 + $0x8] sm:$0xff]
        %v965 = vld [vmem:[#allocation2 + $0x10] sm:$0xff]
        %v966 = vld [vmem:[#allocation2 + $0x18] sm:$0xff]
        %v968 = vsel %vm941, %v959, 0
        %v971 = vsel %vm941, %v963, 0
        %973 = vmatprep.subr.mxu0 0.0
        %974 = vmatpush1.xpose.msra.mxu0 %v971
        %975 = vmatprep.subr.mxu0 0.0
        %976 = vmatpush1.xpose.msra.mxu0 0.0
        %977 = vmatprep.subr.mxu0 0.0
        %978 = vmatpush1.xpose.msra.mxu0 0.0
        %979 = vmatprep.subr.mxu0 0.0
        %980 = vmatpush1.xpose.msra.mxu0 0.0
        %981 = vmatprep.subr.mxu0 0.0
        %982 = vmatpush1.xpose.msra.mxu0 0.0
        %983 = vmatprep.subr.mxu0 0.0
        %984 = vmatpush1.xpose.msra.mxu0 0.0
        %985 = vmatprep.subr.mxu0 0.0
        %986 = vmatpush1.xpose.msra.mxu0 0.0
        %987 = vmatprep.subr.mxu0 0.0
        %988 = vmatpush1.xpose.msra.mxu0 0.0
        %989 = vmatprep.subr.mxu0 0.0
        %990 = vmatpush1.xpose.msra.mxu0 0.0
        %991 = vmatprep.subr.mxu0 0.0
        %992 = vmatpush1.xpose.msra.mxu0 0.0
        %993 = vmatprep.subr.mxu0 0.0
        %994 = vmatpush1.xpose.msra.mxu0 0.0
        %995 = vmatprep.subr.mxu0 0.0
        %996 = vmatpush1.xpose.msra.mxu0 0.0
        %997 = vmatprep.subr.mxu0 0.0
        %998 = vmatpush1.xpose.msra.mxu0 0.0
        %999 = vmatprep.subr.mxu0 0.0
        %1000 = vmatpush1.xpose.msra.mxu0 0.0
        %1001 = vmatprep.subr.mxu0 0.0
        %1002 = vmatpush1.xpose.msra.mxu0 0.0
        %1003 = vmatprep.subr.mxu0 0.0
        %1004 = vmatpush1.xpose.msra.mxu0 0.0
        %1005 = vmatprep.subr.mxu0 0.0
        %1006 = vmatpush1.xpose.msra.mxu0 0.0
        %1007 = vmatprep.subr.mxu0 0.0
        %1008 = vmatpush1.xpose.msra.mxu0 0.0
        %1009 = vmatprep.subr.mxu0 0.0
        %1010 = vmatpush1.xpose.msra.mxu0 0.0
        %1011 = vmatprep.subr.mxu0 0.0
        %1012 = vmatpush1.xpose.msra.mxu0 0.0
        %1013 = vmatprep.subr.mxu0 0.0
        %1014 = vmatpush1.xpose.msra.mxu0 0.0
        %1015 = vmatprep.subr.mxu0 0.0
        %1016 = vmatpush1.xpose.msra.mxu0 0.0
        %1017 = vmatprep.subr.mxu0 0.0
        %1018 = vmatpush1.xpose.msra.mxu0 0.0
        %1019 = vmatprep.subr.mxu0 0.0
        %1020 = vmatpush1.xpose.msra.mxu0 0.0
        %1021 = vmatprep.subr.mxu0 0.0
        %1022 = vmatpush1.xpose.msra.mxu0 0.0
        %1023 = vmatprep.subr.mxu0 0.0
        %1024 = vmatpush1.xpose.msra.mxu0 0.0
        %1025 = vmatprep.subr.mxu0 0.0
        %1026 = vmatpush1.xpose.msra.mxu0 0.0
        %1027 = vmatprep.subr.mxu0 0.0
        %1028 = vmatpush1.xpose.msra.mxu0 0.0
        %1029 = vmatprep.subr.mxu0 0.0
        %1030 = vmatpush1.xpose.msra.mxu0 0.0
        %1031 = vmatprep.subr.mxu0 0.0
        %1032 = vmatpush1.xpose.msra.mxu0 0.0
        %1033 = vmatprep.subr.mxu0 0.0
        %1034 = vmatpush1.xpose.msra.mxu0 0.0
        %1035 = vmatprep.subr.mxu0 0.0
        %1036 = vmatpush1.xpose.msra.mxu0 0.0
        %1037 = vmatprep.mubr.f32.mxu0 0.0
        %1038 = vmatmul.mubr.f32.gmra.mrb[0].mxu0 %v968
        %v1039 = vpop.f32.mrb[0].mxu0
        %v1040 = vadd.f32 0.0, %v1039
        %v1041 = vpop.f32.mrb[0].mxu0
        %1042 = vdwg.mxu0
        %v1044 = vsel %vm941, %v960, 0
        %v1047 = vsel %vm941, %v964, 0
        %1049 = vmatprep.subr.mxu0 0.0
        %1050 = vmatpush1.xpose.msra.mxu0 %v1047
        %1051 = vmatprep.subr.mxu0 0.0
        %1052 = vmatpush1.xpose.msra.mxu0 0.0
        %1053 = vmatprep.subr.mxu0 0.0
        %1054 = vmatpush1.xpose.msra.mxu0 0.0
        %1055 = vmatprep.subr.mxu0 0.0
        %1056 = vmatpush1.xpose.msra.mxu0 0.0
        %1057 = vmatprep.subr.mxu0 0.0
        %1058 = vmatpush1.xpose.msra.mxu0 0.0
        %1059 = vmatprep.subr.mxu0 0.0
        %1060 = vmatpush1.xpose.msra.mxu0 0.0
        %1061 = vmatprep.subr.mxu0 0.0
        %1062 = vmatpush1.xpose.msra.mxu0 0.0
        %1063 = vmatprep.subr.mxu0 0.0
        %1064 = vmatpush1.xpose.msra.mxu0 0.0
        %1065 = vmatprep.subr.mxu0 0.0
        %1066 = vmatpush1.xpose.msra.mxu0 0.0
        %1067 = vmatprep.subr.mxu0 0.0
        %1068 = vmatpush1.xpose.msra.mxu0 0.0
        %1069 = vmatprep.subr.mxu0 0.0
        %1070 = vmatpush1.xpose.msra.mxu0 0.0
        %1071 = vmatprep.subr.mxu0 0.0
        %1072 = vmatpush1.xpose.msra.mxu0 0.0
        %1073 = vmatprep.subr.mxu0 0.0
        %1074 = vmatpush1.xpose.msra.mxu0 0.0
        %1075 = vmatprep.subr.mxu0 0.0
        %1076 = vmatpush1.xpose.msra.mxu0 0.0
        %1077 = vmatprep.subr.mxu0 0.0
        %1078 = vmatpush1.xpose.msra.mxu0 0.0
        %1079 = vmatprep.subr.mxu0 0.0
        %1080 = vmatpush1.xpose.msra.mxu0 0.0
        %1081 = vmatprep.subr.mxu0 0.0
        %1082 = vmatpush1.xpose.msra.mxu0 0.0
        %1083 = vmatprep.subr.mxu0 0.0
        %1084 = vmatpush1.xpose.msra.mxu0 0.0
        %1085 = vmatprep.subr.mxu0 0.0
        %1086 = vmatpush1.xpose.msra.mxu0 0.0
        %1087 = vmatprep.subr.mxu0 0.0
        %1088 = vmatpush1.xpose.msra.mxu0 0.0
        %1089 = vmatprep.subr.mxu0 0.0
        %1090 = vmatpush1.xpose.msra.mxu0 0.0
        %1091 = vmatprep.subr.mxu0 0.0
        %1092 = vmatpush1.xpose.msra.mxu0 0.0
        %1093 = vmatprep.subr.mxu0 0.0
        %1094 = vmatpush1.xpose.msra.mxu0 0.0
        %1095 = vmatprep.subr.mxu0 0.0
        %1096 = vmatpush1.xpose.msra.mxu0 0.0
        %1097 = vmatprep.subr.mxu0 0.0
        %1098 = vmatpush1.xpose.msra.mxu0 0.0
        %1099 = vmatprep.subr.mxu0 0.0
        %1100 = vmatpush1.xpose.msra.mxu0 0.0
        %1101 = vmatprep.subr.mxu0 0.0
        %1102 = vmatpush1.xpose.msra.mxu0 0.0
        %1103 = vmatprep.subr.mxu0 0.0
        %1104 = vmatpush1.xpose.msra.mxu0 0.0
        %1105 = vmatprep.subr.mxu0 0.0
        %1106 = vmatpush1.xpose.msra.mxu0 0.0
        %1107 = vmatprep.subr.mxu0 0.0
        %1108 = vmatpush1.xpose.msra.mxu0 0.0
        %1109 = vmatprep.subr.mxu0 0.0
        %1110 = vmatpush1.xpose.msra.mxu0 0.0
        %1111 = vmatprep.subr.mxu0 0.0
        %1112 = vmatpush1.xpose.msra.mxu0 0.0
        %1113 = vmatprep.mubr.f32.mxu0 0.0
        %1114 = vmatmul.mubr.f32.gmra.mrb[0].mxu0 %v1044
        %v1115 = vpop.f32.mrb[0].mxu0
        %v1116 = vadd.f32 0.0, %v1115
        %v1117 = vpop.f32.mrb[0].mxu0
        %1118 = vdwg.mxu0
        %v1120 = vsel %vm941, %v961, 0
        %v1123 = vsel %vm941, %v965, 0
        %1125 = vmatprep.subr.mxu0 0.0
        %1126 = vmatpush1.xpose.msra.mxu0 %v1123
        %1127 = vmatprep.subr.mxu0 0.0
        %1128 = vmatpush1.xpose.msra.mxu0 0.0
        %1129 = vmatprep.subr.mxu0 0.0
        %1130 = vmatpush1.xpose.msra.mxu0 0.0
        %1131 = vmatprep.subr.mxu0 0.0
        %1132 = vmatpush1.xpose.msra.mxu0 0.0
        %1133 = vmatprep.subr.mxu0 0.0
        %1134 = vmatpush1.xpose.msra.mxu0 0.0
        %1135 = vmatprep.subr.mxu0 0.0
        %1136 = vmatpush1.xpose.msra.mxu0 0.0
        %1137 = vmatprep.subr.mxu0 0.0
        %1138 = vmatpush1.xpose.msra.mxu0 0.0
        %1139 = vmatprep.subr.mxu0 0.0
        %1140 = vmatpush1.xpose.msra.mxu0 0.0
        %1141 = vmatprep.subr.mxu0 0.0
        %1142 = vmatpush1.xpose.msra.mxu0 0.0
        %1143 = vmatprep.subr.mxu0 0.0
        %1144 = vmatpush1.xpose.msra.mxu0 0.0
        %1145 = vmatprep.subr.mxu0 0.0
        %1146 = vmatpush1.xpose.msra.mxu0 0.0
        %1147 = vmatprep.subr.mxu0 0.0
        %1148 = vmatpush1.xpose.msra.mxu0 0.0
        %1149 = vmatprep.subr.mxu0 0.0
        %1150 = vmatpush1.xpose.msra.mxu0 0.0
        %1151 = vmatprep.subr.mxu0 0.0
        %1152 = vmatpush1.xpose.msra.mxu0 0.0
        %1153 = vmatprep.subr.mxu0 0.0
        %1154 = vmatpush1.xpose.msra.mxu0 0.0
        %1155 = vmatprep.subr.mxu0 0.0
        %1156 = vmatpush1.xpose.msra.mxu0 0.0
        %1157 = vmatprep.subr.mxu0 0.0
        %1158 = vmatpush1.xpose.msra.mxu0 0.0
        %1159 = vmatprep.subr.mxu0 0.0
        %1160 = vmatpush1.xpose.msra.mxu0 0.0
        %1161 = vmatprep.subr.mxu0 0.0
        %1162 = vmatpush1.xpose.msra.mxu0 0.0
        %1163 = vmatprep.subr.mxu0 0.0
        %1164 = vmatpush1.xpose.msra.mxu0 0.0
        %1165 = vmatprep.subr.mxu0 0.0
        %1166 = vmatpush1.xpose.msra.mxu0 0.0
        %1167 = vmatprep.subr.mxu0 0.0
        %1168 = vmatpush1.xpose.msra.mxu0 0.0
        %1169 = vmatprep.subr.mxu0 0.0
        %1170 = vmatpush1.xpose.msra.mxu0 0.0
        %1171 = vmatprep.subr.mxu0 0.0
        %1172 = vmatpush1.xpose.msra.mxu0 0.0
        %1173 = vmatprep.subr.mxu0 0.0
        %1174 = vmatpush1.xpose.msra.mxu0 0.0
        %1175 = vmatprep.subr.mxu0 0.0
        %1176 = vmatpush1.xpose.msra.mxu0 0.0
        %1177 = vmatprep.subr.mxu0 0.0
        %1178 = vmatpush1.xpose.msra.mxu0 0.0
        %1179 = vmatprep.subr.mxu0 0.0
        %1180 = vmatpush1.xpose.msra.mxu0 0.0
        %1181 = vmatprep.subr.mxu0 0.0
        %1182 = vmatpush1.xpose.msra.mxu0 0.0
        %1183 = vmatprep.subr.mxu0 0.0
        %1184 = vmatpush1.xpose.msra.mxu0 0.0
        %1185 = vmatprep.subr.mxu0 0.0
        %1186 = vmatpush1.xpose.msra.mxu0 0.0
        %1187 = vmatprep.subr.mxu0 0.0
        %1188 = vmatpush1.xpose.msra.mxu0 0.0
        %1189 = vmatprep.mubr.f32.mxu0 0.0
        %1190 = vmatmul.mubr.f32.gmra.mrb[0].mxu0 %v1120
        %v1191 = vpop.f32.mrb[0].mxu0
        %v1192 = vadd.f32 0.0, %v1191
        %v1193 = vpop.f32.mrb[0].mxu0
        %1194 = vdwg.mxu0
        %v1196 = vsel %vm941, %v962, 0
        %v1199 = vsel %vm941, %v966, 0
        %1201 = vmatprep.subr.mxu0 0.0
        %1202 = vmatpush1.xpose.msra.mxu0 %v1199
        %1203 = vmatprep.subr.mxu0 0.0
        %1204 = vmatpush1.xpose.msra.mxu0 0.0
        %1205 = vmatprep.subr.mxu0 0.0
        %1206 = vmatpush1.xpose.msra.mxu0 0.0
        %1207 = vmatprep.subr.mxu0 0.0
        %1208 = vmatpush1.xpose.msra.mxu0 0.0
        %1209 = vmatprep.subr.mxu0 0.0
        %1210 = vmatpush1.xpose.msra.mxu0 0.0
        %1211 = vmatprep.subr.mxu0 0.0
        %1212 = vmatpush1.xpose.msra.mxu0 0.0
        %1213 = vmatprep.subr.mxu0 0.0
        %1214 = vmatpush1.xpose.msra.mxu0 0.0
        %1215 = vmatprep.subr.mxu0 0.0
        %1216 = vmatpush1.xpose.msra.mxu0 0.0
        %1217 = vmatprep.subr.mxu0 0.0
        %1218 = vmatpush1.xpose.msra.mxu0 0.0
        %1219 = vmatprep.subr.mxu0 0.0
        %1220 = vmatpush1.xpose.msra.mxu0 0.0
        %1221 = vmatprep.subr.mxu0 0.0
        %1222 = vmatpush1.xpose.msra.mxu0 0.0
        %1223 = vmatprep.subr.mxu0 0.0
        %1224 = vmatpush1.xpose.msra.mxu0 0.0
        %1225 = vmatprep.subr.mxu0 0.0
        %1226 = vmatpush1.xpose.msra.mxu0 0.0
        %1227 = vmatprep.subr.mxu0 0.0
        %1228 = vmatpush1.xpose.msra.mxu0 0.0
        %1229 = vmatprep.subr.mxu0 0.0
        %1230 = vmatpush1.xpose.msra.mxu0 0.0
        %1231 = vmatprep.subr.mxu0 0.0
        %1232 = vmatpush1.xpose.msra.mxu0 0.0
        %1233 = vmatprep.subr.mxu0 0.0
        %1234 = vmatpush1.xpose.msra.mxu0 0.0
        %1235 = vmatprep.subr.mxu0 0.0
        %1236 = vmatpush1.xpose.msra.mxu0 0.0
        %1237 = vmatprep.subr.mxu0 0.0
        %1238 = vmatpush1.xpose.msra.mxu0 0.0
        %1239 = vmatprep.subr.mxu0 0.0
        %1240 = vmatpush1.xpose.msra.mxu0 0.0
        %1241 = vmatprep.subr.mxu0 0.0
        %1242 = vmatpush1.xpose.msra.mxu0 0.0
        %1243 = vmatprep.subr.mxu0 0.0
        %1244 = vmatpush1.xpose.msra.mxu0 0.0
        %1245 = vmatprep.subr.mxu0 0.0
        %1246 = vmatpush1.xpose.msra.mxu0 0.0
        %1247 = vmatprep.subr.mxu0 0.0
        %1248 = vmatpush1.xpose.msra.mxu0 0.0
        %1249 = vmatprep.subr.mxu0 0.0
        %1250 = vmatpush1.xpose.msra.mxu0 0.0
        %1251 = vmatprep.subr.mxu0 0.0
        %1252 = vmatpush1.xpose.msra.mxu0 0.0
        %1253 = vmatprep.subr.mxu0 0.0
        %1254 = vmatpush1.xpose.msra.mxu0 0.0
        %1255 = vmatprep.subr.mxu0 0.0
        %1256 = vmatpush1.xpose.msra.mxu0 0.0
        %1257 = vmatprep.subr.mxu0 0.0
        %1258 = vmatpush1.xpose.msra.mxu0 0.0
        %1259 = vmatprep.subr.mxu0 0.0
        %1260 = vmatpush1.xpose.msra.mxu0 0.0
        %1261 = vmatprep.subr.mxu0 0.0
        %1262 = vmatpush1.xpose.msra.mxu0 0.0
        %1263 = vmatprep.subr.mxu0 0.0
        %1264 = vmatpush1.xpose.msra.mxu0 0.0
        %1265 = vmatprep.mubr.f32.mxu0 0.0
        %1266 = vmatmul.mubr.f32.gmra.mrb[0].mxu0 %v1196
        %v1267 = vpop.f32.mrb[0].mxu0
        %v1268 = vadd.f32 0.0, %v1267
        %v1269 = vpop.f32.mrb[0].mxu0
        %1270 = vdwg.mxu0
        %v1271 = vsel %vm941, %v1040, -inf
        %1272 = vmax.xlane.f32.xlu0 %v1271
        %v1273 = vpop.xlane.xlu0 %1272
        %v1274 = vsel %vm941, %v1116, -inf
        %1275 = vmax.xlane.f32.xlu0 %v1274
        %v1276 = vpop.xlane.xlu0 %1275
        %v1277 = vsel %vm941, %v1192, -inf
        %1278 = vmax.xlane.f32.xlu0 %v1277
        %v1279 = vpop.xlane.xlu0 %1278
        %v1280 = vsel %vm941, %v1268, -inf
        %1281 = vmax.xlane.f32.xlu0 %v1280
        %v1282 = vpop.xlane.xlu0 %1281
        %v1283 = vsub.f32 %v1040, %v1273
        %v1284 = vsub.f32 %v1116, %v1276
        %v1285 = vsub.f32 %v1192, %v1279
        %v1286 = vsub.f32 %v1268, %v1282
        %v1287 = vmul.f32 %v1283, 1.442695
        %v1288 = vpow.pop %v1287
        %v1289 = vmul.f32 %v1284, 1.442695
        %v1290 = vpow.pop %v1289
        %v1291 = vmul.f32 %v1285, 1.442695
        %v1292 = vpow.pop %v1291
        %v1293 = vmul.f32 %v1286, 1.442695
        %v1294 = vpow.pop %v1293
        %v1295 = vsel %vm941, %v1288, 0.0
        %1296 = vadd.xlane.f32.xlu0 %v1295
        %v1297 = vpop.xlane.xlu0 %1296
        %v1298 = vsel %vm941, %v1290, 0.0
        %1299 = vadd.xlane.f32.xlu0 %v1298
        %v1300 = vpop.xlane.xlu0 %1299
        %v1301 = vsel %vm941, %v1292, 0.0
        %1302 = vadd.xlane.f32.xlu0 %v1301
        %v1303 = vpop.xlane.xlu0 %1302
        %v1304 = vsel %vm941, %v1294, 0.0
        %1305 = vadd.xlane.f32.xlu0 %v1304
        %v1306 = vpop.xlane.xlu0 %1305
        %v1307 = vrcp.pop %v1297
        %v1308 = vmul.f32 1.0, %v1307
        %v1309 = vrcp.pop %v1300
        %v1310 = vmul.f32 1.0, %v1309
        %v1311 = vrcp.pop %v1303
        %v1312 = vmul.f32 1.0, %v1311
        %v1313 = vrcp.pop %v1306
        %v1314 = vmul.f32 1.0, %v1313
        %v1315 = vmul.f32 %v1288, %v1308
        %v1316 = vmul.f32 %v1290, %v1310
        %v1317 = vmul.f32 %v1292, %v1312
        %v1318 = vmul.f32 %v1294, %v1314
        %v1319 = vld [vmem:[#allocation3] sm:$0xff]
        %v1320 = vld [vmem:[#allocation3 + $0x8] sm:$0xff]
        %v1321 = vld [vmem:[#allocation3 + $0x10] sm:$0xff]
        %v1322 = vld [vmem:[#allocation3 + $0x18] sm:$0xff]
        %v1324 = vsel %vm941, %v1315, 0
        %1326 = vmatprep.subr.mxu0 0.0
        %1327 = vmatpush1.msra.mxu0 %v1319
        %1328 = vmatprep.subr.mxu0 0.0
        %1329 = vmatpush1.msra.mxu0 0.0
        %1330 = vmatprep.subr.mxu0 0.0
        %1331 = vmatpush1.msra.mxu0 0.0
        %1332 = vmatprep.subr.mxu0 0.0
        %1333 = vmatpush1.msra.mxu0 0.0
        %1334 = vmatprep.subr.mxu0 0.0
        %1335 = vmatpush1.msra.mxu0 0.0
        %1336 = vmatprep.subr.mxu0 0.0
        %1337 = vmatpush1.msra.mxu0 0.0
        %1338 = vmatprep.subr.mxu0 0.0
        %1339 = vmatpush1.msra.mxu0 0.0
        %1340 = vmatprep.subr.mxu0 0.0
        %1341 = vmatpush1.msra.mxu0 0.0
        %1342 = vmatprep.subr.mxu0 0.0
        %1343 = vmatpush1.msra.mxu0 0.0
        %1344 = vmatprep.subr.mxu0 0.0
        %1345 = vmatpush1.msra.mxu0 0.0
        %1346 = vmatprep.subr.mxu0 0.0
        %1347 = vmatpush1.msra.mxu0 0.0
        %1348 = vmatprep.subr.mxu0 0.0
        %1349 = vmatpush1.msra.mxu0 0.0
        %1350 = vmatprep.subr.mxu0 0.0
        %1351 = vmatpush1.msra.mxu0 0.0
        %1352 = vmatprep.subr.mxu0 0.0
        %1353 = vmatpush1.msra.mxu0 0.0
        %1354 = vmatprep.subr.mxu0 0.0
        %1355 = vmatpush1.msra.mxu0 0.0
        %1356 = vmatprep.subr.mxu0 0.0
        %1357 = vmatpush1.msra.mxu0 0.0
        %1358 = vmatprep.subr.mxu0 0.0
        %1359 = vmatpush1.msra.mxu0 0.0
        %1360 = vmatprep.subr.mxu0 0.0
        %1361 = vmatpush1.msra.mxu0 0.0
        %1362 = vmatprep.subr.mxu0 0.0
        %1363 = vmatpush1.msra.mxu0 0.0
        %1364 = vmatprep.subr.mxu0 0.0
        %1365 = vmatpush1.msra.mxu0 0.0
        %1366 = vmatprep.subr.mxu0 0.0
        %1367 = vmatpush1.msra.mxu0 0.0
        %1368 = vmatprep.subr.mxu0 0.0
        %1369 = vmatpush1.msra.mxu0 0.0
        %1370 = vmatprep.subr.mxu0 0.0
        %1371 = vmatpush1.msra.mxu0 0.0
        %1372 = vmatprep.subr.mxu0 0.0
        %1373 = vmatpush1.msra.mxu0 0.0
        %1374 = vmatprep.subr.mxu0 0.0
        %1375 = vmatpush1.msra.mxu0 0.0
        %1376 = vmatprep.subr.mxu0 0.0
        %1377 = vmatpush1.msra.mxu0 0.0
        %1378 = vmatprep.subr.mxu0 0.0
        %1379 = vmatpush1.msra.mxu0 0.0
        %1380 = vmatprep.subr.mxu0 0.0
        %1381 = vmatpush1.msra.mxu0 0.0
        %1382 = vmatprep.subr.mxu0 0.0
        %1383 = vmatpush1.msra.mxu0 0.0
        %1384 = vmatprep.subr.mxu0 0.0
        %1385 = vmatpush1.msra.mxu0 0.0
        %1386 = vmatprep.subr.mxu0 0.0
        %1387 = vmatpush1.msra.mxu0 0.0
        %1388 = vmatprep.subr.mxu0 0.0
        %1389 = vmatpush1.msra.mxu0 0.0
        %1390 = vmatprep.mubr.f32.mxu0 0.0
        %1391 = vmatmul.mubr.f32.gmra.mrb[0].mxu0 %v1324
        %v1392 = vpop.f32.mrb[0].mxu0
        %v1393 = vadd.f32 0.0, %v1392
        %v1394 = vpop.f32.mrb[0].mxu0
        %1395 = vdwg.mxu0
        %v1397 = vsel %vm941, %v1316, 0
        %1399 = vmatprep.subr.mxu0 0.0
        %1400 = vmatpush1.msra.mxu0 %v1320
        %1401 = vmatprep.subr.mxu0 0.0
        %1402 = vmatpush1.msra.mxu0 0.0
        %1403 = vmatprep.subr.mxu0 0.0
        %1404 = vmatpush1.msra.mxu0 0.0
        %1405 = vmatprep.subr.mxu0 0.0
        %1406 = vmatpush1.msra.mxu0 0.0
        %1407 = vmatprep.subr.mxu0 0.0
        %1408 = vmatpush1.msra.mxu0 0.0
        %1409 = vmatprep.subr.mxu0 0.0
        %1410 = vmatpush1.msra.mxu0 0.0
        %1411 = vmatprep.subr.mxu0 0.0
        %1412 = vmatpush1.msra.mxu0 0.0
        %1413 = vmatprep.subr.mxu0 0.0
        %1414 = vmatpush1.msra.mxu0 0.0
        %1415 = vmatprep.subr.mxu0 0.0
        %1416 = vmatpush1.msra.mxu0 0.0
        %1417 = vmatprep.subr.mxu0 0.0
        %1418 = vmatpush1.msra.mxu0 0.0
        %1419 = vmatprep.subr.mxu0 0.0
        %1420 = vmatpush1.msra.mxu0 0.0
        %1421 = vmatprep.subr.mxu0 0.0
        %1422 = vmatpush1.msra.mxu0 0.0
        %1423 = vmatprep.subr.mxu0 0.0
        %1424 = vmatpush1.msra.mxu0 0.0
        %1425 = vmatprep.subr.mxu0 0.0
        %1426 = vmatpush1.msra.mxu0 0.0
        %1427 = vmatprep.subr.mxu0 0.0
        %1428 = vmatpush1.msra.mxu0 0.0
        %1429 = vmatprep.subr.mxu0 0.0
        %1430 = vmatpush1.msra.mxu0 0.0
        %1431 = vmatprep.subr.mxu0 0.0
        %1432 = vmatpush1.msra.mxu0 0.0
        %1433 = vmatprep.subr.mxu0 0.0
        %1434 = vmatpush1.msra.mxu0 0.0
        %1435 = vmatprep.subr.mxu0 0.0
        %1436 = vmatpush1.msra.mxu0 0.0
        %1437 = vmatprep.subr.mxu0 0.0
        %1438 = vmatpush1.msra.mxu0 0.0
        %1439 = vmatprep.subr.mxu0 0.0
        %1440 = vmatpush1.msra.mxu0 0.0
        %1441 = vmatprep.subr.mxu0 0.0
        %1442 = vmatpush1.msra.mxu0 0.0
        %1443 = vmatprep.subr.mxu0 0.0
        %1444 = vmatpush1.msra.mxu0 0.0
        %1445 = vmatprep.subr.mxu0 0.0
        %1446 = vmatpush1.msra.mxu0 0.0
        %1447 = vmatprep.subr.mxu0 0.0
        %1448 = vmatpush1.msra.mxu0 0.0
        %1449 = vmatprep.subr.mxu0 0.0
        %1450 = vmatpush1.msra.mxu0 0.0
        %1451 = vmatprep.subr.mxu0 0.0
        %1452 = vmatpush1.msra.mxu0 0.0
        %1453 = vmatprep.subr.mxu0 0.0
        %1454 = vmatpush1.msra.mxu0 0.0
        %1455 = vmatprep.subr.mxu0 0.0
        %1456 = vmatpush1.msra.mxu0 0.0
        %1457 = vmatprep.subr.mxu0 0.0
        %1458 = vmatpush1.msra.mxu0 0.0
        %1459 = vmatprep.subr.mxu0 0.0
        %1460 = vmatpush1.msra.mxu0 0.0
        %1461 = vmatprep.subr.mxu0 0.0
        %1462 = vmatpush1.msra.mxu0 0.0
        %1463 = vmatprep.mubr.f32.mxu0 0.0
        %1464 = vmatmul.mubr.f32.gmra.mrb[0].mxu0 %v1397
        %v1465 = vpop.f32.mrb[0].mxu0
        %v1466 = vadd.f32 0.0, %v1465
        %v1467 = vpop.f32.mrb[0].mxu0
        %1468 = vdwg.mxu0
        %v1470 = vsel %vm941, %v1317, 0
        %1472 = vmatprep.subr.mxu0 0.0
        %1473 = vmatpush1.msra.mxu0 %v1321
        %1474 = vmatprep.subr.mxu0 0.0
        %1475 = vmatpush1.msra.mxu0 0.0
        %1476 = vmatprep.subr.mxu0 0.0
        %1477 = vmatpush1.msra.mxu0 0.0
        %1478 = vmatprep.subr.mxu0 0.0
        %1479 = vmatpush1.msra.mxu0 0.0
        %1480 = vmatprep.subr.mxu0 0.0
        %1481 = vmatpush1.msra.mxu0 0.0
        %1482 = vmatprep.subr.mxu0 0.0
        %1483 = vmatpush1.msra.mxu0 0.0
        %1484 = vmatprep.subr.mxu0 0.0
        %1485 = vmatpush1.msra.mxu0 0.0
        %1486 = vmatprep.subr.mxu0 0.0
        %1487 = vmatpush1.msra.mxu0 0.0
        %1488 = vmatprep.subr.mxu0 0.0
        %1489 = vmatpush1.msra.mxu0 0.0
        %1490 = vmatprep.subr.mxu0 0.0
        %1491 = vmatpush1.msra.mxu0 0.0
        %1492 = vmatprep.subr.mxu0 0.0
        %1493 = vmatpush1.msra.mxu0 0.0
        %1494 = vmatprep.subr.mxu0 0.0
        %1495 = vmatpush1.msra.mxu0 0.0
        %1496 = vmatprep.subr.mxu0 0.0
        %1497 = vmatpush1.msra.mxu0 0.0
        %1498 = vmatprep.subr.mxu0 0.0
        %1499 = vmatpush1.msra.mxu0 0.0
        %1500 = vmatprep.subr.mxu0 0.0
        %1501 = vmatpush1.msra.mxu0 0.0
        %1502 = vmatprep.subr.mxu0 0.0
        %1503 = vmatpush1.msra.mxu0 0.0
        %1504 = vmatprep.subr.mxu0 0.0
        %1505 = vmatpush1.msra.mxu0 0.0
        %1506 = vmatprep.subr.mxu0 0.0
        %1507 = vmatpush1.msra.mxu0 0.0
        %1508 = vmatprep.subr.mxu0 0.0
        %1509 = vmatpush1.msra.mxu0 0.0
        %1510 = vmatprep.subr.mxu0 0.0
        %1511 = vmatpush1.msra.mxu0 0.0
        %1512 = vmatprep.subr.mxu0 0.0
        %1513 = vmatpush1.msra.mxu0 0.0
        %1514 = vmatprep.subr.mxu0 0.0
        %1515 = vmatpush1.msra.mxu0 0.0
        %1516 = vmatprep.subr.mxu0 0.0
        %1517 = vmatpush1.msra.mxu0 0.0
        %1518 = vmatprep.subr.mxu0 0.0
        %1519 = vmatpush1.msra.mxu0 0.0
        %1520 = vmatprep.subr.mxu0 0.0
        %1521 = vmatpush1.msra.mxu0 0.0
        %1522 = vmatprep.subr.mxu0 0.0
        %1523 = vmatpush1.msra.mxu0 0.0
        %1524 = vmatprep.subr.mxu0 0.0
        %1525 = vmatpush1.msra.mxu0 0.0
        %1526 = vmatprep.subr.mxu0 0.0
        %1527 = vmatpush1.msra.mxu0 0.0
        %1528 = vmatprep.subr.mxu0 0.0
        %1529 = vmatpush1.msra.mxu0 0.0
        %1530 = vmatprep.subr.mxu0 0.0
        %1531 = vmatpush1.msra.mxu0 0.0
        %1532 = vmatprep.subr.mxu0 0.0
        %1533 = vmatpush1.msra.mxu0 0.0
        %1534 = vmatprep.subr.mxu0 0.0
        %1535 = vmatpush1.msra.mxu0 0.0
        %1536 = vmatprep.mubr.f32.mxu0 0.0
        %1537 = vmatmul.mubr.f32.gmra.mrb[0].mxu0 %v1470
        %v1538 = vpop.f32.mrb[0].mxu0
        %v1539 = vadd.f32 0.0, %v1538
        %v1540 = vpop.f32.mrb[0].mxu0
        %1541 = vdwg.mxu0
        %v1543 = vsel %vm941, %v1318, 0
        %1545 = vmatprep.subr.mxu0 0.0
        %1546 = vmatpush1.msra.mxu0 %v1322
        %1547 = vmatprep.subr.mxu0 0.0
        %1548 = vmatpush1.msra.mxu0 0.0
        %1549 = vmatprep.subr.mxu0 0.0
        %1550 = vmatpush1.msra.mxu0 0.0
        %1551 = vmatprep.subr.mxu0 0.0
        %1552 = vmatpush1.msra.mxu0 0.0
        %1553 = vmatprep.subr.mxu0 0.0
        %1554 = vmatpush1.msra.mxu0 0.0
        %1555 = vmatprep.subr.mxu0 0.0
        %1556 = vmatpush1.msra.mxu0 0.0
        %1557 = vmatprep.subr.mxu0 0.0
        %1558 = vmatpush1.msra.mxu0 0.0
        %1559 = vmatprep.subr.mxu0 0.0
        %1560 = vmatpush1.msra.mxu0 0.0
        %1561 = vmatprep.subr.mxu0 0.0
        %1562 = vmatpush1.msra.mxu0 0.0
        %1563 = vmatprep.subr.mxu0 0.0
        %1564 = vmatpush1.msra.mxu0 0.0
        %1565 = vmatprep.subr.mxu0 0.0
        %1566 = vmatpush1.msra.mxu0 0.0
        %1567 = vmatprep.subr.mxu0 0.0
        %1568 = vmatpush1.msra.mxu0 0.0
        %1569 = vmatprep.subr.mxu0 0.0
        %1570 = vmatpush1.msra.mxu0 0.0
        %1571 = vmatprep.subr.mxu0 0.0
        %1572 = vmatpush1.msra.mxu0 0.0
        %1573 = vmatprep.subr.mxu0 0.0
        %1574 = vmatpush1.msra.mxu0 0.0
        %1575 = vmatprep.subr.mxu0 0.0
        %1576 = vmatpush1.msra.mxu0 0.0
        %1577 = vmatprep.subr.mxu0 0.0
        %1578 = vmatpush1.msra.mxu0 0.0
        %1579 = vmatprep.subr.mxu0 0.0
        %1580 = vmatpush1.msra.mxu0 0.0
        %1581 = vmatprep.subr.mxu0 0.0
        %1582 = vmatpush1.msra.mxu0 0.0
        %1583 = vmatprep.subr.mxu0 0.0
        %1584 = vmatpush1.msra.mxu0 0.0
        %1585 = vmatprep.subr.mxu0 0.0
        %1586 = vmatpush1.msra.mxu0 0.0
        %1587 = vmatprep.subr.mxu0 0.0
        %1588 = vmatpush1.msra.mxu0 0.0
        %1589 = vmatprep.subr.mxu0 0.0
        %1590 = vmatpush1.msra.mxu0 0.0
        %1591 = vmatprep.subr.mxu0 0.0
        %1592 = vmatpush1.msra.mxu0 0.0
        %1593 = vmatprep.subr.mxu0 0.0
        %1594 = vmatpush1.msra.mxu0 0.0
        %1595 = vmatprep.subr.mxu0 0.0
        %1596 = vmatpush1.msra.mxu0 0.0
        %1597 = vmatprep.subr.mxu0 0.0
        %1598 = vmatpush1.msra.mxu0 0.0
        %1599 = vmatprep.subr.mxu0 0.0
        %1600 = vmatpush1.msra.mxu0 0.0
        %1601 = vmatprep.subr.mxu0 0.0
        %1602 = vmatpush1.msra.mxu0 0.0
        %1603 = vmatprep.subr.mxu0 0.0
        %1604 = vmatpush1.msra.mxu0 0.0
        %1605 = vmatprep.subr.mxu0 0.0
        %1606 = vmatpush1.msra.mxu0 0.0
        %1607 = vmatprep.subr.mxu0 0.0
        %1608 = vmatpush1.msra.mxu0 0.0
        %1609 = vmatprep.mubr.f32.mxu0 0.0
        %1610 = vmatmul.mubr.f32.gmra.mrb[0].mxu0 %v1543
        %v1611 = vpop.f32.mrb[0].mxu0
        %v1612 = vadd.f32 0.0, %v1611
        %v1613 = vpop.f32.mrb[0].mxu0
        %1614 = vdwg.mxu0
        %1615 = vst.msk [vmem:[#allocation5] sm:$0xff] %vm941, %v1393
        %1617 = vrot.lane.b32.xlu0 %v1466, 8
        %v1618 = vpop.permute.xlu0 %1617
        %vm1620 = vcmask 130112
        %1621 = vst.msk [vmem:[#allocation5] sm:$0xff] %vm1620, %v1618
        %1623 = vrot.lane.b32.xlu0 %v1539, 16
        %v1624 = vpop.permute.xlu0 %1623
        %vm1626 = vcmask 195712
        %1627 = vst.msk [vmem:[#allocation5] sm:$0xff] %vm1626, %v1624
        %1629 = vrot.lane.b32.xlu0 %v1612, 24
        %v1630 = vpop.permute.xlu0 %1629
        %vm1632 = vcmask 261312
        %1633 = vst.msk [vmem:[#allocation5] sm:$0xff] %vm1632, %v1630
        %v1634 = vld [vmem:[#allocation5] sm:$0xff]
        %v1635 = vld [vmem:[%s10] sm:$0xff]
        %v1636 = vld [vmem:[%s10 + $0x8] sm:$0xff]
        %v1637 = vld [vmem:[%s10 + $0x10] sm:$0xff]
        %v1638 = vld [vmem:[%s10 + $0x18] sm:$0xff]
        %v1639 = vld [vmem:[%s11] sm:$0x1]
        %v1641 = vlaneseq
        %v1642 = vshrl.u32 %v1641, 7
        %v1643 = vsub.s32 0, %v1642
        %v1644 = vrot.slane %v1639, %v1643
        %v1647 = vsel %vm800, %v1634, 0
        %1649 = vmatprep.subr.mxu0 0.0
        %1650 = vmatpush1.msra.mxu0 %v1635
        %1651 = vmatprep.subr.mxu0 0.0
        %1652 = vmatpush1.msra.mxu0 %v1636
        %1653 = vmatprep.subr.mxu0 0.0
        %1654 = vmatpush1.msra.mxu0 %v1637
        %1655 = vmatprep.subr.mxu0 0.0
        %1656 = vmatpush1.msra.mxu0 %v1638
        %1657 = vmatprep.subr.mxu0 0.0
        %1658 = vmatpush1.msra.mxu0 0.0
        %1659 = vmatprep.subr.mxu0 0.0
        %1660 = vmatpush1.msra.mxu0 0.0
        %1661 = vmatprep.subr.mxu0 0.0
        %1662 = vmatpush1.msra.mxu0 0.0
        %1663 = vmatprep.subr.mxu0 0.0
        %1664 = vmatpush1.msra.mxu0 0.0
        %1665 = vmatprep.subr.mxu0 0.0
        %1666 = vmatpush1.msra.mxu0 0.0
        %1667 = vmatprep.subr.mxu0 0.0
        %1668 = vmatpush1.msra.mxu0 0.0
        %1669 = vmatprep.subr.mxu0 0.0
        %1670 = vmatpush1.msra.mxu0 0.0
        %1671 = vmatprep.subr.mxu0 0.0
        %1672 = vmatpush1.msra.mxu0 0.0
        %1673 = vmatprep.subr.mxu0 0.0
        %1674 = vmatpush1.msra.mxu0 0.0
        %1675 = vmatprep.subr.mxu0 0.0
        %1676 = vmatpush1.msra.mxu0 0.0
        %1677 = vmatprep.subr.mxu0 0.0
        %1678 = vmatpush1.msra.mxu0 0.0
        %1679 = vmatprep.subr.mxu0 0.0
        %1680 = vmatpush1.msra.mxu0 0.0
        %1681 = vmatprep.subr.mxu0 0.0
        %1682 = vmatpush1.msra.mxu0 0.0
        %1683 = vmatprep.subr.mxu0 0.0
        %1684 = vmatpush1.msra.mxu0 0.0
        %1685 = vmatprep.subr.mxu0 0.0
        %1686 = vmatpush1.msra.mxu0 0.0
        %1687 = vmatprep.subr.mxu0 0.0
        %1688 = vmatpush1.msra.mxu0 0.0
        %1689 = vmatprep.subr.mxu0 0.0
        %1690 = vmatpush1.msra.mxu0 0.0
        %1691 = vmatprep.subr.mxu0 0.0
        %1692 = vmatpush1.msra.mxu0 0.0
        %1693 = vmatprep.subr.mxu0 0.0
        %1694 = vmatpush1.msra.mxu0 0.0
        %1695 = vmatprep.subr.mxu0 0.0
        %1696 = vmatpush1.msra.mxu0 0.0
        %1697 = vmatprep.subr.mxu0 0.0
        %1698 = vmatpush1.msra.mxu0 0.0
        %1699 = vmatprep.subr.mxu0 0.0
        %1700 = vmatpush1.msra.mxu0 0.0
        %1701 = vmatprep.subr.mxu0 0.0
        %1702 = vmatpush1.msra.mxu0 0.0
        %1703 = vmatprep.subr.mxu0 0.0
        %1704 = vmatpush1.msra.mxu0 0.0
        %1705 = vmatprep.subr.mxu0 0.0
        %1706 = vmatpush1.msra.mxu0 0.0
        %1707 = vmatprep.subr.mxu0 0.0
        %1708 = vmatpush1.msra.mxu0 0.0
        %1709 = vmatprep.subr.mxu0 0.0
        %1710 = vmatpush1.msra.mxu0 0.0
        %1711 = vmatprep.subr.mxu0 0.0
        %1712 = vmatpush1.msra.mxu0 0.0
        %1713 = vmatprep.mubr.f32.mxu0 0.0
        %1714 = vmatmul.mubr.f32.gmra.mrb[0].mxu0 %v1647
        %v1715 = vpop.f32.mrb[0].mxu0
        %v1716 = vadd.f32 %v1644, %v1715
        %v1717 = vpop.f32.mrb[0].mxu0
        %1718 = vdwg.mxu0
        %v1719 = vadd.f32 %v799, %v1716
        %v1720 = vld [vmem:[%s12] sm:$0x1]
        %v1721 = vld [vmem:[%s13] sm:$0x1]
        %v1722 = vsel %vm800, %v1719, 0.0
        %1723 = vadd.xlane.f32.xlu0 %v1722
        %v1724 = vpop.xlane.xlu0 %1723
        %v1725 = vmul.f32 %v1724, %v804
        %v1726 = vsub.f32 %v1719, %v1725
        %v1727 = vmul.f32 %v1726, %v1726
        %v1728 = vsel %vm800, %v1727, 0.0
        %1729 = vadd.xlane.f32.xlu0 %v1728
        %v1730 = vpop.xlane.xlu0 %1729
        %v1731 = vmul.f32 %v1730, %v804
        %v1732 = vadd.f32 %v1731, 1e-05
        %v1733 = vrsqrt.pop %v1732
        %v1734 = vmul.f32 %v1726, %v1733
        %v1736 = vlaneseq
        %v1737 = vshrl.u32 %v1736, 7
        %v1738 = vsub.s32 0, %v1737
        %v1739 = vrot.slane %v1720, %v1738
        %v1741 = vmul.f32 %v1734, %v1739
        %v1743 = vlaneseq
        %v1744 = vshrl.u32 %v1743, 7
        %v1745 = vsub.s32 0, %v1744
        %v1746 = vrot.slane %v1721, %v1745
        %v1748 = vadd.f32 %v1741, %v1746
        %v1749 = vld [vmem:[%s14] sm:$0xff]
        %v1750 = vld [vmem:[%s14 + $0x8] sm:$0xff]
        %v1751 = vld [vmem:[%s14 + $0x10] sm:$0xff]
        %v1752 = vld [vmem:[%s14 + $0x18] sm:$0xff]
        %v1753 = vld [vmem:[%s15] sm:$0x1]
        %v1755 = vlaneseq
        %v1756 = vshrl.u32 %v1755, 7
        %v1757 = vsub.s32 0, %v1756
        %v1758 = vrot.slane %v1753, %v1757
        %v1761 = vsel %vm800, %v1748, 0
        %1763 = vmatprep.subr.mxu0 0.0
        %1764 = vmatpush1.msra.mxu0 %v1749
        %1765 = vmatprep.subr.mxu0 0.0
        %1766 = vmatpush1.msra.mxu0 %v1750
        %1767 = vmatprep.subr.mxu0 0.0
        %1768 = vmatpush1.msra.mxu0 %v1751
        %1769 = vmatprep.subr.mxu0 0.0
        %1770 = vmatpush1.msra.mxu0 %v1752
        %1771 = vmatprep.subr.mxu0 0.0
        %1772 = vmatpush1.msra.mxu0 0.0
        %1773 = vmatprep.subr.mxu0 0.0
        %1774 = vmatpush1.msra.mxu0 0.0
        %1775 = vmatprep.subr.mxu0 0.0
        %1776 = vmatpush1.msra.mxu0 0.0
        %1777 = vmatprep.subr.mxu0 0.0
        %1778 = vmatpush1.msra.mxu0 0.0
        %1779 = vmatprep.subr.mxu0 0.0
        %1780 = vmatpush1.msra.mxu0 0.0
        %1781 = vmatprep.subr.mxu0 0.0
        %1782 = vmatpush1.msra.mxu0 0.0
        %1783 = vmatprep.subr.mxu0 0.0
        %1784 = vmatpush1.msra.mxu0 0.0
        %1785 = vmatprep.subr.mxu0 0.0
        %1786 = vmatpush1.msra.mxu0 0.0
        %1787 = vmatprep.subr.mxu0 0.0
        %1788 = vmatpush1.msra.mxu0 0.0
        %1789 = vmatprep.subr.mxu0 0.0
        %1790 = vmatpush1.msra.mxu0 0.0
        %1791 = vmatprep.subr.mxu0 0.0
        %1792 = vmatpush1.msra.mxu0 0.0
        %1793 = vmatprep.subr.mxu0 0.0
        %1794 = vmatpush1.msra.mxu0 0.0
        %1795 = vmatprep.subr.mxu0 0.0
        %1796 = vmatpush1.msra.mxu0 0.0
        %1797 = vmatprep.subr.mxu0 0.0
        %1798 = vmatpush1.msra.mxu0 0.0
        %1799 = vmatprep.subr.mxu0 0.0
        %1800 = vmatpush1.msra.mxu0 0.0
        %1801 = vmatprep.subr.mxu0 0.0
        %1802 = vmatpush1.msra.mxu0 0.0
        %1803 = vmatprep.subr.mxu0 0.0
        %1804 = vmatpush1.msra.mxu0 0.0
        %1805 = vmatprep.subr.mxu0 0.0
        %1806 = vmatpush1.msra.mxu0 0.0
        %1807 = vmatprep.subr.mxu0 0.0
        %1808 = vmatpush1.msra.mxu0 0.0
        %1809 = vmatprep.subr.mxu0 0.0
        %1810 = vmatpush1.msra.mxu0 0.0
        %1811 = vmatprep.subr.mxu0 0.0
        %1812 = vmatpush1.msra.mxu0 0.0
        %1813 = vmatprep.subr.mxu0 0.0
        %1814 = vmatpush1.msra.mxu0 0.0
        %1815 = vmatprep.subr.mxu0 0.0
        %1816 = vmatpush1.msra.mxu0 0.0
        %1817 = vmatprep.subr.mxu0 0.0
        %1818 = vmatpush1.msra.mxu0 0.0
        %1819 = vmatprep.subr.mxu0 0.0
        %1820 = vmatpush1.msra.mxu0 0.0
        %1821 = vmatprep.subr.mxu0 0.0
        %1822 = vmatpush1.msra.mxu0 0.0
        %1823 = vmatprep.subr.mxu0 0.0
        %1824 = vmatpush1.msra.mxu0 0.0
        %1825 = vmatprep.subr.mxu0 0.0
        %1826 = vmatpush1.msra.mxu0 0.0
        %1827 = vmatprep.mubr.f32.mxu0 0.0
        %1828 = vmatmul.mubr.f32.gmra.mrb[0].mxu0 %v1761
        %v1829 = vpop.f32.mrb[0].mxu0
        %v1830 = vadd.f32 %v1758, %v1829
        %v1831 = vpop.f32.mrb[0].mxu0
        %1832 = vdwg.mxu0
        %v1833 = vmax.f32 %v1830, 0.0
        %v1834 = vld [vmem:[%s16] sm:$0xff]
        %v1835 = vld [vmem:[%s16 + $0x8] sm:$0xff]
        %v1836 = vld [vmem:[%s16 + $0x10] sm:$0xff]
        %v1837 = vld [vmem:[%s16 + $0x18] sm:$0xff]
        %v1838 = vld [vmem:[%s16 + $0x20] sm:$0xff]
        %v1839 = vld [vmem:[%s16 + $0x28] sm:$0xff]
        %v1840 = vld [vmem:[%s16 + $0x30] sm:$0xff]
        %v1841 = vld [vmem:[%s16 + $0x38] sm:$0xff]
        %v1842 = vld [vmem:[%s16 + $0x40] sm:$0xff]
        %v1843 = vld [vmem:[%s16 + $0x48] sm:$0xff]
        %v1844 = vld [vmem:[%s16 + $0x50] sm:$0xff]
        %v1845 = vld [vmem:[%s16 + $0x58] sm:$0xff]
        %v1846 = vld [vmem:[%s16 + $0x60] sm:$0xff]
        %v1847 = vld [vmem:[%s16 + $0x68] sm:$0xff]
        %v1848 = vld [vmem:[%s16 + $0x70] sm:$0xff]
        %v1849 = vld [vmem:[%s16 + $0x78] sm:$0xff]
        %v1850 = vld [vmem:[%s17] sm:$0x1]
        %v1852 = vlaneseq
        %v1853 = vshrl.u32 %v1852, 7
        %v1854 = vsub.s32 0, %v1853
        %v1855 = vrot.slane %v1850, %v1854
        %1857 = vmatprep.subr.mxu0 0.0
        %1858 = vmatpush1.msra.mxu0 %v1834
        %1859 = vmatprep.subr.mxu0 0.0
        %1860 = vmatpush1.msra.mxu0 %v1835
        %1861 = vmatprep.subr.mxu0 0.0
        %1862 = vmatpush1.msra.mxu0 %v1836
        %1863 = vmatprep.subr.mxu0 0.0
        %1864 = vmatpush1.msra.mxu0 %v1837
        %1865 = vmatprep.subr.mxu0 0.0
        %1866 = vmatpush1.msra.mxu0 %v1838
        %1867 = vmatprep.subr.mxu0 0.0
        %1868 = vmatpush1.msra.mxu0 %v1839
        %1869 = vmatprep.subr.mxu0 0.0
        %1870 = vmatpush1.msra.mxu0 %v1840
        %1871 = vmatprep.subr.mxu0 0.0
        %1872 = vmatpush1.msra.mxu0 %v1841
        %1873 = vmatprep.subr.mxu0 0.0
        %1874 = vmatpush1.msra.mxu0 %v1842
        %1875 = vmatprep.subr.mxu0 0.0
        %1876 = vmatpush1.msra.mxu0 %v1843
        %1877 = vmatprep.subr.mxu0 0.0
        %1878 = vmatpush1.msra.mxu0 %v1844
        %1879 = vmatprep.subr.mxu0 0.0
        %1880 = vmatpush1.msra.mxu0 %v1845
        %1881 = vmatprep.subr.mxu0 0.0
        %1882 = vmatpush1.msra.mxu0 %v1846
        %1883 = vmatprep.subr.mxu0 0.0
        %1884 = vmatpush1.msra.mxu0 %v1847
        %1885 = vmatprep.subr.mxu0 0.0
        %1886 = vmatpush1.msra.mxu0 %v1848
        %1887 = vmatprep.subr.mxu0 0.0
        %1888 = vmatpush1.msra.mxu0 %v1849
        %1889 = vmatprep.subr.mxu0 0.0
        %1890 = vmatpush1.msra.mxu0 0.0
        %1891 = vmatprep.subr.mxu0 0.0
        %1892 = vmatpush1.msra.mxu0 0.0
        %1893 = vmatprep.subr.mxu0 0.0
        %1894 = vmatpush1.msra.mxu0 0.0
        %1895 = vmatprep.subr.mxu0 0.0
        %1896 = vmatpush1.msra.mxu0 0.0
        %1897 = vmatprep.subr.mxu0 0.0
        %1898 = vmatpush1.msra.mxu0 0.0
        %1899 = vmatprep.subr.mxu0 0.0
        %1900 = vmatpush1.msra.mxu0 0.0
        %1901 = vmatprep.subr.mxu0 0.0
        %1902 = vmatpush1.msra.mxu0 0.0
        %1903 = vmatprep.subr.mxu0 0.0
        %1904 = vmatpush1.msra.mxu0 0.0
        %1905 = vmatprep.subr.mxu0 0.0
        %1906 = vmatpush1.msra.mxu0 0.0
        %1907 = vmatprep.subr.mxu0 0.0
        %1908 = vmatpush1.msra.mxu0 0.0
        %1909 = vmatprep.subr.mxu0 0.0
        %1910 = vmatpush1.msra.mxu0 0.0
        %1911 = vmatprep.subr.mxu0 0.0
        %1912 = vmatpush1.msra.mxu0 0.0
        %1913 = vmatprep.subr.mxu0 0.0
        %1914 = vmatpush1.msra.mxu0 0.0
        %1915 = vmatprep.subr.mxu0 0.0
        %1916 = vmatpush1.msra.mxu0 0.0
        %1917 = vmatprep.subr.mxu0 0.0
        %1918 = vmatpush1.msra.mxu0 0.0
        %1919 = vmatprep.subr.mxu0 0.0
        %1920 = vmatpush1.msra.mxu0 0.0
        %1921 = vmatprep.mubr.f32.mxu0 0.0
        %1922 = vmatmul.mubr.f32.gmra.mrb[0].mxu0 %v1833
        %v1923 = vpop.f32.mrb[0].mxu0
        %v1924 = vadd.f32 %v1855, %v1923
        %v1925 = vpop.f32.mrb[0].mxu0
        %1926 = vdwg.mxu0
        %v1927 = vadd.f32 %v1719, %v1924
        %1928 = vst.msk [vmem:[%s601] sm:$0xff] %vm800, %v1927
        %s1929 = sand.u32 %s444, 1
        %s1930 = scalar_lea.sflag [#allocation7], %s1929
        %s1931 = sand.u32 %s444, 1
        %s1932 = smul.addr %s1931, 8
        %s1933 = scalar_lea.vmem [#allocation6], %s1932
        // Predicated region
        $region97: #{tpu_custom_call.1} parent=91 // pred_check
          %p1934 = pneg %p454
        $region98: #{tpu_custom_call.1} parent=91 // pred_check_branch
          %1936 = sbr.rel (%p1934) target = $region100
        $region99: #{tpu_custom_call.1} parent=91 // pred_region
          %s1938 = ssub.s32 128, 128
          %1939 = vsyncadd %s1930, %s1938
          %s1940 = sadd.s32 %s37, %s36
          %s1941 = smul.addr %s1940, 128
          %s1942 = scalar_lea.hbm %s18, %s1941
          %s1944 = sshll.u32 %s1933, 4
          %s1945 = int_to_ptr.vmem [resolvable:$true] %s1944
          %1947 = dma.vmem_to_hbm [thread:$0]  %s1945, 128, %s1942, %s1930
        $region100: #{tpu_custom_call.1} parent=91 // pred_fallthru
          _
      $region92: #{tpu_custom_call.1} parent=5 // pred_fallthru
        _
      %p1948 = scmp.le.s32.totalorder 2, %s27
      // Predicated region
      $region101: #{tpu_custom_call.1} parent=5 // pred_check
        %p1949 = pneg %p1948
      $region102: #{tpu_custom_call.1} parent=5 // pred_check_branch
        %1951 = sbr.rel (%p1949) target = $region104
      $region103: #{tpu_custom_call.1} parent=5 // pred_region
        %s1952 = ssub.s32 %s27, 2
        // Predicated region
        $region105: #{tpu_custom_call.1} parent=103 // pred_check
          %p1953 = pneg %p460
        $region106: #{tpu_custom_call.1} parent=103 // pred_check_branch
          %1955 = sbr.rel (%p1953) target = $region108
        $region107: #{tpu_custom_call.1} parent=103 // pred_region
          %s1956 = sand.u32 %s445, 1
          %s1957 = scalar_lea.sflag [#allocation7], %s1956
          %s1958 = sand.u32 %s445, 1
          %s1959 = smul.addr %s1958, 8
          %s1960 = scalar_lea.vmem [#allocation6], %s1959
          %1961 = dma.done %s1957, 128
        $region108: #{tpu_custom_call.1} parent=103 // pred_fallthru
          _
      $region104: #{tpu_custom_call.1} parent=5 // pred_fallthru
        _
    $region6: #{tpu_custom_call.1} parent=1 // loop_footer
      %s31 = sadd.s32 1, %s27
    $region7: #{tpu_custom_call.1} parent=1 // loop_footer_branch
      %26 = sbr.rel target = $region3
    $region8: #{tpu_custom_call.1} parent=1 // loop_exit
      _
    %1962 = vsyncpa [#allocation7], 1
    %s1963 = scalar_lea.sflag [#allocation7], 1
    %1964 = vsyncpa %s1963, 1

</llo_original>
